<compile_context>
chip_gen: v5e
topology: v5e:2x2
jax: 0.10.0
libtpu: 0.0.40
codegen_flags: <defaults>
</compile_context>

<pallas_src>
import jax
import jax.numpy as jnp
from jax.experimental import pallas as pl
from jax.experimental.pallas import tpu as pltpu


def mlp_kernel_single(x_ref, w1_ref, b1_ref, w2_ref, b2_ref, o_ref):
    """Whole hidden axis in one step: no accumulator, direct output write."""
    # In-kernel activation cast (avoids a separate XLA convert dispatch).
    x = x_ref[...].astype(jnp.bfloat16)
    # fc1 + ReLU: (B, D_in) @ (D_in, H) on the MXU, f32 accumulation.
    h = jnp.dot(x, w1_ref[...], preferred_element_type=jnp.float32)
    h = jnp.maximum(h + b1_ref[...].astype(jnp.float32), 0.0)
    # fc2: (B, H) @ (H, D_out), f32 accumulation, bias added in f32.
    y = jnp.dot(h.astype(w2_ref.dtype), w2_ref[...],
                preferred_element_type=jnp.float32)
    y = y + b2_ref[...].astype(jnp.float32)
    o_ref[...] = y.astype(o_ref.dtype)


def mlp_kernel_streamed(x_ref, w1_ref, b1_ref, w2_ref, b2_ref, o_ref, acc_ref):
    """H streamed over the grid; f32 VMEM accumulator with b2 folded into init."""
    k = pl.program_id(0)

    @pl.when(k == 0)
    def _init():
        acc_ref[...] = jnp.broadcast_to(
            b2_ref[...].astype(jnp.float32), acc_ref.shape
        )

    x = x_ref[...].astype(jnp.bfloat16)
    h = jnp.dot(x, w1_ref[...], preferred_element_type=jnp.float32)
    h = jnp.maximum(h + b1_ref[...].astype(jnp.float32), 0.0)
    acc_ref[...] += jnp.dot(h.astype(w2_ref.dtype), w2_ref[...],
                            preferred_element_type=jnp.float32)

    @pl.when(k == pl.num_programs(0) - 1)
    def _finalize():
        o_ref[...] = acc_ref[...].astype(o_ref.dtype)


def dummy_model_forward(x, w1, b1, w2, b2, *, block_h=None):
    """x: [B, D_in] (f32); w1: [D_in, H], b1: [H], w2: [H, D_out], b2: [D_out] (bf16)."""
    B, D_in = x.shape
    D_in2, H = w1.shape
    H2, D_out = w2.shape
    assert D_in == D_in2 and H == H2

    # Default / fallback: whole hidden axis in one step (fits VMEM easily here).
    if block_h is None or block_h >= H or H % block_h != 0:
        block_h = H
    n_h = H // block_h

    b1_2d = b1.reshape(1, H)
    b2_2d = b2.reshape(1, D_out)

    w_itemsize = jnp.dtype(w1.dtype).itemsize
    x_itemsize = jnp.dtype(x.dtype).itemsize
    cost = pl.CostEstimate(
        flops=2 * B * (D_in * H + H * D_out),
        bytes_accessed=(D_in * H + H * D_out + H + D_out) * w_itemsize
        + B * D_in * x_itemsize
        + B * D_out * x_itemsize,
        transcendentals=0,
    )

    if n_h == 1:
        kernel = mlp_kernel_single
        scratch_shapes = []
    else:
        kernel = mlp_kernel_streamed
        scratch_shapes = [pltpu.VMEM((B, D_out), jnp.float32)]

    return pl.pallas_call(
        kernel,
        out_shape=jax.ShapeDtypeStruct((B, D_out), x.dtype),
        grid_spec=pltpu.PrefetchScalarGridSpec(
            num_scalar_prefetch=0,
            grid=(n_h,),
            in_specs=[
                pl.BlockSpec((B, D_in), lambda k: (0, 0)),         # x (resident, f32)
                pl.BlockSpec((D_in, block_h), lambda k: (0, k)),   # W1 chunk
                pl.BlockSpec((1, block_h), lambda k: (0, k)),      # b1 chunk
                pl.BlockSpec((block_h, D_out), lambda k: (k, 0)),  # W2 chunk
                pl.BlockSpec((1, D_out), lambda k: (0, 0)),        # b2 (resident)
            ],
            out_specs=pl.BlockSpec((B, D_out), lambda k: (0, 0)),
            scratch_shapes=scratch_shapes,
        ),
        compiler_params=pltpu.CompilerParams(
            dimension_semantics=("arbitrary",),   # H axis is a reduction
            vmem_limit_bytes=32 * 1024 * 1024,
        ),
        cost_estimate=cost,
    )(x, w1, b1_2d, w2, b2_2d)


def reference_forward_f32(x, w1, b1, w2, b2):
    """Pure-JAX reference in f32 on the (dequantized) operands."""
    h = jnp.maximum(x @ w1 + b1, 0.0)
    return h @ w2 + b2


if __name__ == "__main__":
    # Module default dims: input_size=768, hidden_size=1024, output_size=768.
    batch, d_in, hidden, d_out = 8, 768, 1024, 768

    key = jax.random.PRNGKey(0)
    kx, kw1, kb1, kw2, kb2 = jax.random.split(key, 5)

    # Deterministic synthetic parameters (kaiming-ish scale), master copies in f32.
    x = jax.random.normal(kx, (batch, d_in), dtype=jnp.float32)
    w1 = jax.random.normal(kw1, (d_in, hidden), dtype=jnp.float32) * (1.0 / d_in ** 0.5)
    b1 = jax.random.normal(kb1, (hidden,), dtype=jnp.float32) * 0.01
    w2 = jax.random.normal(kw2, (hidden, d_out), dtype=jnp.float32) * (1.0 / hidden ** 0.5)
    b2 = jax.random.normal(kb2, (d_out,), dtype=jnp.float32) * 0.01

    # bf16 storage of the model parameters (half the HBM bytes per call).
    w1_q = w1.astype(jnp.bfloat16)
    b1_q = b1.astype(jnp.bfloat16)
    w2_q = w2.astype(jnp.bfloat16)
    b2_q = b2.astype(jnp.bfloat16)

    # Reference: f32 math on the same bf16-quantized operands (the kernel also
    # rounds h to bf16 before fc2; both effects stay well inside 2e-2 tolerance).
    ref = reference_forward_f32(
        x.astype(jnp.bfloat16).astype(jnp.float32),
        w1_q.astype(jnp.float32),
        b1_q.astype(jnp.float32),
        w2_q.astype(jnp.float32),
        b2_q.astype(jnp.float32),
    )

    # Default path: block_h = H -> single grid step, no accumulator scratch.
    out = dummy_model_forward(x, w1_q, b1_q, w2_q, b2_q)
    out = jax.block_until_ready(out)
    assert out.shape == (batch, d_out)
    assert jnp.allclose(out, ref, atol=2e-2, rtol=2e-2), "single-step mismatch"

    # Streamed path (block_h=512 sweep point) kept correct as well.
    out_s = dummy_model_forward(x, w1_q, b1_q, w2_q, b2_q, block_h=512)
    out_s = jax.block_until_ready(out_s)
    assert jnp.allclose(out_s, ref, atol=2e-2, rtol=2e-2), "streamed mismatch"

    print("KERNEL_OK")
</pallas_src>

<mosaic_0001>
module attributes {stable_mosaic.version = 11 : i64} {
  func.func @mlp_kernel_single(%arg0: i32, %arg1: memref<8x768xf32, #tpu.memory_space<vmem>>, %arg2: memref<768x1024xbf16, #tpu.memory_space<vmem>>, %arg3: memref<1x1024xbf16, #tpu.memory_space<vmem>>, %arg4: memref<1024x768xbf16, #tpu.memory_space<vmem>>, %arg5: memref<1x768xbf16, #tpu.memory_space<vmem>>, %arg6: memref<8x768xf32, #tpu.memory_space<vmem>>) attributes {dimension_semantics = [#tpu.dimension_semantics<arbitrary>], iteration_bounds = array<i64: 1>, scalar_prefetch = 0 : i64, scratch_operands = 0 : i64, tpu.core_type = #tpu.core_type<tc>, window_params = [{pipeline_mode = #tpu.pipeline_mode<synchronous>, transform_indices = @transform_0, window_bounds = array<i64: 8, 768>}, {transform_indices = @transform_1, window_bounds = array<i64: 768, 1024>}, {transform_indices = @transform_2, window_bounds = array<i64: 1, 1024>}, {transform_indices = @transform_3, window_bounds = array<i64: 1024, 768>}, {pipeline_mode = #tpu.pipeline_mode<synchronous>, transform_indices = @transform_4, window_bounds = array<i64: 1, 768>}, {pipeline_mode = #tpu.pipeline_mode<synchronous>, transform_indices = @transform_5, window_bounds = array<i64: 8, 768>}]} {
    %c0 = arith.constant 0 : index
    %c0_0 = arith.constant 0 : index
    %0 = vector.load %arg1[%c0, %c0_0] : memref<8x768xf32, #tpu.memory_space<vmem>>, vector<8x768xf32>
    %1 = arith.truncf %0 : vector<8x768xf32> to vector<8x768xbf16>
    %c0_1 = arith.constant 0 : index
    %c0_2 = arith.constant 0 : index
    %2 = vector.load %arg2[%c0_1, %c0_2] : memref<768x1024xbf16, #tpu.memory_space<vmem>>, vector<768x1024xbf16>
    %cst = arith.constant dense<0.000000e+00> : vector<8x1024xf32>
    %3 = tpu.matmul %1, %2, %cst {dimension_numbers = #tpu.dot_dimension_numbers<[1], [0], [0], [1], [0, 0, 1, 1], [], []>} : vector<8x768xbf16>, vector<768x1024xbf16>, vector<8x1024xf32> -> vector<8x1024xf32>
    %c0_3 = arith.constant 0 : index
    %c0_4 = arith.constant 0 : index
    %4 = vector.load %arg3[%c0_3, %c0_4] : memref<1x1024xbf16, #tpu.memory_space<vmem>>, vector<1x1024xbf16>
    %5 = arith.extf %4 : vector<1x1024xbf16> to vector<1x1024xf32>
    %6 = vector.broadcast %5 : vector<1x1024xf32> to vector<8x1024xf32>
    %7 = arith.addf %3, %6 : vector<8x1024xf32>
    %cst_5 = arith.constant 0.000000e+00 : f32
    %8 = vector.broadcast %cst_5 : f32 to vector<8x1024xf32>
    %9 = arith.maximumf %7, %8 : vector<8x1024xf32>
    %10 = arith.truncf %9 : vector<8x1024xf32> to vector<8x1024xbf16>
    %c0_6 = arith.constant 0 : index
    %c0_7 = arith.constant 0 : index
    %11 = vector.load %arg4[%c0_6, %c0_7] : memref<1024x768xbf16, #tpu.memory_space<vmem>>, vector<1024x768xbf16>
    %cst_8 = arith.constant dense<0.000000e+00> : vector<8x768xf32>
    %12 = tpu.matmul %10, %11, %cst_8 {dimension_numbers = #tpu.dot_dimension_numbers<[1], [0], [0], [1], [0, 0, 1, 1], [], []>} : vector<8x1024xbf16>, vector<1024x768xbf16>, vector<8x768xf32> -> vector<8x768xf32>
    %c0_9 = arith.constant 0 : index
    %c0_10 = arith.constant 0 : index
    %13 = vector.load %arg5[%c0_9, %c0_10] : memref<1x768xbf16, #tpu.memory_space<vmem>>, vector<1x768xbf16>
    %14 = arith.extf %13 : vector<1x768xbf16> to vector<1x768xf32>
    %15 = vector.broadcast %14 : vector<1x768xf32> to vector<8x768xf32>
    %16 = arith.addf %12, %15 : vector<8x768xf32>
    %c0_11 = arith.constant 0 : index
    %c0_12 = arith.constant 0 : index
    %17 = vector.load %arg6[%c0_11, %c0_12] : memref<8x768xf32, #tpu.memory_space<vmem>>, vector<8x768xf32>
    tpu.vector_store %arg6[%c0_11, %c0_12], %16 {strides = array<i32>} : memref<8x768xf32, #tpu.memory_space<vmem>>, vector<8x768xf32>,
    return
  }
  func.func @transform_0(%arg0: i32) -> (i32, i32) {
    %c0_i32 = arith.constant 0 : i32
    %c0_i32_0 = arith.constant 0 : i32
    %c0_i32_1 = arith.constant 0 : i32
    return %c0_i32, %c0_i32_0 : i32, i32
  }
  func.func @transform_1(%arg0: i32) -> (i32, i32) {
    %c0_i32 = arith.constant 0 : i32
    %c0_i32_0 = arith.constant 0 : i32
    return %c0_i32, %arg0 : i32, i32
  }
  func.func @transform_2(%arg0: i32) -> (i32, i32) {
    %c0_i32 = arith.constant 0 : i32
    %c0_i32_0 = arith.constant 0 : i32
    return %c0_i32, %arg0 : i32, i32
  }
  func.func @transform_3(%arg0: i32) -> (i32, i32) {
    %c0_i32 = arith.constant 0 : i32
    %c0_i32_0 = arith.constant 0 : i32
    return %arg0, %c0_i32 : i32, i32
  }
  func.func @transform_4(%arg0: i32) -> (i32, i32) {
    %c0_i32 = arith.constant 0 : i32
    %c0_i32_0 = arith.constant 0 : i32
    %c0_i32_1 = arith.constant 0 : i32
    return %c0_i32, %c0_i32_0 : i32, i32
  }
  func.func @transform_5(%arg0: i32) -> (i32, i32) {
    %c0_i32 = arith.constant 0 : i32
    %c0_i32_0 = arith.constant 0 : i32
    %c0_i32_1 = arith.constant 0 : i32
    return %c0_i32, %c0_i32_0 : i32, i32
  }
}

</mosaic_0001>

<llo_original>
// kernel: tpu_custom_call.1
$region0: #{tpu_custom_call.1}
  #allocation0 [shape = 'u32[]', space=smem, size = 0x4, offset = 0x4, fixed_abs, tag = 'smem constant byte address 0x4 - core index']
  #allocation1 [shape = 'u32[72,128]{1,0:T(1,128)}', space=vmem, size = 0x9000, scoped, tag = 'internal scratch']
  %s0 = inlined_call_operand.hbm [shape: f32[8,768], index: 0, kind: input, shape index: {}]
  %s1 = inlined_call_operand.hbm [shape: bf16[768,1024], index: 1, kind: input, shape index: {}]
  %s2 = inlined_call_operand.hbm [shape: bf16[1,1024], index: 2, kind: input, shape index: {}]
  %s3 = inlined_call_operand.hbm [shape: bf16[1024,768], index: 3, kind: input, shape index: {}]
  %s4 = inlined_call_operand.hbm [shape: bf16[1,768], index: 4, kind: input, shape index: {}]
  %s5 = inlined_call_operand.hbm [shape: f32[8,768], index: 5, kind: output, shape index: {}]
  %s6 = sld [smem:[#allocation0]]
  $region50: #{tpu_custom_call.1} parent=0
    _
  %s8 = ssub.s32 1, %s6
  %s9 = scalar_select 0, %s8, %s6
  $region1: #{tpu_custom_call.1} parent=0
    #allocation2 [shape = 'u8[24576]{0}', space=vmem, size = 0x6000, scoped, tag = 'input window, operand 0, single buffered']
    #allocation3 [shape = 's32[1]{0}', space=sflag, size = 0x4, scoped, tag = 'scoped memory for tpu_custom_call.1']
    #allocation4 [shape = 's32[1]{0}', space=sflag, size = 0x4, scoped, tag = 'scoped memory for tpu_custom_call.1']
    #allocation5 [shape = 'u8[1572864]{0}', space=vmem, size = 0x180000, scoped, tag = 'input window, operand 1, single buffered']
    #allocation6 [shape = 's32[1]{0}', space=sflag, size = 0x4, scoped, tag = 'scoped memory for tpu_custom_call.1']
    #allocation7 [shape = 'u8[4096]{0}', space=vmem, size = 0x1000, scoped, tag = 'input window, operand 2, single buffered']
    #allocation8 [shape = 'u8[1572864]{0}', space=vmem, size = 0x180000, scoped, tag = 'input window, operand 3, single buffered']
    #allocation9 [shape = 's32[1]{0}', space=sflag, size = 0x4, scoped, tag = 'scoped memory for tpu_custom_call.1']
    #allocation10 [shape = 'u8[3072]{0}', space=vmem, size = 0xc00, scoped, tag = 'input window, operand 4, single buffered']
    #allocation11 [shape = 'u8[24576]{0}', space=vmem, size = 0x6000, scoped, tag = 'output window, operand 0, single buffered']
    %10 = vsyncpa [#allocation3], 0
    %11 = vsyncpa [#allocation6], 0
    %12 = vsyncpa [#allocation9], 0
    %13 = vsyncpa [#allocation4], 0
    // Predicated region
    $region2: #{tpu_custom_call.1} parent=1 // pred_check
      _
    $region3: #{tpu_custom_call.1} parent=1 // pred_check_branch
      %15 = sbr.rel (0) target = $region5
    $region4: #{tpu_custom_call.1} parent=1 // pred_region
      %17 = vsyncadd [#allocation3], 0
      %s19 = sshll.u32 %s0, 4
      %s20 = int_to_ptr.hbm [resolvable:$true] %s19
      %s21 = sshll.u32 [#allocation2], 4
      %s22 = int_to_ptr.vmem [resolvable:$true] %s21
      %24 = dma.hbm_to_vmem [thread:$0]  %s20, 768, %s22, [#allocation3]
    $region5: #{tpu_custom_call.1} parent=1 // pred_fallthru
      _
    // Predicated region
    $region6: #{tpu_custom_call.1} parent=1 // pred_check
      _
    $region7: #{tpu_custom_call.1} parent=1 // pred_check_branch
      %26 = sbr.rel (0) target = $region9
    $region8: #{tpu_custom_call.1} parent=1 // pred_region
      %28 = vsyncadd [#allocation6], 0
      %s29 = sshll.u32 %s1, 4
      %s30 = int_to_ptr.hbm [resolvable:$true] %s29
      %s31 = sshll.u32 [#allocation5], 4
      %s32 = int_to_ptr.vmem [resolvable:$true] %s31
      %37 = dma.hbm_to_vmem [thread:$0]  %s30, 49152, %s32, [#allocation6], 512, 512, 32
    $region9: #{tpu_custom_call.1} parent=1 // pred_fallthru
      _
    // Predicated region
    $region10: #{tpu_custom_call.1} parent=1 // pred_check
      _
    $region11: #{tpu_custom_call.1} parent=1 // pred_check_branch
      %39 = sbr.rel (0) target = $region13
    $region12: #{tpu_custom_call.1} parent=1 // pred_region
      %41 = vsyncadd [#allocation6], 0
      %s43 = sshll.u32 %s2, 4
      %s44 = int_to_ptr.hbm [resolvable:$true] %s43
      %s45 = sshll.u32 [#allocation7], 4
      %s46 = int_to_ptr.vmem [resolvable:$true] %s45
      %48 = dma.hbm_to_vmem [thread:$0]  %s44, 128, %s46, [#allocation6]
    $region13: #{tpu_custom_call.1} parent=1 // pred_fallthru
      _
    // Predicated region
    $region14: #{tpu_custom_call.1} parent=1 // pred_check
      _
    $region15: #{tpu_custom_call.1} parent=1 // pred_check_branch
      %50 = sbr.rel (0) target = $region17
    $region16: #{tpu_custom_call.1} parent=1 // pred_region
      %52 = vsyncadd [#allocation9], 0
      %s53 = sshll.u32 %s3, 4
      %s54 = int_to_ptr.hbm [resolvable:$true] %s53
      %s55 = sshll.u32 [#allocation8], 4
      %s56 = int_to_ptr.vmem [resolvable:$true] %s55
      %61 = dma.hbm_to_vmem [thread:$0]  %s54, 49152, %s56, [#allocation9], 384, 384, 24
    $region17: #{tpu_custom_call.1} parent=1 // pred_fallthru
      _
    // Predicated region
    $region18: #{tpu_custom_call.1} parent=1 // pred_check
      _
    $region19: #{tpu_custom_call.1} parent=1 // pred_check_branch
      %63 = sbr.rel (0) target = $region21
    $region20: #{tpu_custom_call.1} parent=1 // pred_region
      %65 = vsyncadd [#allocation9], 0
      %s67 = sshll.u32 %s4, 4
      %s68 = int_to_ptr.hbm [resolvable:$true] %s67
      %s69 = sshll.u32 [#allocation10], 4
      %s70 = int_to_ptr.vmem [resolvable:$true] %s69
      %72 = dma.hbm_to_vmem [thread:$0]  %s68, 96, %s70, [#allocation9]
    $region21: #{tpu_custom_call.1} parent=1 // pred_fallthru
      _
    // Predicated region
    $region22: #{tpu_custom_call.1} parent=1 // pred_check
      _
    $region23: #{tpu_custom_call.1} parent=1 // pred_check_branch
      %74 = sbr.rel (0) target = $region25
    $region24: #{tpu_custom_call.1} parent=1 // pred_region
      %76 = dma.done [#allocation3], 768
    $region25: #{tpu_custom_call.1} parent=1 // pred_fallthru
      _
    // Predicated region
    $region26: #{tpu_custom_call.1} parent=1 // pred_check
      _
    $region27: #{tpu_custom_call.1} parent=1 // pred_check_branch
      %78 = sbr.rel (0) target = $region29
    $region28: #{tpu_custom_call.1} parent=1 // pred_region
      %80 = dma.done [#allocation6], 49152
    $region29: #{tpu_custom_call.1} parent=1 // pred_fallthru
      _
    // Predicated region
    $region30: #{tpu_custom_call.1} parent=1 // pred_check
      _
    $region31: #{tpu_custom_call.1} parent=1 // pred_check_branch
      %82 = sbr.rel (0) target = $region33
    $region32: #{tpu_custom_call.1} parent=1 // pred_region
      %84 = dma.done [#allocation6], 128
    $region33: #{tpu_custom_call.1} parent=1 // pred_fallthru
      _
    // Predicated region
    $region34: #{tpu_custom_call.1} parent=1 // pred_check
      _
    $region35: #{tpu_custom_call.1} parent=1 // pred_check_branch
      %86 = sbr.rel (0) target = $region37
    $region36: #{tpu_custom_call.1} parent=1 // pred_region
      %88 = dma.done [#allocation9], 49152
    $region37: #{tpu_custom_call.1} parent=1 // pred_fallthru
      _
    // Predicated region
    $region38: #{tpu_custom_call.1} parent=1 // pred_check
      _
    $region39: #{tpu_custom_call.1} parent=1 // pred_check_branch
      %90 = sbr.rel (0) target = $region41
    $region40: #{tpu_custom_call.1} parent=1 // pred_region
      %92 = dma.done [#allocation9], 96
    $region41: #{tpu_custom_call.1} parent=1 // pred_fallthru
      _
    %v93 = vld [vmem:[#allocation2] sm:$0xff]
    %v94 = vld [vmem:[#allocation2 + $0x8] sm:$0xff]
    %v95 = vld [vmem:[#allocation2 + $0x10] sm:$0xff]
    %v96 = vld [vmem:[#allocation2 + $0x18] sm:$0xff]
    %v97 = vld [vmem:[#allocation2 + $0x20] sm:$0xff]
    %v98 = vld [vmem:[#allocation2 + $0x28] sm:$0xff]
    %v99 = vpack.c.bf16 %v93, %v93
    %v100 = vpack.c.bf16 %v94, %v94
    %v101 = vpack.c.bf16 %v95, %v95
    %v102 = vpack.c.bf16 %v96, %v96
    %v103 = vpack.c.bf16 %v97, %v97
    %v104 = vpack.c.bf16 %v98, %v98
    %v105 = vld [vmem:[#allocation5] sm:$0xff]
    %v106 = vld [vmem:[#allocation5 + $0x8] sm:$0xff]
    %v107 = vld [vmem:[#allocation5 + $0x10] sm:$0xff]
    %v108 = vld [vmem:[#allocation5 + $0x18] sm:$0xff]
    %v109 = vld [vmem:[#allocation5 + $0x20] sm:$0xff]
    %v110 = vld [vmem:[#allocation5 + $0x28] sm:$0xff]
    %v111 = vld [vmem:[#allocation5 + $0x30] sm:$0xff]
    %v112 = vld [vmem:[#allocation5 + $0x38] sm:$0xff]
    %v113 = vld [vmem:[#allocation5 + $0x40] sm:$0xff]
    %v114 = vld [vmem:[#allocation5 + $0x48] sm:$0xff]
    %v115 = vld [vmem:[#allocation5 + $0x50] sm:$0xff]
    %v116 = vld [vmem:[#allocation5 + $0x58] sm:$0xff]
    %v117 = vld [vmem:[#allocation5 + $0x60] sm:$0xff]
    %v118 = vld [vmem:[#allocation5 + $0x68] sm:$0xff]
    %v119 = vld [vmem:[#allocation5 + $0x70] sm:$0xff]
    %v120 = vld [vmem:[#allocation5 + $0x78] sm:$0xff]
    %v121 = vld [vmem:[#allocation5 + $0x80] sm:$0xff]
    %v122 = vld [vmem:[#allocation5 + $0x88] sm:$0xff]
    %v123 = vld [vmem:[#allocation5 + $0x90] sm:$0xff]
    %v124 = vld [vmem:[#allocation5 + $0x98] sm:$0xff]
    %v125 = vld [vmem:[#allocation5 + $0xa0] sm:$0xff]
    %v126 = vld [vmem:[#allocation5 + $0xa8] sm:$0xff]
    %v127 = vld [vmem:[#allocation5 + $0xb0] sm:$0xff]
    %v128 = vld [vmem:[#allocation5 + $0xb8] sm:$0xff]
    %v129 = vld [vmem:[#allocation5 + $0xc0] sm:$0xff]
    %v130 = vld [vmem:[#allocation5 + $0xc8] sm:$0xff]
    %v131 = vld [vmem:[#allocation5 + $0xd0] sm:$0xff]
    %v132 = vld [vmem:[#allocation5 + $0xd8] sm:$0xff]
    %v133 = vld [vmem:[#allocation5 + $0xe0] sm:$0xff]
    %v134 = vld [vmem:[#allocation5 + $0xe8] sm:$0xff]
    %v135 = vld [vmem:[#allocation5 + $0xf0] sm:$0xff]
    %v136 = vld [vmem:[#allocation5 + $0xf8] sm:$0xff]
    %v137 = vld [vmem:[#allocation5 + $0x100] sm:$0xff]
    %v138 = vld [vmem:[#allocation5 + $0x108] sm:$0xff]
    %v139 = vld [vmem:[#allocation5 + $0x110] sm:$0xff]
    %v140 = vld [vmem:[#allocation5 + $0x118] sm:$0xff]
    %v141 = vld [vmem:[#allocation5 + $0x120] sm:$0xff]
    %v142 = vld [vmem:[#allocation5 + $0x128] sm:$0xff]
    %v143 = vld [vmem:[#allocation5 + $0x130] sm:$0xff]
    %v144 = vld [vmem:[#allocation5 + $0x138] sm:$0xff]
    %v145 = vld [vmem:[#allocation5 + $0x140] sm:$0xff]
    %v146 = vld [vmem:[#allocation5 + $0x148] sm:$0xff]
    %v147 = vld [vmem:[#allocation5 + $0x150] sm:$0xff]
    %v148 = vld [vmem:[#allocation5 + $0x158] sm:$0xff]
    %v149 = vld [vmem:[#allocation5 + $0x160] sm:$0xff]
    %v150 = vld [vmem:[#allocation5 + $0x168] sm:$0xff]
    %v151 = vld [vmem:[#allocation5 + $0x170] sm:$0xff]
    %v152 = vld [vmem:[#allocation5 + $0x178] sm:$0xff]
    %v153 = vld [vmem:[#allocation5 + $0x180] sm:$0xff]
    %v154 = vld [vmem:[#allocation5 + $0x188] sm:$0xff]
    %v155 = vld [vmem:[#allocation5 + $0x190] sm:$0xff]
    %v156 = vld [vmem:[#allocation5 + $0x198] sm:$0xff]
    %v157 = vld [vmem:[#allocation5 + $0x1a0] sm:$0xff]
    %v158 = vld [vmem:[#allocation5 + $0x1a8] sm:$0xff]
    %v159 = vld [vmem:[#allocation5 + $0x1b0] sm:$0xff]
    %v160 = vld [vmem:[#allocation5 + $0x1b8] sm:$0xff]
    %v161 = vld [vmem:[#allocation5 + $0x1c0] sm:$0xff]
    %v162 = vld [vmem:[#allocation5 + $0x1c8] sm:$0xff]
    %v163 = vld [vmem:[#allocation5 + $0x1d0] sm:$0xff]
    %v164 = vld [vmem:[#allocation5 + $0x1d8] sm:$0xff]
    %v165 = vld [vmem:[#allocation5 + $0x1e0] sm:$0xff]
    %v166 = vld [vmem:[#allocation5 + $0x1e8] sm:$0xff]
    %v167 = vld [vmem:[#allocation5 + $0x1f0] sm:$0xff]
    %v168 = vld [vmem:[#allocation5 + $0x1f8] sm:$0xff]
    %v169 = vld [vmem:[#allocation5 + $0x200] sm:$0xff]
    %v170 = vld [vmem:[#allocation5 + $0x208] sm:$0xff]
    %v171 = vld [vmem:[#allocation5 + $0x210] sm:$0xff]
    %v172 = vld [vmem:[#allocation5 + $0x218] sm:$0xff]
    %v173 = vld [vmem:[#allocation5 + $0x220] sm:$0xff]
    %v174 = vld [vmem:[#allocation5 + $0x228] sm:$0xff]
    %v175 = vld [vmem:[#allocation5 + $0x230] sm:$0xff]
    %v176 = vld [vmem:[#allocation5 + $0x238] sm:$0xff]
    %v177 = vld [vmem:[#allocation5 + $0x240] sm:$0xff]
    %v178 = vld [vmem:[#allocation5 + $0x248] sm:$0xff]
    %v179 = vld [vmem:[#allocation5 + $0x250] sm:$0xff]
    %v180 = vld [vmem:[#allocation5 + $0x258] sm:$0xff]
    %v181 = vld [vmem:[#allocation5 + $0x260] sm:$0xff]
    %v182 = vld [vmem:[#allocation5 + $0x268] sm:$0xff]
    %v183 = vld [vmem:[#allocation5 + $0x270] sm:$0xff]
    %v184 = vld [vmem:[#allocation5 + $0x278] sm:$0xff]
    %v185 = vld [vmem:[#allocation5 + $0x280] sm:$0xff]
    %v186 = vld [vmem:[#allocation5 + $0x288] sm:$0xff]
    %v187 = vld [vmem:[#allocation5 + $0x290] sm:$0xff]
    %v188 = vld [vmem:[#allocation5 + $0x298] sm:$0xff]
    %v189 = vld [vmem:[#allocation5 + $0x2a0] sm:$0xff]
    %v190 = vld [vmem:[#allocation5 + $0x2a8] sm:$0xff]
    %v191 = vld [vmem:[#allocation5 + $0x2b0] sm:$0xff]
    %v192 = vld [vmem:[#allocation5 + $0x2b8] sm:$0xff]
    %v193 = vld [vmem:[#allocation5 + $0x2c0] sm:$0xff]
    %v194 = vld [vmem:[#allocation5 + $0x2c8] sm:$0xff]
    %v195 = vld [vmem:[#allocation5 + $0x2d0] sm:$0xff]
    %v196 = vld [vmem:[#allocation5 + $0x2d8] sm:$0xff]
    %v197 = vld [vmem:[#allocation5 + $0x2e0] sm:$0xff]
    %v198 = vld [vmem:[#allocation5 + $0x2e8] sm:$0xff]
    %v199 = vld [vmem:[#allocation5 + $0x2f0] sm:$0xff]
    %v200 = vld [vmem:[#allocation5 + $0x2f8] sm:$0xff]
    %v201 = vld [vmem:[#allocation5 + $0x300] sm:$0xff]
    %v202 = vld [vmem:[#allocation5 + $0x308] sm:$0xff]
    %v203 = vld [vmem:[#allocation5 + $0x310] sm:$0xff]
    %v204 = vld [vmem:[#allocation5 + $0x318] sm:$0xff]
    %v205 = vld [vmem:[#allocation5 + $0x320] sm:$0xff]
    %v206 = vld [vmem:[#allocation5 + $0x328] sm:$0xff]
    %v207 = vld [vmem:[#allocation5 + $0x330] sm:$0xff]
    %v208 = vld [vmem:[#allocation5 + $0x338] sm:$0xff]
    %v209 = vld [vmem:[#allocation5 + $0x340] sm:$0xff]
    %v210 = vld [vmem:[#allocation5 + $0x348] sm:$0xff]
    %v211 = vld [vmem:[#allocation5 + $0x350] sm:$0xff]
    %v212 = vld [vmem:[#allocation5 + $0x358] sm:$0xff]
    %v213 = vld [vmem:[#allocation5 + $0x360] sm:$0xff]
    %v214 = vld [vmem:[#allocation5 + $0x368] sm:$0xff]
    %v215 = vld [vmem:[#allocation5 + $0x370] sm:$0xff]
    %v216 = vld [vmem:[#allocation5 + $0x378] sm:$0xff]
    %v217 = vld [vmem:[#allocation5 + $0x380] sm:$0xff]
    %v218 = vld [vmem:[#allocation5 + $0x388] sm:$0xff]
    %v219 = vld [vmem:[#allocation5 + $0x390] sm:$0xff]
    %v220 = vld [vmem:[#allocation5 + $0x398] sm:$0xff]
    %v221 = vld [vmem:[#allocation5 + $0x3a0] sm:$0xff]
    %v222 = vld [vmem:[#allocation5 + $0x3a8] sm:$0xff]
    %v223 = vld [vmem:[#allocation5 + $0x3b0] sm:$0xff]
    %v224 = vld [vmem:[#allocation5 + $0x3b8] sm:$0xff]
    %v225 = vld [vmem:[#allocation5 + $0x3c0] sm:$0xff]
    %v226 = vld [vmem:[#allocation5 + $0x3c8] sm:$0xff]
    %v227 = vld [vmem:[#allocation5 + $0x3d0] sm:$0xff]
    %v228 = vld [vmem:[#allocation5 + $0x3d8] sm:$0xff]
    %v229 = vld [vmem:[#allocation5 + $0x3e0] sm:$0xff]
    %v230 = vld [vmem:[#allocation5 + $0x3e8] sm:$0xff]
    %v231 = vld [vmem:[#allocation5 + $0x3f0] sm:$0xff]
    %v232 = vld [vmem:[#allocation5 + $0x3f8] sm:$0xff]
    %v233 = vld [vmem:[#allocation5 + $0x400] sm:$0xff]
    %v234 = vld [vmem:[#allocation5 + $0x408] sm:$0xff]
    %v235 = vld [vmem:[#allocation5 + $0x410] sm:$0xff]
    %v236 = vld [vmem:[#allocation5 + $0x418] sm:$0xff]
    %v237 = vld [vmem:[#allocation5 + $0x420] sm:$0xff]
    %v238 = vld [vmem:[#allocation5 + $0x428] sm:$0xff]
    %v239 = vld [vmem:[#allocation5 + $0x430] sm:$0xff]
    %v240 = vld [vmem:[#allocation5 + $0x438] sm:$0xff]
    %v241 = vld [vmem:[#allocation5 + $0x440] sm:$0xff]
    %v242 = vld [vmem:[#allocation5 + $0x448] sm:$0xff]
    %v243 = vld [vmem:[#allocation5 + $0x450] sm:$0xff]
    %v244 = vld [vmem:[#allocation5 + $0x458] sm:$0xff]
    %v245 = vld [vmem:[#allocation5 + $0x460] sm:$0xff]
    %v246 = vld [vmem:[#allocation5 + $0x468] sm:$0xff]
    %v247 = vld [vmem:[#allocation5 + $0x470] sm:$0xff]
    %v248 = vld [vmem:[#allocation5 + $0x478] sm:$0xff]
    %v249 = vld [vmem:[#allocation5 + $0x480] sm:$0xff]
    %v250 = vld [vmem:[#allocation5 + $0x488] sm:$0xff]
    %v251 = vld [vmem:[#allocation5 + $0x490] sm:$0xff]
    %v252 = vld [vmem:[#allocation5 + $0x498] sm:$0xff]
    %v253 = vld [vmem:[#allocation5 + $0x4a0] sm:$0xff]
    %v254 = vld [vmem:[#allocation5 + $0x4a8] sm:$0xff]
    %v255 = vld [vmem:[#allocation5 + $0x4b0] sm:$0xff]
    %v256 = vld [vmem:[#allocation5 + $0x4b8] sm:$0xff]
    %v257 = vld [vmem:[#allocation5 + $0x4c0] sm:$0xff]
    %v258 = vld [vmem:[#allocation5 + $0x4c8] sm:$0xff]
    %v259 = vld [vmem:[#allocation5 + $0x4d0] sm:$0xff]
    %v260 = vld [vmem:[#allocation5 + $0x4d8] sm:$0xff]
    %v261 = vld [vmem:[#allocation5 + $0x4e0] sm:$0xff]
    %v262 = vld [vmem:[#allocation5 + $0x4e8] sm:$0xff]
    %v263 = vld [vmem:[#allocation5 + $0x4f0] sm:$0xff]
    %v264 = vld [vmem:[#allocation5 + $0x4f8] sm:$0xff]
    %v265 = vld [vmem:[#allocation5 + $0x500] sm:$0xff]
    %v266 = vld [vmem:[#allocation5 + $0x508] sm:$0xff]
    %v267 = vld [vmem:[#allocation5 + $0x510] sm:$0xff]
    %v268 = vld [vmem:[#allocation5 + $0x518] sm:$0xff]
    %v269 = vld [vmem:[#allocation5 + $0x520] sm:$0xff]
    %v270 = vld [vmem:[#allocation5 + $0x528] sm:$0xff]
    %v271 = vld [vmem:[#allocation5 + $0x530] sm:$0xff]
    %v272 = vld [vmem:[#allocation5 + $0x538] sm:$0xff]
    %v273 = vld [vmem:[#allocation5 + $0x540] sm:$0xff]
    %v274 = vld [vmem:[#allocation5 + $0x548] sm:$0xff]
    %v275 = vld [vmem:[#allocation5 + $0x550] sm:$0xff]
    %v276 = vld [vmem:[#allocation5 + $0x558] sm:$0xff]
    %v277 = vld [vmem:[#allocation5 + $0x560] sm:$0xff]
    %v278 = vld [vmem:[#allocation5 + $0x568] sm:$0xff]
    %v279 = vld [vmem:[#allocation5 + $0x570] sm:$0xff]
    %v280 = vld [vmem:[#allocation5 + $0x578] sm:$0xff]
    %v281 = vld [vmem:[#allocation5 + $0x580] sm:$0xff]
    %v282 = vld [vmem:[#allocation5 + $0x588] sm:$0xff]
    %v283 = vld [vmem:[#allocation5 + $0x590] sm:$0xff]
    %v284 = vld [vmem:[#allocation5 + $0x598] sm:$0xff]
    %v285 = vld [vmem:[#allocation5 + $0x5a0] sm:$0xff]
    %v286 = vld [vmem:[#allocation5 + $0x5a8] sm:$0xff]
    %v287 = vld [vmem:[#allocation5 + $0x5b0] sm:$0xff]
    %v288 = vld [vmem:[#allocation5 + $0x5b8] sm:$0xff]
    %v289 = vld [vmem:[#allocation5 + $0x5c0] sm:$0xff]
    %v290 = vld [vmem:[#allocation5 + $0x5c8] sm:$0xff]
    %v291 = vld [vmem:[#allocation5 + $0x5d0] sm:$0xff]
    %v292 = vld [vmem:[#allocation5 + $0x5d8] sm:$0xff]
    %v293 = vld [vmem:[#allocation5 + $0x5e0] sm:$0xff]
    %v294 = vld [vmem:[#allocation5 + $0x5e8] sm:$0xff]
    %v295 = vld [vmem:[#allocation5 + $0x5f0] sm:$0xff]
    %v296 = vld [vmem:[#allocation5 + $0x5f8] sm:$0xff]
    %v297 = vld [vmem:[#allocation5 + $0x600] sm:$0xff]
    %v298 = vld [vmem:[#allocation5 + $0x608] sm:$0xff]
    %v299 = vld [vmem:[#allocation5 + $0x610] sm:$0xff]
    %v300 = vld [vmem:[#allocation5 + $0x618] sm:$0xff]
    %v301 = vld [vmem:[#allocation5 + $0x620] sm:$0xff]
    %v302 = vld [vmem:[#allocation5 + $0x628] sm:$0xff]
    %v303 = vld [vmem:[#allocation5 + $0x630] sm:$0xff]
    %v304 = vld [vmem:[#allocation5 + $0x638] sm:$0xff]
    %v305 = vld [vmem:[#allocation5 + $0x640] sm:$0xff]
    %v306 = vld [vmem:[#allocation5 + $0x648] sm:$0xff]
    %v307 = vld [vmem:[#allocation5 + $0x650] sm:$0xff]
    %v308 = vld [vmem:[#allocation5 + $0x658] sm:$0xff]
    %v309 = vld [vmem:[#allocation5 + $0x660] sm:$0xff]
    %v310 = vld [vmem:[#allocation5 + $0x668] sm:$0xff]
    %v311 = vld [vmem:[#allocation5 + $0x670] sm:$0xff]
    %v312 = vld [vmem:[#allocation5 + $0x678] sm:$0xff]
    %v313 = vld [vmem:[#allocation5 + $0x680] sm:$0xff]
    %v314 = vld [vmem:[#allocation5 + $0x688] sm:$0xff]
    %v315 = vld [vmem:[#allocation5 + $0x690] sm:$0xff]
    %v316 = vld [vmem:[#allocation5 + $0x698] sm:$0xff]
    %v317 = vld [vmem:[#allocation5 + $0x6a0] sm:$0xff]
    %v318 = vld [vmem:[#allocation5 + $0x6a8] sm:$0xff]
    %v319 = vld [vmem:[#allocation5 + $0x6b0] sm:$0xff]
    %v320 = vld [vmem:[#allocation5 + $0x6b8] sm:$0xff]
    %v321 = vld [vmem:[#allocation5 + $0x6c0] sm:$0xff]
    %v322 = vld [vmem:[#allocation5 + $0x6c8] sm:$0xff]
    %v323 = vld [vmem:[#allocation5 + $0x6d0] sm:$0xff]
    %v324 = vld [vmem:[#allocation5 + $0x6d8] sm:$0xff]
    %v325 = vld [vmem:[#allocation5 + $0x6e0] sm:$0xff]
    %v326 = vld [vmem:[#allocation5 + $0x6e8] sm:$0xff]
    %v327 = vld [vmem:[#allocation5 + $0x6f0] sm:$0xff]
    %v328 = vld [vmem:[#allocation5 + $0x6f8] sm:$0xff]
    %v329 = vld [vmem:[#allocation5 + $0x700] sm:$0xff]
    %v330 = vld [vmem:[#allocation5 + $0x708] sm:$0xff]
    %v331 = vld [vmem:[#allocation5 + $0x710] sm:$0xff]
    %v332 = vld [vmem:[#allocation5 + $0x718] sm:$0xff]
    %v333 = vld [vmem:[#allocation5 + $0x720] sm:$0xff]
    %v334 = vld [vmem:[#allocation5 + $0x728] sm:$0xff]
    %v335 = vld [vmem:[#allocation5 + $0x730] sm:$0xff]
    %v336 = vld [vmem:[#allocation5 + $0x738] sm:$0xff]
    %v337 = vld [vmem:[#allocation5 + $0x740] sm:$0xff]
    %v338 = vld [vmem:[#allocation5 + $0x748] sm:$0xff]
    %v339 = vld [vmem:[#allocation5 + $0x750] sm:$0xff]
    %v340 = vld [vmem:[#allocation5 + $0x758] sm:$0xff]
    %v341 = vld [vmem:[#allocation5 + $0x760] sm:$0xff]
    %v342 = vld [vmem:[#allocation5 + $0x768] sm:$0xff]
    %v343 = vld [vmem:[#allocation5 + $0x770] sm:$0xff]
    %v344 = vld [vmem:[#allocation5 + $0x778] sm:$0xff]
    %v345 = vld [vmem:[#allocation5 + $0x780] sm:$0xff]
    %v346 = vld [vmem:[#allocation5 + $0x788] sm:$0xff]
    %v347 = vld [vmem:[#allocation5 + $0x790] sm:$0xff]
    %v348 = vld [vmem:[#allocation5 + $0x798] sm:$0xff]
    %v349 = vld [vmem:[#allocation5 + $0x7a0] sm:$0xff]
    %v350 = vld [vmem:[#allocation5 + $0x7a8] sm:$0xff]
    %v351 = vld [vmem:[#allocation5 + $0x7b0] sm:$0xff]
    %v352 = vld [vmem:[#allocation5 + $0x7b8] sm:$0xff]
    %v353 = vld [vmem:[#allocation5 + $0x7c0] sm:$0xff]
    %v354 = vld [vmem:[#allocation5 + $0x7c8] sm:$0xff]
    %v355 = vld [vmem:[#allocation5 + $0x7d0] sm:$0xff]
    %v356 = vld [vmem:[#allocation5 + $0x7d8] sm:$0xff]
    %v357 = vld [vmem:[#allocation5 + $0x7e0] sm:$0xff]
    %v358 = vld [vmem:[#allocation5 + $0x7e8] sm:$0xff]
    %v359 = vld [vmem:[#allocation5 + $0x7f0] sm:$0xff]
    %v360 = vld [vmem:[#allocation5 + $0x7f8] sm:$0xff]
    %v361 = vld [vmem:[#allocation5 + $0x800] sm:$0xff]
    %v362 = vld [vmem:[#allocation5 + $0x808] sm:$0xff]
    %v363 = vld [vmem:[#allocation5 + $0x810] sm:$0xff]
    %v364 = vld [vmem:[#allocation5 + $0x818] sm:$0xff]
    %v365 = vld [vmem:[#allocation5 + $0x820] sm:$0xff]
    %v366 = vld [vmem:[#allocation5 + $0x828] sm:$0xff]
    %v367 = vld [vmem:[#allocation5 + $0x830] sm:$0xff]
    %v368 = vld [vmem:[#allocation5 + $0x838] sm:$0xff]
    %v369 = vld [vmem:[#allocation5 + $0x840] sm:$0xff]
    %v370 = vld [vmem:[#allocation5 + $0x848] sm:$0xff]
    %v371 = vld [vmem:[#allocation5 + $0x850] sm:$0xff]
    %v372 = vld [vmem:[#allocation5 + $0x858] sm:$0xff]
    %v373 = vld [vmem:[#allocation5 + $0x860] sm:$0xff]
    %v374 = vld [vmem:[#allocation5 + $0x868] sm:$0xff]
    %v375 = vld [vmem:[#allocation5 + $0x870] sm:$0xff]
    %v376 = vld [vmem:[#allocation5 + $0x878] sm:$0xff]
    %v377 = vld [vmem:[#allocation5 + $0x880] sm:$0xff]
    %v378 = vld [vmem:[#allocation5 + $0x888] sm:$0xff]
    %v379 = vld [vmem:[#allocation5 + $0x890] sm:$0xff]
    %v380 = vld [vmem:[#allocation5 + $0x898] sm:$0xff]
    %v381 = vld [vmem:[#allocation5 + $0x8a0] sm:$0xff]
    %v382 = vld [vmem:[#allocation5 + $0x8a8] sm:$0xff]
    %v383 = vld [vmem:[#allocation5 + $0x8b0] sm:$0xff]
    %v384 = vld [vmem:[#allocation5 + $0x8b8] sm:$0xff]
    %v385 = vld [vmem:[#allocation5 + $0x8c0] sm:$0xff]
    %v386 = vld [vmem:[#allocation5 + $0x8c8] sm:$0xff]
    %v387 = vld [vmem:[#allocation5 + $0x8d0] sm:$0xff]
    %v388 = vld [vmem:[#allocation5 + $0x8d8] sm:$0xff]
    %v389 = vld [vmem:[#allocation5 + $0x8e0] sm:$0xff]
    %v390 = vld [vmem:[#allocation5 + $0x8e8] sm:$0xff]
    %v391 = vld [vmem:[#allocation5 + $0x8f0] sm:$0xff]
    %v392 = vld [vmem:[#allocation5 + $0x8f8] sm:$0xff]
    %v393 = vld [vmem:[#allocation5 + $0x900] sm:$0xff]
    %v394 = vld [vmem:[#allocation5 + $0x908] sm:$0xff]
    %v395 = vld [vmem:[#allocation5 + $0x910] sm:$0xff]
    %v396 = vld [vmem:[#allocation5 + $0x918] sm:$0xff]
    %v397 = vld [vmem:[#allocation5 + $0x920] sm:$0xff]
    %v398 = vld [vmem:[#allocation5 + $0x928] sm:$0xff]
    %v399 = vld [vmem:[#allocation5 + $0x930] sm:$0xff]
    %v400 = vld [vmem:[#allocation5 + $0x938] sm:$0xff]
    %v401 = vld [vmem:[#allocation5 + $0x940] sm:$0xff]
    %v402 = vld [vmem:[#allocation5 + $0x948] sm:$0xff]
    %v403 = vld [vmem:[#allocation5 + $0x950] sm:$0xff]
    %v404 = vld [vmem:[#allocation5 + $0x958] sm:$0xff]
    %v405 = vld [vmem:[#allocation5 + $0x960] sm:$0xff]
    %v406 = vld [vmem:[#allocation5 + $0x968] sm:$0xff]
    %v407 = vld [vmem:[#allocation5 + $0x970] sm:$0xff]
    %v408 = vld [vmem:[#allocation5 + $0x978] sm:$0xff]
    %v409 = vld [vmem:[#allocation5 + $0x980] sm:$0xff]
    %v410 = vld [vmem:[#allocation5 + $0x988] sm:$0xff]
    %v411 = vld [vmem:[#allocation5 + $0x990] sm:$0xff]
    %v412 = vld [vmem:[#allocation5 + $0x998] sm:$0xff]
    %v413 = vld [vmem:[#allocation5 + $0x9a0] sm:$0xff]
    %v414 = vld [vmem:[#allocation5 + $0x9a8] sm:$0xff]
    %v415 = vld [vmem:[#allocation5 + $0x9b0] sm:$0xff]
    %v416 = vld [vmem:[#allocation5 + $0x9b8] sm:$0xff]
    %v417 = vld [vmem:[#allocation5 + $0x9c0] sm:$0xff]
    %v418 = vld [vmem:[#allocation5 + $0x9c8] sm:$0xff]
    %v419 = vld [vmem:[#allocation5 + $0x9d0] sm:$0xff]
    %v420 = vld [vmem:[#allocation5 + $0x9d8] sm:$0xff]
    %v421 = vld [vmem:[#allocation5 + $0x9e0] sm:$0xff]
    %v422 = vld [vmem:[#allocation5 + $0x9e8] sm:$0xff]
    %v423 = vld [vmem:[#allocation5 + $0x9f0] sm:$0xff]
    %v424 = vld [vmem:[#allocation5 + $0x9f8] sm:$0xff]
    %v425 = vld [vmem:[#allocation5 + $0xa00] sm:$0xff]
    %v426 = vld [vmem:[#allocation5 + $0xa08] sm:$0xff]
    %v427 = vld [vmem:[#allocation5 + $0xa10] sm:$0xff]
    %v428 = vld [vmem:[#allocation5 + $0xa18] sm:$0xff]
    %v429 = vld [vmem:[#allocation5 + $0xa20] sm:$0xff]
    %v430 = vld [vmem:[#allocation5 + $0xa28] sm:$0xff]
    %v431 = vld [vmem:[#allocation5 + $0xa30] sm:$0xff]
    %v432 = vld [vmem:[#allocation5 + $0xa38] sm:$0xff]
    %v433 = vld [vmem:[#allocation5 + $0xa40] sm:$0xff]
    %v434 = vld [vmem:[#allocation5 + $0xa48] sm:$0xff]
    %v435 = vld [vmem:[#allocation5 + $0xa50] sm:$0xff]
    %v436 = vld [vmem:[#allocation5 + $0xa58] sm:$0xff]
    %v437 = vld [vmem:[#allocation5 + $0xa60] sm:$0xff]
    %v438 = vld [vmem:[#allocation5 + $0xa68] sm:$0xff]
    %v439 = vld [vmem:[#allocation5 + $0xa70] sm:$0xff]
    %v440 = vld [vmem:[#allocation5 + $0xa78] sm:$0xff]
    %v441 = vld [vmem:[#allocation5 + $0xa80] sm:$0xff]
    %v442 = vld [vmem:[#allocation5 + $0xa88] sm:$0xff]
    %v443 = vld [vmem:[#allocation5 + $0xa90] sm:$0xff]
    %v444 = vld [vmem:[#allocation5 + $0xa98] sm:$0xff]
    %v445 = vld [vmem:[#allocation5 + $0xaa0] sm:$0xff]
    %v446 = vld [vmem:[#allocation5 + $0xaa8] sm:$0xff]
    %v447 = vld [vmem:[#allocation5 + $0xab0] sm:$0xff]
    %v448 = vld [vmem:[#allocation5 + $0xab8] sm:$0xff]
    %v449 = vld [vmem:[#allocation5 + $0xac0] sm:$0xff]
    %v450 = vld [vmem:[#allocation5 + $0xac8] sm:$0xff]
    %v451 = vld [vmem:[#allocation5 + $0xad0] sm:$0xff]
    %v452 = vld [vmem:[#allocation5 + $0xad8] sm:$0xff]
    %v453 = vld [vmem:[#allocation5 + $0xae0] sm:$0xff]
    %v454 = vld [vmem:[#allocation5 + $0xae8] sm:$0xff]
    %v455 = vld [vmem:[#allocation5 + $0xaf0] sm:$0xff]
    %v456 = vld [vmem:[#allocation5 + $0xaf8] sm:$0xff]
    %v457 = vld [vmem:[#allocation5 + $0xb00] sm:$0xff]
    %v458 = vld [vmem:[#allocation5 + $0xb08] sm:$0xff]
    %v459 = vld [vmem:[#allocation5 + $0xb10] sm:$0xff]
    %v460 = vld [vmem:[#allocation5 + $0xb18] sm:$0xff]
    %v461 = vld [vmem:[#allocation5 + $0xb20] sm:$0xff]
    %v462 = vld [vmem:[#allocation5 + $0xb28] sm:$0xff]
    %v463 = vld [vmem:[#allocation5 + $0xb30] sm:$0xff]
    %v464 = vld [vmem:[#allocation5 + $0xb38] sm:$0xff]
    %v465 = vld [vmem:[#allocation5 + $0xb40] sm:$0xff]
    %v466 = vld [vmem:[#allocation5 + $0xb48] sm:$0xff]
    %v467 = vld [vmem:[#allocation5 + $0xb50] sm:$0xff]
    %v468 = vld [vmem:[#allocation5 + $0xb58] sm:$0xff]
    %v469 = vld [vmem:[#allocation5 + $0xb60] sm:$0xff]
    %v470 = vld [vmem:[#allocation5 + $0xb68] sm:$0xff]
    %v471 = vld [vmem:[#allocation5 + $0xb70] sm:$0xff]
    %v472 = vld [vmem:[#allocation5 + $0xb78] sm:$0xff]
    %v473 = vld [vmem:[#allocation5 + $0xb80] sm:$0xff]
    %v474 = vld [vmem:[#allocation5 + $0xb88] sm:$0xff]
    %v475 = vld [vmem:[#allocation5 + $0xb90] sm:$0xff]
    %v476 = vld [vmem:[#allocation5 + $0xb98] sm:$0xff]
    %v477 = vld [vmem:[#allocation5 + $0xba0] sm:$0xff]
    %v478 = vld [vmem:[#allocation5 + $0xba8] sm:$0xff]
    %v479 = vld [vmem:[#allocation5 + $0xbb0] sm:$0xff]
    %v480 = vld [vmem:[#allocation5 + $0xbb8] sm:$0xff]
    %v481 = vld [vmem:[#allocation5 + $0xbc0] sm:$0xff]
    %v482 = vld [vmem:[#allocation5 + $0xbc8] sm:$0xff]
    %v483 = vld [vmem:[#allocation5 + $0xbd0] sm:$0xff]
    %v484 = vld [vmem:[#allocation5 + $0xbd8] sm:$0xff]
    %v485 = vld [vmem:[#allocation5 + $0xbe0] sm:$0xff]
    %v486 = vld [vmem:[#allocation5 + $0xbe8] sm:$0xff]
    %v487 = vld [vmem:[#allocation5 + $0xbf0] sm:$0xff]
    %v488 = vld [vmem:[#allocation5 + $0xbf8] sm:$0xff]
    %v489 = vld [vmem:[#allocation7] sm:$0xff]
    %v490 = vunpack.c.l.bf16 %v489
    %v491 = vunpack.c.h.bf16 %v489
    %v494 = vperm.slane %v490, 0
    %v495 = vperm.slane %v490, 2
    %v496 = vperm.slane %v490, 4
    %v497 = vperm.slane %v490, 6
    %v498 = vperm.slane %v491, 0
    %v499 = vperm.slane %v491, 2
    %v500 = vperm.slane %v491, 4
    %v501 = vperm.slane %v491, 6
    %v510 = vperm.slane %v494, 0
    %v511 = vperm.slane %v495, 0
    %v512 = vperm.slane %v496, 0
    %v513 = vperm.slane %v497, 0
    %v514 = vperm.slane %v498, 0
    %v515 = vperm.slane %v499, 0
    %v516 = vperm.slane %v500, 0
    %v517 = vperm.slane %v501, 0
    %v902 = vunpack.c.l.b16 %v105
    %v903 = vunpack.c.h.b16 %v105
    %v904 = vunpack.c.l.b16 %v106
    %v905 = vunpack.c.h.b16 %v106
    %v906 = vunpack.c.l.b16 %v107
    %v907 = vunpack.c.h.b16 %v107
    %v908 = vunpack.c.l.b16 %v108
    %v909 = vunpack.c.h.b16 %v108
    %v910 = vunpack.c.l.b16 %v109
    %v911 = vunpack.c.h.b16 %v109
    %v912 = vunpack.c.l.b16 %v110
    %v913 = vunpack.c.h.b16 %v110
    %v914 = vunpack.c.l.b16 %v111
    %v915 = vunpack.c.h.b16 %v111
    %v916 = vunpack.c.l.b16 %v112
    %v917 = vunpack.c.h.b16 %v112
    %v918 = vunpack.c.l.b16 %v113
    %v919 = vunpack.c.h.b16 %v113
    %v920 = vunpack.c.l.b16 %v114
    %v921 = vunpack.c.h.b16 %v114
    %v922 = vunpack.c.l.b16 %v115
    %v923 = vunpack.c.h.b16 %v115
    %v924 = vunpack.c.l.b16 %v116
    %v925 = vunpack.c.h.b16 %v116
    %v926 = vunpack.c.l.b16 %v117
    %v927 = vunpack.c.h.b16 %v117
    %v928 = vunpack.c.l.b16 %v118
    %v929 = vunpack.c.h.b16 %v118
    %v930 = vunpack.c.l.b16 %v119
    %v931 = vunpack.c.h.b16 %v119
    %v932 = vunpack.c.l.b16 %v120
    %v933 = vunpack.c.h.b16 %v120
    %v934 = vunpack.c.l.b16 %v121
    %v935 = vunpack.c.h.b16 %v121
    %v936 = vunpack.c.l.b16 %v122
    %v937 = vunpack.c.h.b16 %v122
    %v938 = vunpack.c.l.b16 %v123
    %v939 = vunpack.c.h.b16 %v123
    %v940 = vunpack.c.l.b16 %v124
    %v941 = vunpack.c.h.b16 %v124
    %v942 = vunpack.c.l.b16 %v125
    %v943 = vunpack.c.h.b16 %v125
    %v944 = vunpack.c.l.b16 %v126
    %v945 = vunpack.c.h.b16 %v126
    %v946 = vunpack.c.l.b16 %v127
    %v947 = vunpack.c.h.b16 %v127
    %v948 = vunpack.c.l.b16 %v128
    %v949 = vunpack.c.h.b16 %v128
    %v950 = vunpack.c.l.b16 %v129
    %v951 = vunpack.c.h.b16 %v129
    %v952 = vunpack.c.l.b16 %v130
    %v953 = vunpack.c.h.b16 %v130
    %v954 = vunpack.c.l.b16 %v131
    %v955 = vunpack.c.h.b16 %v131
    %v956 = vunpack.c.l.b16 %v132
    %v957 = vunpack.c.h.b16 %v132
    %v958 = vunpack.c.l.b16 %v133
    %v959 = vunpack.c.h.b16 %v133
    %v960 = vunpack.c.l.b16 %v134
    %v961 = vunpack.c.h.b16 %v134
    %v962 = vunpack.c.l.b16 %v135
    %v963 = vunpack.c.h.b16 %v135
    %v964 = vunpack.c.l.b16 %v136
    %v965 = vunpack.c.h.b16 %v136
    %v966 = vunpack.c.l.b16 %v137
    %v967 = vunpack.c.h.b16 %v137
    %v968 = vunpack.c.l.b16 %v138
    %v969 = vunpack.c.h.b16 %v138
    %v970 = vunpack.c.l.b16 %v139
    %v971 = vunpack.c.h.b16 %v139
    %v972 = vunpack.c.l.b16 %v140
    %v973 = vunpack.c.h.b16 %v140
    %v974 = vunpack.c.l.b16 %v141
    %v975 = vunpack.c.h.b16 %v141
    %v976 = vunpack.c.l.b16 %v142
    %v977 = vunpack.c.h.b16 %v142
    %v978 = vunpack.c.l.b16 %v143
    %v979 = vunpack.c.h.b16 %v143
    %v980 = vunpack.c.l.b16 %v144
    %v981 = vunpack.c.h.b16 %v144
    %v982 = vunpack.c.l.b16 %v145
    %v983 = vunpack.c.h.b16 %v145
    %v984 = vunpack.c.l.b16 %v146
    %v985 = vunpack.c.h.b16 %v146
    %v986 = vunpack.c.l.b16 %v147
    %v987 = vunpack.c.h.b16 %v147
    %v988 = vunpack.c.l.b16 %v148
    %v989 = vunpack.c.h.b16 %v148
    %v990 = vunpack.c.l.b16 %v149
    %v991 = vunpack.c.h.b16 %v149
    %v992 = vunpack.c.l.b16 %v150
    %v993 = vunpack.c.h.b16 %v150
    %v994 = vunpack.c.l.b16 %v151
    %v995 = vunpack.c.h.b16 %v151
    %v996 = vunpack.c.l.b16 %v152
    %v997 = vunpack.c.h.b16 %v152
    %v998 = vunpack.c.l.b16 %v153
    %v999 = vunpack.c.h.b16 %v153
    %v1000 = vunpack.c.l.b16 %v154
    %v1001 = vunpack.c.h.b16 %v154
    %v1002 = vunpack.c.l.b16 %v155
    %v1003 = vunpack.c.h.b16 %v155
    %v1004 = vunpack.c.l.b16 %v156
    %v1005 = vunpack.c.h.b16 %v156
    %v1006 = vunpack.c.l.b16 %v157
    %v1007 = vunpack.c.h.b16 %v157
    %v1008 = vunpack.c.l.b16 %v158
    %v1009 = vunpack.c.h.b16 %v158
    %v1010 = vunpack.c.l.b16 %v159
    %v1011 = vunpack.c.h.b16 %v159
    %v1012 = vunpack.c.l.b16 %v160
    %v1013 = vunpack.c.h.b16 %v160
    %v1014 = vunpack.c.l.b16 %v161
    %v1015 = vunpack.c.h.b16 %v161
    %v1016 = vunpack.c.l.b16 %v162
    %v1017 = vunpack.c.h.b16 %v162
    %v1018 = vunpack.c.l.b16 %v163
    %v1019 = vunpack.c.h.b16 %v163
    %v1020 = vunpack.c.l.b16 %v164
    %v1021 = vunpack.c.h.b16 %v164
    %v1022 = vunpack.c.l.b16 %v165
    %v1023 = vunpack.c.h.b16 %v165
    %v1024 = vunpack.c.l.b16 %v166
    %v1025 = vunpack.c.h.b16 %v166
    %v1026 = vunpack.c.l.b16 %v167
    %v1027 = vunpack.c.h.b16 %v167
    %v1028 = vunpack.c.l.b16 %v168
    %v1029 = vunpack.c.h.b16 %v168
    %v1030 = vunpack.c.l.b16 %v169
    %v1031 = vunpack.c.h.b16 %v169
    %v1032 = vunpack.c.l.b16 %v170
    %v1033 = vunpack.c.h.b16 %v170
    %v1034 = vunpack.c.l.b16 %v171
    %v1035 = vunpack.c.h.b16 %v171
    %v1036 = vunpack.c.l.b16 %v172
    %v1037 = vunpack.c.h.b16 %v172
    %v1038 = vunpack.c.l.b16 %v173
    %v1039 = vunpack.c.h.b16 %v173
    %v1040 = vunpack.c.l.b16 %v174
    %v1041 = vunpack.c.h.b16 %v174
    %v1042 = vunpack.c.l.b16 %v175
    %v1043 = vunpack.c.h.b16 %v175
    %v1044 = vunpack.c.l.b16 %v176
    %v1045 = vunpack.c.h.b16 %v176
    %v1046 = vunpack.c.l.b16 %v177
    %v1047 = vunpack.c.h.b16 %v177
    %v1048 = vunpack.c.l.b16 %v178
    %v1049 = vunpack.c.h.b16 %v178
    %v1050 = vunpack.c.l.b16 %v179
    %v1051 = vunpack.c.h.b16 %v179
    %v1052 = vunpack.c.l.b16 %v180
    %v1053 = vunpack.c.h.b16 %v180
    %v1054 = vunpack.c.l.b16 %v181
    %v1055 = vunpack.c.h.b16 %v181
    %v1056 = vunpack.c.l.b16 %v182
    %v1057 = vunpack.c.h.b16 %v182
    %v1058 = vunpack.c.l.b16 %v183
    %v1059 = vunpack.c.h.b16 %v183
    %v1060 = vunpack.c.l.b16 %v184
    %v1061 = vunpack.c.h.b16 %v184
    %v1062 = vunpack.c.l.b16 %v185
    %v1063 = vunpack.c.h.b16 %v185
    %v1064 = vunpack.c.l.b16 %v186
    %v1065 = vunpack.c.h.b16 %v186
    %v1066 = vunpack.c.l.b16 %v187
    %v1067 = vunpack.c.h.b16 %v187
    %v1068 = vunpack.c.l.b16 %v188
    %v1069 = vunpack.c.h.b16 %v188
    %v1070 = vunpack.c.l.b16 %v189
    %v1071 = vunpack.c.h.b16 %v189
    %v1072 = vunpack.c.l.b16 %v190
    %v1073 = vunpack.c.h.b16 %v190
    %v1074 = vunpack.c.l.b16 %v191
    %v1075 = vunpack.c.h.b16 %v191
    %v1076 = vunpack.c.l.b16 %v192
    %v1077 = vunpack.c.h.b16 %v192
    %v1078 = vunpack.c.l.b16 %v193
    %v1079 = vunpack.c.h.b16 %v193
    %v1080 = vunpack.c.l.b16 %v194
    %v1081 = vunpack.c.h.b16 %v194
    %v1082 = vunpack.c.l.b16 %v195
    %v1083 = vunpack.c.h.b16 %v195
    %v1084 = vunpack.c.l.b16 %v196
    %v1085 = vunpack.c.h.b16 %v196
    %v1086 = vunpack.c.l.b16 %v197
    %v1087 = vunpack.c.h.b16 %v197
    %v1088 = vunpack.c.l.b16 %v198
    %v1089 = vunpack.c.h.b16 %v198
    %v1090 = vunpack.c.l.b16 %v199
    %v1091 = vunpack.c.h.b16 %v199
    %v1092 = vunpack.c.l.b16 %v200
    %v1093 = vunpack.c.h.b16 %v200
    %v1094 = vunpack.c.l.b16 %v201
    %v1095 = vunpack.c.h.b16 %v201
    %v1096 = vunpack.c.l.b16 %v202
    %v1097 = vunpack.c.h.b16 %v202
    %v1098 = vunpack.c.l.b16 %v203
    %v1099 = vunpack.c.h.b16 %v203
    %v1100 = vunpack.c.l.b16 %v204
    %v1101 = vunpack.c.h.b16 %v204
    %v1102 = vunpack.c.l.b16 %v205
    %v1103 = vunpack.c.h.b16 %v205
    %v1104 = vunpack.c.l.b16 %v206
    %v1105 = vunpack.c.h.b16 %v206
    %v1106 = vunpack.c.l.b16 %v207
    %v1107 = vunpack.c.h.b16 %v207
    %v1108 = vunpack.c.l.b16 %v208
    %v1109 = vunpack.c.h.b16 %v208
    %v1110 = vunpack.c.l.b16 %v209
    %v1111 = vunpack.c.h.b16 %v209
    %v1112 = vunpack.c.l.b16 %v210
    %v1113 = vunpack.c.h.b16 %v210
    %v1114 = vunpack.c.l.b16 %v211
    %v1115 = vunpack.c.h.b16 %v211
    %v1116 = vunpack.c.l.b16 %v212
    %v1117 = vunpack.c.h.b16 %v212
    %v1118 = vunpack.c.l.b16 %v213
    %v1119 = vunpack.c.h.b16 %v213
    %v1120 = vunpack.c.l.b16 %v214
    %v1121 = vunpack.c.h.b16 %v214
    %v1122 = vunpack.c.l.b16 %v215
    %v1123 = vunpack.c.h.b16 %v215
    %v1124 = vunpack.c.l.b16 %v216
    %v1125 = vunpack.c.h.b16 %v216
    %v1126 = vunpack.c.l.b16 %v217
    %v1127 = vunpack.c.h.b16 %v217
    %v1128 = vunpack.c.l.b16 %v218
    %v1129 = vunpack.c.h.b16 %v218
    %v1130 = vunpack.c.l.b16 %v219
    %v1131 = vunpack.c.h.b16 %v219
    %v1132 = vunpack.c.l.b16 %v220
    %v1133 = vunpack.c.h.b16 %v220
    %v1134 = vunpack.c.l.b16 %v221
    %v1135 = vunpack.c.h.b16 %v221
    %v1136 = vunpack.c.l.b16 %v222
    %v1137 = vunpack.c.h.b16 %v222
    %v1138 = vunpack.c.l.b16 %v223
    %v1139 = vunpack.c.h.b16 %v223
    %v1140 = vunpack.c.l.b16 %v224
    %v1141 = vunpack.c.h.b16 %v224
    %v1142 = vunpack.c.l.b16 %v225
    %v1143 = vunpack.c.h.b16 %v225
    %v1144 = vunpack.c.l.b16 %v226
    %v1145 = vunpack.c.h.b16 %v226
    %v1146 = vunpack.c.l.b16 %v227
    %v1147 = vunpack.c.h.b16 %v227
    %v1148 = vunpack.c.l.b16 %v228
    %v1149 = vunpack.c.h.b16 %v228
    %v1150 = vunpack.c.l.b16 %v229
    %v1151 = vunpack.c.h.b16 %v229
    %v1152 = vunpack.c.l.b16 %v230
    %v1153 = vunpack.c.h.b16 %v230
    %v1154 = vunpack.c.l.b16 %v231
    %v1155 = vunpack.c.h.b16 %v231
    %v1156 = vunpack.c.l.b16 %v232
    %v1157 = vunpack.c.h.b16 %v232
    %v1158 = vunpack.c.l.b16 %v233
    %v1159 = vunpack.c.h.b16 %v233
    %v1160 = vunpack.c.l.b16 %v234
    %v1161 = vunpack.c.h.b16 %v234
    %v1162 = vunpack.c.l.b16 %v235
    %v1163 = vunpack.c.h.b16 %v235
    %v1164 = vunpack.c.l.b16 %v236
    %v1165 = vunpack.c.h.b16 %v236
    %v1166 = vunpack.c.l.b16 %v237
    %v1167 = vunpack.c.h.b16 %v237
    %v1168 = vunpack.c.l.b16 %v238
    %v1169 = vunpack.c.h.b16 %v238
    %v1170 = vunpack.c.l.b16 %v239
    %v1171 = vunpack.c.h.b16 %v239
    %v1172 = vunpack.c.l.b16 %v240
    %v1173 = vunpack.c.h.b16 %v240
    %v1174 = vunpack.c.l.b16 %v241
    %v1175 = vunpack.c.h.b16 %v241
    %v1176 = vunpack.c.l.b16 %v242
    %v1177 = vunpack.c.h.b16 %v242
    %v1178 = vunpack.c.l.b16 %v243
    %v1179 = vunpack.c.h.b16 %v243
    %v1180 = vunpack.c.l.b16 %v244
    %v1181 = vunpack.c.h.b16 %v244
    %v1182 = vunpack.c.l.b16 %v245
    %v1183 = vunpack.c.h.b16 %v245
    %v1184 = vunpack.c.l.b16 %v246
    %v1185 = vunpack.c.h.b16 %v246
    %v1186 = vunpack.c.l.b16 %v247
    %v1187 = vunpack.c.h.b16 %v247
    %v1188 = vunpack.c.l.b16 %v248
    %v1189 = vunpack.c.h.b16 %v248
    %v1190 = vunpack.c.l.b16 %v249
    %v1191 = vunpack.c.h.b16 %v249
    %v1192 = vunpack.c.l.b16 %v250
    %v1193 = vunpack.c.h.b16 %v250
    %v1194 = vunpack.c.l.b16 %v251
    %v1195 = vunpack.c.h.b16 %v251
    %v1196 = vunpack.c.l.b16 %v252
    %v1197 = vunpack.c.h.b16 %v252
    %v1198 = vunpack.c.l.b16 %v253
    %v1199 = vunpack.c.h.b16 %v253
    %v1200 = vunpack.c.l.b16 %v254
    %v1201 = vunpack.c.h.b16 %v254
    %v1202 = vunpack.c.l.b16 %v255
    %v1203 = vunpack.c.h.b16 %v255
    %v1204 = vunpack.c.l.b16 %v256
    %v1205 = vunpack.c.h.b16 %v256
    %v1206 = vunpack.c.l.b16 %v257
    %v1207 = vunpack.c.h.b16 %v257
    %v1208 = vunpack.c.l.b16 %v258
    %v1209 = vunpack.c.h.b16 %v258
    %v1210 = vunpack.c.l.b16 %v259
    %v1211 = vunpack.c.h.b16 %v259
    %v1212 = vunpack.c.l.b16 %v260
    %v1213 = vunpack.c.h.b16 %v260
    %v1214 = vunpack.c.l.b16 %v261
    %v1215 = vunpack.c.h.b16 %v261
    %v1216 = vunpack.c.l.b16 %v262
    %v1217 = vunpack.c.h.b16 %v262
    %v1218 = vunpack.c.l.b16 %v263
    %v1219 = vunpack.c.h.b16 %v263
    %v1220 = vunpack.c.l.b16 %v264
    %v1221 = vunpack.c.h.b16 %v264
    %v1222 = vunpack.c.l.b16 %v265
    %v1223 = vunpack.c.h.b16 %v265
    %v1224 = vunpack.c.l.b16 %v266
    %v1225 = vunpack.c.h.b16 %v266
    %v1226 = vunpack.c.l.b16 %v267
    %v1227 = vunpack.c.h.b16 %v267
    %v1228 = vunpack.c.l.b16 %v268
    %v1229 = vunpack.c.h.b16 %v268
    %v1230 = vunpack.c.l.b16 %v269
    %v1231 = vunpack.c.h.b16 %v269
    %v1232 = vunpack.c.l.b16 %v270
    %v1233 = vunpack.c.h.b16 %v270
    %v1234 = vunpack.c.l.b16 %v271
    %v1235 = vunpack.c.h.b16 %v271
    %v1236 = vunpack.c.l.b16 %v272
    %v1237 = vunpack.c.h.b16 %v272
    %v1238 = vunpack.c.l.b16 %v273
    %v1239 = vunpack.c.h.b16 %v273
    %v1240 = vunpack.c.l.b16 %v274
    %v1241 = vunpack.c.h.b16 %v274
    %v1242 = vunpack.c.l.b16 %v275
    %v1243 = vunpack.c.h.b16 %v275
    %v1244 = vunpack.c.l.b16 %v276
    %v1245 = vunpack.c.h.b16 %v276
    %v1246 = vunpack.c.l.b16 %v277
    %v1247 = vunpack.c.h.b16 %v277
    %v1248 = vunpack.c.l.b16 %v278
    %v1249 = vunpack.c.h.b16 %v278
    %v1250 = vunpack.c.l.b16 %v279
    %v1251 = vunpack.c.h.b16 %v279
    %v1252 = vunpack.c.l.b16 %v280
    %v1253 = vunpack.c.h.b16 %v280
    %v1254 = vunpack.c.l.b16 %v281
    %v1255 = vunpack.c.h.b16 %v281
    %v1256 = vunpack.c.l.b16 %v282
    %v1257 = vunpack.c.h.b16 %v282
    %v1258 = vunpack.c.l.b16 %v283
    %v1259 = vunpack.c.h.b16 %v283
    %v1260 = vunpack.c.l.b16 %v284
    %v1261 = vunpack.c.h.b16 %v284
    %v1262 = vunpack.c.l.b16 %v285
    %v1263 = vunpack.c.h.b16 %v285
    %v1264 = vunpack.c.l.b16 %v286
    %v1265 = vunpack.c.h.b16 %v286
    %v1266 = vunpack.c.l.b16 %v287
    %v1267 = vunpack.c.h.b16 %v287
    %v1268 = vunpack.c.l.b16 %v288
    %v1269 = vunpack.c.h.b16 %v288
    %v1270 = vunpack.c.l.b16 %v289
    %v1271 = vunpack.c.h.b16 %v289
    %v1272 = vunpack.c.l.b16 %v290
    %v1273 = vunpack.c.h.b16 %v290
    %v1274 = vunpack.c.l.b16 %v291
    %v1275 = vunpack.c.h.b16 %v291
    %v1276 = vunpack.c.l.b16 %v292
    %v1277 = vunpack.c.h.b16 %v292
    %v1278 = vunpack.c.l.b16 %v293
    %v1279 = vunpack.c.h.b16 %v293
    %v1280 = vunpack.c.l.b16 %v294
    %v1281 = vunpack.c.h.b16 %v294
    %v1282 = vunpack.c.l.b16 %v295
    %v1283 = vunpack.c.h.b16 %v295
    %v1284 = vunpack.c.l.b16 %v296
    %v1285 = vunpack.c.h.b16 %v296
    %v1286 = vunpack.c.l.b16 %v297
    %v1287 = vunpack.c.h.b16 %v297
    %v1288 = vunpack.c.l.b16 %v298
    %v1289 = vunpack.c.h.b16 %v298
    %v1290 = vunpack.c.l.b16 %v299
    %v1291 = vunpack.c.h.b16 %v299
    %v1292 = vunpack.c.l.b16 %v300
    %v1293 = vunpack.c.h.b16 %v300
    %v1294 = vunpack.c.l.b16 %v301
    %v1295 = vunpack.c.h.b16 %v301
    %v1296 = vunpack.c.l.b16 %v302
    %v1297 = vunpack.c.h.b16 %v302
    %v1298 = vunpack.c.l.b16 %v303
    %v1299 = vunpack.c.h.b16 %v303
    %v1300 = vunpack.c.l.b16 %v304
    %v1301 = vunpack.c.h.b16 %v304
    %v1302 = vunpack.c.l.b16 %v305
    %v1303 = vunpack.c.h.b16 %v305
    %v1304 = vunpack.c.l.b16 %v306
    %v1305 = vunpack.c.h.b16 %v306
    %v1306 = vunpack.c.l.b16 %v307
    %v1307 = vunpack.c.h.b16 %v307
    %v1308 = vunpack.c.l.b16 %v308
    %v1309 = vunpack.c.h.b16 %v308
    %v1310 = vunpack.c.l.b16 %v309
    %v1311 = vunpack.c.h.b16 %v309
    %v1312 = vunpack.c.l.b16 %v310
    %v1313 = vunpack.c.h.b16 %v310
    %v1314 = vunpack.c.l.b16 %v311
    %v1315 = vunpack.c.h.b16 %v311
    %v1316 = vunpack.c.l.b16 %v312
    %v1317 = vunpack.c.h.b16 %v312
    %v1318 = vunpack.c.l.b16 %v313
    %v1319 = vunpack.c.h.b16 %v313
    %v1320 = vunpack.c.l.b16 %v314
    %v1321 = vunpack.c.h.b16 %v314
    %v1322 = vunpack.c.l.b16 %v315
    %v1323 = vunpack.c.h.b16 %v315
    %v1324 = vunpack.c.l.b16 %v316
    %v1325 = vunpack.c.h.b16 %v316
    %v1326 = vunpack.c.l.b16 %v317
    %v1327 = vunpack.c.h.b16 %v317
    %v1328 = vunpack.c.l.b16 %v318
    %v1329 = vunpack.c.h.b16 %v318
    %v1330 = vunpack.c.l.b16 %v319
    %v1331 = vunpack.c.h.b16 %v319
    %v1332 = vunpack.c.l.b16 %v320
    %v1333 = vunpack.c.h.b16 %v320
    %v1334 = vunpack.c.l.b16 %v321
    %v1335 = vunpack.c.h.b16 %v321
    %v1336 = vunpack.c.l.b16 %v322
    %v1337 = vunpack.c.h.b16 %v322
    %v1338 = vunpack.c.l.b16 %v323
    %v1339 = vunpack.c.h.b16 %v323
    %v1340 = vunpack.c.l.b16 %v324
    %v1341 = vunpack.c.h.b16 %v324
    %v1342 = vunpack.c.l.b16 %v325
    %v1343 = vunpack.c.h.b16 %v325
    %v1344 = vunpack.c.l.b16 %v326
    %v1345 = vunpack.c.h.b16 %v326
    %v1346 = vunpack.c.l.b16 %v327
    %v1347 = vunpack.c.h.b16 %v327
    %v1348 = vunpack.c.l.b16 %v328
    %v1349 = vunpack.c.h.b16 %v328
    %v1350 = vunpack.c.l.b16 %v329
    %v1351 = vunpack.c.h.b16 %v329
    %v1352 = vunpack.c.l.b16 %v330
    %v1353 = vunpack.c.h.b16 %v330
    %v1354 = vunpack.c.l.b16 %v331
    %v1355 = vunpack.c.h.b16 %v331
    %v1356 = vunpack.c.l.b16 %v332
    %v1357 = vunpack.c.h.b16 %v332
    %v1358 = vunpack.c.l.b16 %v333
    %v1359 = vunpack.c.h.b16 %v333
    %v1360 = vunpack.c.l.b16 %v334
    %v1361 = vunpack.c.h.b16 %v334
    %v1362 = vunpack.c.l.b16 %v335
    %v1363 = vunpack.c.h.b16 %v335
    %v1364 = vunpack.c.l.b16 %v336
    %v1365 = vunpack.c.h.b16 %v336
    %v1366 = vunpack.c.l.b16 %v337
    %v1367 = vunpack.c.h.b16 %v337
    %v1368 = vunpack.c.l.b16 %v338
    %v1369 = vunpack.c.h.b16 %v338
    %v1370 = vunpack.c.l.b16 %v339
    %v1371 = vunpack.c.h.b16 %v339
    %v1372 = vunpack.c.l.b16 %v340
    %v1373 = vunpack.c.h.b16 %v340
    %v1374 = vunpack.c.l.b16 %v341
    %v1375 = vunpack.c.h.b16 %v341
    %v1376 = vunpack.c.l.b16 %v342
    %v1377 = vunpack.c.h.b16 %v342
    %v1378 = vunpack.c.l.b16 %v343
    %v1379 = vunpack.c.h.b16 %v343
    %v1380 = vunpack.c.l.b16 %v344
    %v1381 = vunpack.c.h.b16 %v344
    %v1382 = vunpack.c.l.b16 %v345
    %v1383 = vunpack.c.h.b16 %v345
    %v1384 = vunpack.c.l.b16 %v346
    %v1385 = vunpack.c.h.b16 %v346
    %v1386 = vunpack.c.l.b16 %v347
    %v1387 = vunpack.c.h.b16 %v347
    %v1388 = vunpack.c.l.b16 %v348
    %v1389 = vunpack.c.h.b16 %v348
    %v1390 = vunpack.c.l.b16 %v349
    %v1391 = vunpack.c.h.b16 %v349
    %v1392 = vunpack.c.l.b16 %v350
    %v1393 = vunpack.c.h.b16 %v350
    %v1394 = vunpack.c.l.b16 %v351
    %v1395 = vunpack.c.h.b16 %v351
    %v1396 = vunpack.c.l.b16 %v352
    %v1397 = vunpack.c.h.b16 %v352
    %v1398 = vunpack.c.l.b16 %v353
    %v1399 = vunpack.c.h.b16 %v353
    %v1400 = vunpack.c.l.b16 %v354
    %v1401 = vunpack.c.h.b16 %v354
    %v1402 = vunpack.c.l.b16 %v355
    %v1403 = vunpack.c.h.b16 %v355
    %v1404 = vunpack.c.l.b16 %v356
    %v1405 = vunpack.c.h.b16 %v356
    %v1406 = vunpack.c.l.b16 %v357
    %v1407 = vunpack.c.h.b16 %v357
    %v1408 = vunpack.c.l.b16 %v358
    %v1409 = vunpack.c.h.b16 %v358
    %v1410 = vunpack.c.l.b16 %v359
    %v1411 = vunpack.c.h.b16 %v359
    %v1412 = vunpack.c.l.b16 %v360
    %v1413 = vunpack.c.h.b16 %v360
    %v1414 = vunpack.c.l.b16 %v361
    %v1415 = vunpack.c.h.b16 %v361
    %v1416 = vunpack.c.l.b16 %v362
    %v1417 = vunpack.c.h.b16 %v362
    %v1418 = vunpack.c.l.b16 %v363
    %v1419 = vunpack.c.h.b16 %v363
    %v1420 = vunpack.c.l.b16 %v364
    %v1421 = vunpack.c.h.b16 %v364
    %v1422 = vunpack.c.l.b16 %v365
    %v1423 = vunpack.c.h.b16 %v365
    %v1424 = vunpack.c.l.b16 %v366
    %v1425 = vunpack.c.h.b16 %v366
    %v1426 = vunpack.c.l.b16 %v367
    %v1427 = vunpack.c.h.b16 %v367
    %v1428 = vunpack.c.l.b16 %v368
    %v1429 = vunpack.c.h.b16 %v368
    %v1430 = vunpack.c.l.b16 %v369
    %v1431 = vunpack.c.h.b16 %v369
    %v1432 = vunpack.c.l.b16 %v370
    %v1433 = vunpack.c.h.b16 %v370
    %v1434 = vunpack.c.l.b16 %v371
    %v1435 = vunpack.c.h.b16 %v371
    %v1436 = vunpack.c.l.b16 %v372
    %v1437 = vunpack.c.h.b16 %v372
    %v1438 = vunpack.c.l.b16 %v373
    %v1439 = vunpack.c.h.b16 %v373
    %v1440 = vunpack.c.l.b16 %v374
    %v1441 = vunpack.c.h.b16 %v374
    %v1442 = vunpack.c.l.b16 %v375
    %v1443 = vunpack.c.h.b16 %v375
    %v1444 = vunpack.c.l.b16 %v376
    %v1445 = vunpack.c.h.b16 %v376
    %v1446 = vunpack.c.l.b16 %v377
    %v1447 = vunpack.c.h.b16 %v377
    %v1448 = vunpack.c.l.b16 %v378
    %v1449 = vunpack.c.h.b16 %v378
    %v1450 = vunpack.c.l.b16 %v379
    %v1451 = vunpack.c.h.b16 %v379
    %v1452 = vunpack.c.l.b16 %v380
    %v1453 = vunpack.c.h.b16 %v380
    %v1454 = vunpack.c.l.b16 %v381
    %v1455 = vunpack.c.h.b16 %v381
    %v1456 = vunpack.c.l.b16 %v382
    %v1457 = vunpack.c.h.b16 %v382
    %v1458 = vunpack.c.l.b16 %v383
    %v1459 = vunpack.c.h.b16 %v383
    %v1460 = vunpack.c.l.b16 %v384
    %v1461 = vunpack.c.h.b16 %v384
    %v1462 = vunpack.c.l.b16 %v385
    %v1463 = vunpack.c.h.b16 %v385
    %v1464 = vunpack.c.l.b16 %v386
    %v1465 = vunpack.c.h.b16 %v386
    %v1466 = vunpack.c.l.b16 %v387
    %v1467 = vunpack.c.h.b16 %v387
    %v1468 = vunpack.c.l.b16 %v388
    %v1469 = vunpack.c.h.b16 %v388
    %v1470 = vunpack.c.l.b16 %v389
    %v1471 = vunpack.c.h.b16 %v389
    %v1472 = vunpack.c.l.b16 %v390
    %v1473 = vunpack.c.h.b16 %v390
    %v1474 = vunpack.c.l.b16 %v391
    %v1475 = vunpack.c.h.b16 %v391
    %v1476 = vunpack.c.l.b16 %v392
    %v1477 = vunpack.c.h.b16 %v392
    %v1478 = vunpack.c.l.b16 %v393
    %v1479 = vunpack.c.h.b16 %v393
    %v1480 = vunpack.c.l.b16 %v394
    %v1481 = vunpack.c.h.b16 %v394
    %v1482 = vunpack.c.l.b16 %v395
    %v1483 = vunpack.c.h.b16 %v395
    %v1484 = vunpack.c.l.b16 %v396
    %v1485 = vunpack.c.h.b16 %v396
    %v1486 = vunpack.c.l.b16 %v397
    %v1487 = vunpack.c.h.b16 %v397
    %v1488 = vunpack.c.l.b16 %v398
    %v1489 = vunpack.c.h.b16 %v398
    %v1490 = vunpack.c.l.b16 %v399
    %v1491 = vunpack.c.h.b16 %v399
    %v1492 = vunpack.c.l.b16 %v400
    %v1493 = vunpack.c.h.b16 %v400
    %v1494 = vunpack.c.l.b16 %v401
    %v1495 = vunpack.c.h.b16 %v401
    %v1496 = vunpack.c.l.b16 %v402
    %v1497 = vunpack.c.h.b16 %v402
    %v1498 = vunpack.c.l.b16 %v403
    %v1499 = vunpack.c.h.b16 %v403
    %v1500 = vunpack.c.l.b16 %v404
    %v1501 = vunpack.c.h.b16 %v404
    %v1502 = vunpack.c.l.b16 %v405
    %v1503 = vunpack.c.h.b16 %v405
    %v1504 = vunpack.c.l.b16 %v406
    %v1505 = vunpack.c.h.b16 %v406
    %v1506 = vunpack.c.l.b16 %v407
    %v1507 = vunpack.c.h.b16 %v407
    %v1508 = vunpack.c.l.b16 %v408
    %v1509 = vunpack.c.h.b16 %v408
    %v1510 = vunpack.c.l.b16 %v409
    %v1511 = vunpack.c.h.b16 %v409
    %v1512 = vunpack.c.l.b16 %v410
    %v1513 = vunpack.c.h.b16 %v410
    %v1514 = vunpack.c.l.b16 %v411
    %v1515 = vunpack.c.h.b16 %v411
    %v1516 = vunpack.c.l.b16 %v412
    %v1517 = vunpack.c.h.b16 %v412
    %v1518 = vunpack.c.l.b16 %v413
    %v1519 = vunpack.c.h.b16 %v413
    %v1520 = vunpack.c.l.b16 %v414
    %v1521 = vunpack.c.h.b16 %v414
    %v1522 = vunpack.c.l.b16 %v415
    %v1523 = vunpack.c.h.b16 %v415
    %v1524 = vunpack.c.l.b16 %v416
    %v1525 = vunpack.c.h.b16 %v416
    %v1526 = vunpack.c.l.b16 %v417
    %v1527 = vunpack.c.h.b16 %v417
    %v1528 = vunpack.c.l.b16 %v418
    %v1529 = vunpack.c.h.b16 %v418
    %v1530 = vunpack.c.l.b16 %v419
    %v1531 = vunpack.c.h.b16 %v419
    %v1532 = vunpack.c.l.b16 %v420
    %v1533 = vunpack.c.h.b16 %v420
    %v1534 = vunpack.c.l.b16 %v421
    %v1535 = vunpack.c.h.b16 %v421
    %v1536 = vunpack.c.l.b16 %v422
    %v1537 = vunpack.c.h.b16 %v422
    %v1538 = vunpack.c.l.b16 %v423
    %v1539 = vunpack.c.h.b16 %v423
    %v1540 = vunpack.c.l.b16 %v424
    %v1541 = vunpack.c.h.b16 %v424
    %v1542 = vunpack.c.l.b16 %v425
    %v1543 = vunpack.c.h.b16 %v425
    %v1544 = vunpack.c.l.b16 %v426
    %v1545 = vunpack.c.h.b16 %v426
    %v1546 = vunpack.c.l.b16 %v427
    %v1547 = vunpack.c.h.b16 %v427
    %v1548 = vunpack.c.l.b16 %v428
    %v1549 = vunpack.c.h.b16 %v428
    %v1550 = vunpack.c.l.b16 %v429
    %v1551 = vunpack.c.h.b16 %v429
    %v1552 = vunpack.c.l.b16 %v430
    %v1553 = vunpack.c.h.b16 %v430
    %v1554 = vunpack.c.l.b16 %v431
    %v1555 = vunpack.c.h.b16 %v431
    %v1556 = vunpack.c.l.b16 %v432
    %v1557 = vunpack.c.h.b16 %v432
    %v1558 = vunpack.c.l.b16 %v433
    %v1559 = vunpack.c.h.b16 %v433
    %v1560 = vunpack.c.l.b16 %v434
    %v1561 = vunpack.c.h.b16 %v434
    %v1562 = vunpack.c.l.b16 %v435
    %v1563 = vunpack.c.h.b16 %v435
    %v1564 = vunpack.c.l.b16 %v436
    %v1565 = vunpack.c.h.b16 %v436
    %v1566 = vunpack.c.l.b16 %v437
    %v1567 = vunpack.c.h.b16 %v437
    %v1568 = vunpack.c.l.b16 %v438
    %v1569 = vunpack.c.h.b16 %v438
    %v1570 = vunpack.c.l.b16 %v439
    %v1571 = vunpack.c.h.b16 %v439
    %v1572 = vunpack.c.l.b16 %v440
    %v1573 = vunpack.c.h.b16 %v440
    %v1574 = vunpack.c.l.b16 %v441
    %v1575 = vunpack.c.h.b16 %v441
    %v1576 = vunpack.c.l.b16 %v442
    %v1577 = vunpack.c.h.b16 %v442
    %v1578 = vunpack.c.l.b16 %v443
    %v1579 = vunpack.c.h.b16 %v443
    %v1580 = vunpack.c.l.b16 %v444
    %v1581 = vunpack.c.h.b16 %v444
    %v1582 = vunpack.c.l.b16 %v445
    %v1583 = vunpack.c.h.b16 %v445
    %v1584 = vunpack.c.l.b16 %v446
    %v1585 = vunpack.c.h.b16 %v446
    %v1586 = vunpack.c.l.b16 %v447
    %v1587 = vunpack.c.h.b16 %v447
    %v1588 = vunpack.c.l.b16 %v448
    %v1589 = vunpack.c.h.b16 %v448
    %v1590 = vunpack.c.l.b16 %v449
    %v1591 = vunpack.c.h.b16 %v449
    %v1592 = vunpack.c.l.b16 %v450
    %v1593 = vunpack.c.h.b16 %v450
    %v1594 = vunpack.c.l.b16 %v451
    %v1595 = vunpack.c.h.b16 %v451
    %v1596 = vunpack.c.l.b16 %v452
    %v1597 = vunpack.c.h.b16 %v452
    %v1598 = vunpack.c.l.b16 %v453
    %v1599 = vunpack.c.h.b16 %v453
    %v1600 = vunpack.c.l.b16 %v454
    %v1601 = vunpack.c.h.b16 %v454
    %v1602 = vunpack.c.l.b16 %v455
    %v1603 = vunpack.c.h.b16 %v455
    %v1604 = vunpack.c.l.b16 %v456
    %v1605 = vunpack.c.h.b16 %v456
    %v1606 = vunpack.c.l.b16 %v457
    %v1607 = vunpack.c.h.b16 %v457
    %v1608 = vunpack.c.l.b16 %v458
    %v1609 = vunpack.c.h.b16 %v458
    %v1610 = vunpack.c.l.b16 %v459
    %v1611 = vunpack.c.h.b16 %v459
    %v1612 = vunpack.c.l.b16 %v460
    %v1613 = vunpack.c.h.b16 %v460
    %v1614 = vunpack.c.l.b16 %v461
    %v1615 = vunpack.c.h.b16 %v461
    %v1616 = vunpack.c.l.b16 %v462
    %v1617 = vunpack.c.h.b16 %v462
    %v1618 = vunpack.c.l.b16 %v463
    %v1619 = vunpack.c.h.b16 %v463
    %v1620 = vunpack.c.l.b16 %v464
    %v1621 = vunpack.c.h.b16 %v464
    %v1622 = vunpack.c.l.b16 %v465
    %v1623 = vunpack.c.h.b16 %v465
    %v1624 = vunpack.c.l.b16 %v466
    %v1625 = vunpack.c.h.b16 %v466
    %v1626 = vunpack.c.l.b16 %v467
    %v1627 = vunpack.c.h.b16 %v467
    %v1628 = vunpack.c.l.b16 %v468
    %v1629 = vunpack.c.h.b16 %v468
    %v1630 = vunpack.c.l.b16 %v469
    %v1631 = vunpack.c.h.b16 %v469
    %v1632 = vunpack.c.l.b16 %v470
    %v1633 = vunpack.c.h.b16 %v470
    %v1634 = vunpack.c.l.b16 %v471
    %v1635 = vunpack.c.h.b16 %v471
    %v1636 = vunpack.c.l.b16 %v472
    %v1637 = vunpack.c.h.b16 %v472
    %v1638 = vunpack.c.l.b16 %v473
    %v1639 = vunpack.c.h.b16 %v473
    %v1640 = vunpack.c.l.b16 %v474
    %v1641 = vunpack.c.h.b16 %v474
    %v1642 = vunpack.c.l.b16 %v475
    %v1643 = vunpack.c.h.b16 %v475
    %v1644 = vunpack.c.l.b16 %v476
    %v1645 = vunpack.c.h.b16 %v476
    %v1646 = vunpack.c.l.b16 %v477
    %v1647 = vunpack.c.h.b16 %v477
    %v1648 = vunpack.c.l.b16 %v478
    %v1649 = vunpack.c.h.b16 %v478
    %v1650 = vunpack.c.l.b16 %v479
    %v1651 = vunpack.c.h.b16 %v479
    %v1652 = vunpack.c.l.b16 %v480
    %v1653 = vunpack.c.h.b16 %v480
    %v1654 = vunpack.c.l.b16 %v481
    %v1655 = vunpack.c.h.b16 %v481
    %v1656 = vunpack.c.l.b16 %v482
    %v1657 = vunpack.c.h.b16 %v482
    %v1658 = vunpack.c.l.b16 %v483
    %v1659 = vunpack.c.h.b16 %v483
    %v1660 = vunpack.c.l.b16 %v484
    %v1661 = vunpack.c.h.b16 %v484
    %v1662 = vunpack.c.l.b16 %v485
    %v1663 = vunpack.c.h.b16 %v485
    %v1664 = vunpack.c.l.b16 %v486
    %v1665 = vunpack.c.h.b16 %v486
    %v1666 = vunpack.c.l.b16 %v487
    %v1667 = vunpack.c.h.b16 %v487
    %v1668 = vunpack.c.l.b16 %v488
    %v1669 = vunpack.c.h.b16 %v488
    %v1670 = vpack.c.b16 %v910, %v902
    %v1671 = vpack.c.b16 %v911, %v903
    %v1672 = vpack.c.b16 %v912, %v904
    %v1673 = vpack.c.b16 %v913, %v905
    %v1674 = vpack.c.b16 %v914, %v906
    %v1675 = vpack.c.b16 %v915, %v907
    %v1676 = vpack.c.b16 %v916, %v908
    %v1677 = vpack.c.b16 %v917, %v909
    %v1678 = vpack.c.b16 %v926, %v918
    %v1679 = vpack.c.b16 %v927, %v919
    %v1680 = vpack.c.b16 %v928, %v920
    %v1681 = vpack.c.b16 %v929, %v921
    %v1682 = vpack.c.b16 %v930, %v922
    %v1683 = vpack.c.b16 %v931, %v923
    %v1684 = vpack.c.b16 %v932, %v924
    %v1685 = vpack.c.b16 %v933, %v925
    %v1686 = vpack.c.b16 %v942, %v934
    %v1687 = vpack.c.b16 %v943, %v935
    %v1688 = vpack.c.b16 %v944, %v936
    %v1689 = vpack.c.b16 %v945, %v937
    %v1690 = vpack.c.b16 %v946, %v938
    %v1691 = vpack.c.b16 %v947, %v939
    %v1692 = vpack.c.b16 %v948, %v940
    %v1693 = vpack.c.b16 %v949, %v941
    %v1694 = vpack.c.b16 %v958, %v950
    %v1695 = vpack.c.b16 %v959, %v951
    %v1696 = vpack.c.b16 %v960, %v952
    %v1697 = vpack.c.b16 %v961, %v953
    %v1698 = vpack.c.b16 %v962, %v954
    %v1699 = vpack.c.b16 %v963, %v955
    %v1700 = vpack.c.b16 %v964, %v956
    %v1701 = vpack.c.b16 %v965, %v957
    %v1702 = vpack.c.b16 %v974, %v966
    %v1703 = vpack.c.b16 %v975, %v967
    %v1704 = vpack.c.b16 %v976, %v968
    %v1705 = vpack.c.b16 %v977, %v969
    %v1706 = vpack.c.b16 %v978, %v970
    %v1707 = vpack.c.b16 %v979, %v971
    %v1708 = vpack.c.b16 %v980, %v972
    %v1709 = vpack.c.b16 %v981, %v973
    %v1710 = vpack.c.b16 %v990, %v982
    %v1711 = vpack.c.b16 %v991, %v983
    %v1712 = vpack.c.b16 %v992, %v984
    %v1713 = vpack.c.b16 %v993, %v985
    %v1714 = vpack.c.b16 %v994, %v986
    %v1715 = vpack.c.b16 %v995, %v987
    %v1716 = vpack.c.b16 %v996, %v988
    %v1717 = vpack.c.b16 %v997, %v989
    %v1718 = vpack.c.b16 %v1006, %v998
    %v1719 = vpack.c.b16 %v1007, %v999
    %v1720 = vpack.c.b16 %v1008, %v1000
    %v1721 = vpack.c.b16 %v1009, %v1001
    %v1722 = vpack.c.b16 %v1010, %v1002
    %v1723 = vpack.c.b16 %v1011, %v1003
    %v1724 = vpack.c.b16 %v1012, %v1004
    %v1725 = vpack.c.b16 %v1013, %v1005
    %v1726 = vpack.c.b16 %v1022, %v1014
    %v1727 = vpack.c.b16 %v1023, %v1015
    %v1728 = vpack.c.b16 %v1024, %v1016
    %v1729 = vpack.c.b16 %v1025, %v1017
    %v1730 = vpack.c.b16 %v1026, %v1018
    %v1731 = vpack.c.b16 %v1027, %v1019
    %v1732 = vpack.c.b16 %v1028, %v1020
    %v1733 = vpack.c.b16 %v1029, %v1021
    %v1734 = vpack.c.b16 %v1038, %v1030
    %v1735 = vpack.c.b16 %v1039, %v1031
    %v1736 = vpack.c.b16 %v1040, %v1032
    %v1737 = vpack.c.b16 %v1041, %v1033
    %v1738 = vpack.c.b16 %v1042, %v1034
    %v1739 = vpack.c.b16 %v1043, %v1035
    %v1740 = vpack.c.b16 %v1044, %v1036
    %v1741 = vpack.c.b16 %v1045, %v1037
    %v1742 = vpack.c.b16 %v1054, %v1046
    %v1743 = vpack.c.b16 %v1055, %v1047
    %v1744 = vpack.c.b16 %v1056, %v1048
    %v1745 = vpack.c.b16 %v1057, %v1049
    %v1746 = vpack.c.b16 %v1058, %v1050
    %v1747 = vpack.c.b16 %v1059, %v1051
    %v1748 = vpack.c.b16 %v1060, %v1052
    %v1749 = vpack.c.b16 %v1061, %v1053
    %v1750 = vpack.c.b16 %v1070, %v1062
    %v1751 = vpack.c.b16 %v1071, %v1063
    %v1752 = vpack.c.b16 %v1072, %v1064
    %v1753 = vpack.c.b16 %v1073, %v1065
    %v1754 = vpack.c.b16 %v1074, %v1066
    %v1755 = vpack.c.b16 %v1075, %v1067
    %v1756 = vpack.c.b16 %v1076, %v1068
    %v1757 = vpack.c.b16 %v1077, %v1069
    %v1758 = vpack.c.b16 %v1086, %v1078
    %v1759 = vpack.c.b16 %v1087, %v1079
    %v1760 = vpack.c.b16 %v1088, %v1080
    %v1761 = vpack.c.b16 %v1089, %v1081
    %v1762 = vpack.c.b16 %v1090, %v1082
    %v1763 = vpack.c.b16 %v1091, %v1083
    %v1764 = vpack.c.b16 %v1092, %v1084
    %v1765 = vpack.c.b16 %v1093, %v1085
    %v1766 = vpack.c.b16 %v1102, %v1094
    %v1767 = vpack.c.b16 %v1103, %v1095
    %v1768 = vpack.c.b16 %v1104, %v1096
    %v1769 = vpack.c.b16 %v1105, %v1097
    %v1770 = vpack.c.b16 %v1106, %v1098
    %v1771 = vpack.c.b16 %v1107, %v1099
    %v1772 = vpack.c.b16 %v1108, %v1100
    %v1773 = vpack.c.b16 %v1109, %v1101
    %v1774 = vpack.c.b16 %v1118, %v1110
    %v1775 = vpack.c.b16 %v1119, %v1111
    %v1776 = vpack.c.b16 %v1120, %v1112
    %v1777 = vpack.c.b16 %v1121, %v1113
    %v1778 = vpack.c.b16 %v1122, %v1114
    %v1779 = vpack.c.b16 %v1123, %v1115
    %v1780 = vpack.c.b16 %v1124, %v1116
    %v1781 = vpack.c.b16 %v1125, %v1117
    %v1782 = vpack.c.b16 %v1134, %v1126
    %v1783 = vpack.c.b16 %v1135, %v1127
    %v1784 = vpack.c.b16 %v1136, %v1128
    %v1785 = vpack.c.b16 %v1137, %v1129
    %v1786 = vpack.c.b16 %v1138, %v1130
    %v1787 = vpack.c.b16 %v1139, %v1131
    %v1788 = vpack.c.b16 %v1140, %v1132
    %v1789 = vpack.c.b16 %v1141, %v1133
    %v1790 = vpack.c.b16 %v1150, %v1142
    %v1791 = vpack.c.b16 %v1151, %v1143
    %v1792 = vpack.c.b16 %v1152, %v1144
    %v1793 = vpack.c.b16 %v1153, %v1145
    %v1794 = vpack.c.b16 %v1154, %v1146
    %v1795 = vpack.c.b16 %v1155, %v1147
    %v1796 = vpack.c.b16 %v1156, %v1148
    %v1797 = vpack.c.b16 %v1157, %v1149
    %v1798 = vpack.c.b16 %v1166, %v1158
    %v1799 = vpack.c.b16 %v1167, %v1159
    %v1800 = vpack.c.b16 %v1168, %v1160
    %v1801 = vpack.c.b16 %v1169, %v1161
    %v1802 = vpack.c.b16 %v1170, %v1162
    %v1803 = vpack.c.b16 %v1171, %v1163
    %v1804 = vpack.c.b16 %v1172, %v1164
    %v1805 = vpack.c.b16 %v1173, %v1165
    %v1806 = vpack.c.b16 %v1182, %v1174
    %v1807 = vpack.c.b16 %v1183, %v1175
    %v1808 = vpack.c.b16 %v1184, %v1176
    %v1809 = vpack.c.b16 %v1185, %v1177
    %v1810 = vpack.c.b16 %v1186, %v1178
    %v1811 = vpack.c.b16 %v1187, %v1179
    %v1812 = vpack.c.b16 %v1188, %v1180
    %v1813 = vpack.c.b16 %v1189, %v1181
    %v1814 = vpack.c.b16 %v1198, %v1190
    %v1815 = vpack.c.b16 %v1199, %v1191
    %v1816 = vpack.c.b16 %v1200, %v1192
    %v1817 = vpack.c.b16 %v1201, %v1193
    %v1818 = vpack.c.b16 %v1202, %v1194
    %v1819 = vpack.c.b16 %v1203, %v1195
    %v1820 = vpack.c.b16 %v1204, %v1196
    %v1821 = vpack.c.b16 %v1205, %v1197
    %v1822 = vpack.c.b16 %v1214, %v1206
    %v1823 = vpack.c.b16 %v1215, %v1207
    %v1824 = vpack.c.b16 %v1216, %v1208
    %v1825 = vpack.c.b16 %v1217, %v1209
    %v1826 = vpack.c.b16 %v1218, %v1210
    %v1827 = vpack.c.b16 %v1219, %v1211
    %v1828 = vpack.c.b16 %v1220, %v1212
    %v1829 = vpack.c.b16 %v1221, %v1213
    %v1830 = vpack.c.b16 %v1230, %v1222
    %v1831 = vpack.c.b16 %v1231, %v1223
    %v1832 = vpack.c.b16 %v1232, %v1224
    %v1833 = vpack.c.b16 %v1233, %v1225
    %v1834 = vpack.c.b16 %v1234, %v1226
    %v1835 = vpack.c.b16 %v1235, %v1227
    %v1836 = vpack.c.b16 %v1236, %v1228
    %v1837 = vpack.c.b16 %v1237, %v1229
    %v1838 = vpack.c.b16 %v1246, %v1238
    %v1839 = vpack.c.b16 %v1247, %v1239
    %v1840 = vpack.c.b16 %v1248, %v1240
    %v1841 = vpack.c.b16 %v1249, %v1241
    %v1842 = vpack.c.b16 %v1250, %v1242
    %v1843 = vpack.c.b16 %v1251, %v1243
    %v1844 = vpack.c.b16 %v1252, %v1244
    %v1845 = vpack.c.b16 %v1253, %v1245
    %v1846 = vpack.c.b16 %v1262, %v1254
    %v1847 = vpack.c.b16 %v1263, %v1255
    %v1848 = vpack.c.b16 %v1264, %v1256
    %v1849 = vpack.c.b16 %v1265, %v1257
    %v1850 = vpack.c.b16 %v1266, %v1258
    %v1851 = vpack.c.b16 %v1267, %v1259
    %v1852 = vpack.c.b16 %v1268, %v1260
    %v1853 = vpack.c.b16 %v1269, %v1261
    %v1854 = vpack.c.b16 %v1278, %v1270
    %v1855 = vpack.c.b16 %v1279, %v1271
    %v1856 = vpack.c.b16 %v1280, %v1272
    %v1857 = vpack.c.b16 %v1281, %v1273
    %v1858 = vpack.c.b16 %v1282, %v1274
    %v1859 = vpack.c.b16 %v1283, %v1275
    %v1860 = vpack.c.b16 %v1284, %v1276
    %v1861 = vpack.c.b16 %v1285, %v1277
    %v1862 = vpack.c.b16 %v1294, %v1286
    %v1863 = vpack.c.b16 %v1295, %v1287
    %v1864 = vpack.c.b16 %v1296, %v1288
    %v1865 = vpack.c.b16 %v1297, %v1289
    %v1866 = vpack.c.b16 %v1298, %v1290
    %v1867 = vpack.c.b16 %v1299, %v1291
    %v1868 = vpack.c.b16 %v1300, %v1292
    %v1869 = vpack.c.b16 %v1301, %v1293
    %v1870 = vpack.c.b16 %v1310, %v1302
    %v1871 = vpack.c.b16 %v1311, %v1303
    %v1872 = vpack.c.b16 %v1312, %v1304
    %v1873 = vpack.c.b16 %v1313, %v1305
    %v1874 = vpack.c.b16 %v1314, %v1306
    %v1875 = vpack.c.b16 %v1315, %v1307
    %v1876 = vpack.c.b16 %v1316, %v1308
    %v1877 = vpack.c.b16 %v1317, %v1309
    %v1878 = vpack.c.b16 %v1326, %v1318
    %v1879 = vpack.c.b16 %v1327, %v1319
    %v1880 = vpack.c.b16 %v1328, %v1320
    %v1881 = vpack.c.b16 %v1329, %v1321
    %v1882 = vpack.c.b16 %v1330, %v1322
    %v1883 = vpack.c.b16 %v1331, %v1323
    %v1884 = vpack.c.b16 %v1332, %v1324
    %v1885 = vpack.c.b16 %v1333, %v1325
    %v1886 = vpack.c.b16 %v1342, %v1334
    %v1887 = vpack.c.b16 %v1343, %v1335
    %v1888 = vpack.c.b16 %v1344, %v1336
    %v1889 = vpack.c.b16 %v1345, %v1337
    %v1890 = vpack.c.b16 %v1346, %v1338
    %v1891 = vpack.c.b16 %v1347, %v1339
    %v1892 = vpack.c.b16 %v1348, %v1340
    %v1893 = vpack.c.b16 %v1349, %v1341
    %v1894 = vpack.c.b16 %v1358, %v1350
    %v1895 = vpack.c.b16 %v1359, %v1351
    %v1896 = vpack.c.b16 %v1360, %v1352
    %v1897 = vpack.c.b16 %v1361, %v1353
    %v1898 = vpack.c.b16 %v1362, %v1354
    %v1899 = vpack.c.b16 %v1363, %v1355
    %v1900 = vpack.c.b16 %v1364, %v1356
    %v1901 = vpack.c.b16 %v1365, %v1357
    %v1902 = vpack.c.b16 %v1374, %v1366
    %v1903 = vpack.c.b16 %v1375, %v1367
    %v1904 = vpack.c.b16 %v1376, %v1368
    %v1905 = vpack.c.b16 %v1377, %v1369
    %v1906 = vpack.c.b16 %v1378, %v1370
    %v1907 = vpack.c.b16 %v1379, %v1371
    %v1908 = vpack.c.b16 %v1380, %v1372
    %v1909 = vpack.c.b16 %v1381, %v1373
    %v1910 = vpack.c.b16 %v1390, %v1382
    %v1911 = vpack.c.b16 %v1391, %v1383
    %v1912 = vpack.c.b16 %v1392, %v1384
    %v1913 = vpack.c.b16 %v1393, %v1385
    %v1914 = vpack.c.b16 %v1394, %v1386
    %v1915 = vpack.c.b16 %v1395, %v1387
    %v1916 = vpack.c.b16 %v1396, %v1388
    %v1917 = vpack.c.b16 %v1397, %v1389
    %v1918 = vpack.c.b16 %v1406, %v1398
    %v1919 = vpack.c.b16 %v1407, %v1399
    %v1920 = vpack.c.b16 %v1408, %v1400
    %v1921 = vpack.c.b16 %v1409, %v1401
    %v1922 = vpack.c.b16 %v1410, %v1402
    %v1923 = vpack.c.b16 %v1411, %v1403
    %v1924 = vpack.c.b16 %v1412, %v1404
    %v1925 = vpack.c.b16 %v1413, %v1405
    %v1926 = vpack.c.b16 %v1422, %v1414
    %v1927 = vpack.c.b16 %v1423, %v1415
    %v1928 = vpack.c.b16 %v1424, %v1416
    %v1929 = vpack.c.b16 %v1425, %v1417
    %v1930 = vpack.c.b16 %v1426, %v1418
    %v1931 = vpack.c.b16 %v1427, %v1419
    %v1932 = vpack.c.b16 %v1428, %v1420
    %v1933 = vpack.c.b16 %v1429, %v1421
    %v1934 = vpack.c.b16 %v1438, %v1430
    %v1935 = vpack.c.b16 %v1439, %v1431
    %v1936 = vpack.c.b16 %v1440, %v1432
    %v1937 = vpack.c.b16 %v1441, %v1433
    %v1938 = vpack.c.b16 %v1442, %v1434
    %v1939 = vpack.c.b16 %v1443, %v1435
    %v1940 = vpack.c.b16 %v1444, %v1436
    %v1941 = vpack.c.b16 %v1445, %v1437
    %v1942 = vpack.c.b16 %v1454, %v1446
    %v1943 = vpack.c.b16 %v1455, %v1447
    %v1944 = vpack.c.b16 %v1456, %v1448
    %v1945 = vpack.c.b16 %v1457, %v1449
    %v1946 = vpack.c.b16 %v1458, %v1450
    %v1947 = vpack.c.b16 %v1459, %v1451
    %v1948 = vpack.c.b16 %v1460, %v1452
    %v1949 = vpack.c.b16 %v1461, %v1453
    %v1950 = vpack.c.b16 %v1470, %v1462
    %v1951 = vpack.c.b16 %v1471, %v1463
    %v1952 = vpack.c.b16 %v1472, %v1464
    %v1953 = vpack.c.b16 %v1473, %v1465
    %v1954 = vpack.c.b16 %v1474, %v1466
    %v1955 = vpack.c.b16 %v1475, %v1467
    %v1956 = vpack.c.b16 %v1476, %v1468
    %v1957 = vpack.c.b16 %v1477, %v1469
    %v1958 = vpack.c.b16 %v1486, %v1478
    %v1959 = vpack.c.b16 %v1487, %v1479
    %v1960 = vpack.c.b16 %v1488, %v1480
    %v1961 = vpack.c.b16 %v1489, %v1481
    %v1962 = vpack.c.b16 %v1490, %v1482
    %v1963 = vpack.c.b16 %v1491, %v1483
    %v1964 = vpack.c.b16 %v1492, %v1484
    %v1965 = vpack.c.b16 %v1493, %v1485
    %v1966 = vpack.c.b16 %v1502, %v1494
    %v1967 = vpack.c.b16 %v1503, %v1495
    %v1968 = vpack.c.b16 %v1504, %v1496
    %v1969 = vpack.c.b16 %v1505, %v1497
    %v1970 = vpack.c.b16 %v1506, %v1498
    %v1971 = vpack.c.b16 %v1507, %v1499
    %v1972 = vpack.c.b16 %v1508, %v1500
    %v1973 = vpack.c.b16 %v1509, %v1501
    %v1974 = vpack.c.b16 %v1518, %v1510
    %v1975 = vpack.c.b16 %v1519, %v1511
    %v1976 = vpack.c.b16 %v1520, %v1512
    %v1977 = vpack.c.b16 %v1521, %v1513
    %v1978 = vpack.c.b16 %v1522, %v1514
    %v1979 = vpack.c.b16 %v1523, %v1515
    %v1980 = vpack.c.b16 %v1524, %v1516
    %v1981 = vpack.c.b16 %v1525, %v1517
    %v1982 = vpack.c.b16 %v1534, %v1526
    %v1983 = vpack.c.b16 %v1535, %v1527
    %v1984 = vpack.c.b16 %v1536, %v1528
    %v1985 = vpack.c.b16 %v1537, %v1529
    %v1986 = vpack.c.b16 %v1538, %v1530
    %v1987 = vpack.c.b16 %v1539, %v1531
    %v1988 = vpack.c.b16 %v1540, %v1532
    %v1989 = vpack.c.b16 %v1541, %v1533
    %v1990 = vpack.c.b16 %v1550, %v1542
    %v1991 = vpack.c.b16 %v1551, %v1543
    %v1992 = vpack.c.b16 %v1552, %v1544
    %v1993 = vpack.c.b16 %v1553, %v1545
    %v1994 = vpack.c.b16 %v1554, %v1546
    %v1995 = vpack.c.b16 %v1555, %v1547
    %v1996 = vpack.c.b16 %v1556, %v1548
    %v1997 = vpack.c.b16 %v1557, %v1549
    %v1998 = vpack.c.b16 %v1566, %v1558
    %v1999 = vpack.c.b16 %v1567, %v1559
    %v2000 = vpack.c.b16 %v1568, %v1560
    %v2001 = vpack.c.b16 %v1569, %v1561
    %v2002 = vpack.c.b16 %v1570, %v1562
    %v2003 = vpack.c.b16 %v1571, %v1563
    %v2004 = vpack.c.b16 %v1572, %v1564
    %v2005 = vpack.c.b16 %v1573, %v1565
    %v2006 = vpack.c.b16 %v1582, %v1574
    %v2007 = vpack.c.b16 %v1583, %v1575
    %v2008 = vpack.c.b16 %v1584, %v1576
    %v2009 = vpack.c.b16 %v1585, %v1577
    %v2010 = vpack.c.b16 %v1586, %v1578
    %v2011 = vpack.c.b16 %v1587, %v1579
    %v2012 = vpack.c.b16 %v1588, %v1580
    %v2013 = vpack.c.b16 %v1589, %v1581
    %v2014 = vpack.c.b16 %v1598, %v1590
    %v2015 = vpack.c.b16 %v1599, %v1591
    %v2016 = vpack.c.b16 %v1600, %v1592
    %v2017 = vpack.c.b16 %v1601, %v1593
    %v2018 = vpack.c.b16 %v1602, %v1594
    %v2019 = vpack.c.b16 %v1603, %v1595
    %v2020 = vpack.c.b16 %v1604, %v1596
    %v2021 = vpack.c.b16 %v1605, %v1597
    %v2022 = vpack.c.b16 %v1614, %v1606
    %v2023 = vpack.c.b16 %v1615, %v1607
    %v2024 = vpack.c.b16 %v1616, %v1608
    %v2025 = vpack.c.b16 %v1617, %v1609
    %v2026 = vpack.c.b16 %v1618, %v1610
    %v2027 = vpack.c.b16 %v1619, %v1611
    %v2028 = vpack.c.b16 %v1620, %v1612
    %v2029 = vpack.c.b16 %v1621, %v1613
    %v2030 = vpack.c.b16 %v1630, %v1622
    %v2031 = vpack.c.b16 %v1631, %v1623
    %v2032 = vpack.c.b16 %v1632, %v1624
    %v2033 = vpack.c.b16 %v1633, %v1625
    %v2034 = vpack.c.b16 %v1634, %v1626
    %v2035 = vpack.c.b16 %v1635, %v1627
    %v2036 = vpack.c.b16 %v1636, %v1628
    %v2037 = vpack.c.b16 %v1637, %v1629
    %v2038 = vpack.c.b16 %v1646, %v1638
    %v2039 = vpack.c.b16 %v1647, %v1639
    %v2040 = vpack.c.b16 %v1648, %v1640
    %v2041 = vpack.c.b16 %v1649, %v1641
    %v2042 = vpack.c.b16 %v1650, %v1642
    %v2043 = vpack.c.b16 %v1651, %v1643
    %v2044 = vpack.c.b16 %v1652, %v1644
    %v2045 = vpack.c.b16 %v1653, %v1645
    %v2046 = vpack.c.b16 %v1662, %v1654
    %v2047 = vpack.c.b16 %v1663, %v1655
    %v2048 = vpack.c.b16 %v1664, %v1656
    %v2049 = vpack.c.b16 %v1665, %v1657
    %v2050 = vpack.c.b16 %v1666, %v1658
    %v2051 = vpack.c.b16 %v1667, %v1659
    %v2052 = vpack.c.b16 %v1668, %v1660
    %v2053 = vpack.c.b16 %v1669, %v1661
    %2438 = vmatpush.bf16.msra.mxu0 %v1726
    %2439 = vmatpush.bf16.msra.mxu0 %v1718
    %2440 = vmatpush.bf16.msra.mxu0 %v1710
    %2441 = vmatpush.bf16.msra.mxu0 %v1702
    %2442 = vmatpush.bf16.msra.mxu0 %v1694
    %2443 = vmatpush.bf16.msra.mxu0 %v1686
    %2444 = vmatpush.bf16.msra.mxu0 %v1678
    %2445 = vmatpush.bf16.msra.mxu0 %v1670
    %2446 = vmatmul.bf16.gmra.mxu0 %v99
    %v2447 = vpop.f32.mrf.mxu0
    %v2448 = vadd.f32 %v510, %v2447
    %v2449 = vpop.f32.mrf.mxu0
    %2450 = vdwg.mxu0
    %2451 = vmatpush.bf16.msra.mxu0 %v1790
    %2452 = vmatpush.bf16.msra.mxu0 %v1782
    %2453 = vmatpush.bf16.msra.mxu0 %v1774
    %2454 = vmatpush.bf16.msra.mxu0 %v1766
    %2455 = vmatpush.bf16.msra.mxu0 %v1758
    %2456 = vmatpush.bf16.msra.mxu0 %v1750
    %2457 = vmatpush.bf16.msra.mxu0 %v1742
    %2458 = vmatpush.bf16.msra.mxu0 %v1734
    %2459 = vmatmul.bf16.gmra.mxu0 %v100
    %v2460 = vpop.f32.mrf.mxu0
    %v2461 = vadd.f32 %v2448, %v2460
    %v2462 = vpop.f32.mrf.mxu0
    %2463 = vdwg.mxu0
    %2464 = vmatpush.bf16.msra.mxu0 %v1854
    %2465 = vmatpush.bf16.msra.mxu0 %v1846
    %2466 = vmatpush.bf16.msra.mxu0 %v1838
    %2467 = vmatpush.bf16.msra.mxu0 %v1830
    %2468 = vmatpush.bf16.msra.mxu0 %v1822
    %2469 = vmatpush.bf16.msra.mxu0 %v1814
    %2470 = vmatpush.bf16.msra.mxu0 %v1806
    %2471 = vmatpush.bf16.msra.mxu0 %v1798
    %2472 = vmatmul.bf16.gmra.mxu0 %v101
    %v2473 = vpop.f32.mrf.mxu0
    %v2474 = vadd.f32 %v2461, %v2473
    %v2475 = vpop.f32.mrf.mxu0
    %2476 = vdwg.mxu0
    %2477 = vmatpush.bf16.msra.mxu0 %v1918
    %2478 = vmatpush.bf16.msra.mxu0 %v1910
    %2479 = vmatpush.bf16.msra.mxu0 %v1902
    %2480 = vmatpush.bf16.msra.mxu0 %v1894
    %2481 = vmatpush.bf16.msra.mxu0 %v1886
    %2482 = vmatpush.bf16.msra.mxu0 %v1878
    %2483 = vmatpush.bf16.msra.mxu0 %v1870
    %2484 = vmatpush.bf16.msra.mxu0 %v1862
    %2485 = vmatmul.bf16.gmra.mxu0 %v102
    %v2486 = vpop.f32.mrf.mxu0
    %v2487 = vadd.f32 %v2474, %v2486
    %v2488 = vpop.f32.mrf.mxu0
    %2489 = vdwg.mxu0
    %2490 = vmatpush.bf16.msra.mxu0 %v1982
    %2491 = vmatpush.bf16.msra.mxu0 %v1974
    %2492 = vmatpush.bf16.msra.mxu0 %v1966
    %2493 = vmatpush.bf16.msra.mxu0 %v1958
    %2494 = vmatpush.bf16.msra.mxu0 %v1950
    %2495 = vmatpush.bf16.msra.mxu0 %v1942
    %2496 = vmatpush.bf16.msra.mxu0 %v1934
    %2497 = vmatpush.bf16.msra.mxu0 %v1926
    %2498 = vmatmul.bf16.gmra.mxu0 %v103
    %v2499 = vpop.f32.mrf.mxu0
    %v2500 = vadd.f32 %v2487, %v2499
    %v2501 = vpop.f32.mrf.mxu0
    %2502 = vdwg.mxu0
    %2503 = vmatpush.bf16.msra.mxu0 %v2046
    %2504 = vmatpush.bf16.msra.mxu0 %v2038
    %2505 = vmatpush.bf16.msra.mxu0 %v2030
    %2506 = vmatpush.bf16.msra.mxu0 %v2022
    %2507 = vmatpush.bf16.msra.mxu0 %v2014
    %2508 = vmatpush.bf16.msra.mxu0 %v2006
    %2509 = vmatpush.bf16.msra.mxu0 %v1998
    %2510 = vmatpush.bf16.msra.mxu0 %v1990
    %2511 = vmatmul.bf16.gmra.mxu0 %v104
    %v2512 = vpop.f32.mrf.mxu0
    %v2513 = vadd.f32 %v2500, %v2512
    %v2514 = vpop.f32.mrf.mxu0
    %2515 = vdwg.mxu0
    %2516 = vmatpush.bf16.msra.mxu0 %v1727
    %2517 = vmatpush.bf16.msra.mxu0 %v1719
    %2518 = vmatpush.bf16.msra.mxu0 %v1711
    %2519 = vmatpush.bf16.msra.mxu0 %v1703
    %2520 = vmatpush.bf16.msra.mxu0 %v1695
    %2521 = vmatpush.bf16.msra.mxu0 %v1687
    %2522 = vmatpush.bf16.msra.mxu0 %v1679
    %2523 = vmatpush.bf16.msra.mxu0 %v1671
    %2524 = vmatmul.bf16.gmra.mxu0 %v99
    %v2525 = vpop.f32.mrf.mxu0
    %v2526 = vadd.f32 %v511, %v2525
    %v2527 = vpop.f32.mrf.mxu0
    %2528 = vdwg.mxu0
    %2529 = vmatpush.bf16.msra.mxu0 %v1791
    %2530 = vmatpush.bf16.msra.mxu0 %v1783
    %2531 = vmatpush.bf16.msra.mxu0 %v1775
    %2532 = vmatpush.bf16.msra.mxu0 %v1767
    %2533 = vmatpush.bf16.msra.mxu0 %v1759
    %2534 = vmatpush.bf16.msra.mxu0 %v1751
    %2535 = vmatpush.bf16.msra.mxu0 %v1743
    %2536 = vmatpush.bf16.msra.mxu0 %v1735
    %2537 = vmatmul.bf16.gmra.mxu0 %v100
    %v2538 = vpop.f32.mrf.mxu0
    %v2539 = vadd.f32 %v2526, %v2538
    %v2540 = vpop.f32.mrf.mxu0
    %2541 = vdwg.mxu0
    %2542 = vmatpush.bf16.msra.mxu0 %v1855
    %2543 = vmatpush.bf16.msra.mxu0 %v1847
    %2544 = vmatpush.bf16.msra.mxu0 %v1839
    %2545 = vmatpush.bf16.msra.mxu0 %v1831
    %2546 = vmatpush.bf16.msra.mxu0 %v1823
    %2547 = vmatpush.bf16.msra.mxu0 %v1815
    %2548 = vmatpush.bf16.msra.mxu0 %v1807
    %2549 = vmatpush.bf16.msra.mxu0 %v1799
    %2550 = vmatmul.bf16.gmra.mxu0 %v101
    %v2551 = vpop.f32.mrf.mxu0
    %v2552 = vadd.f32 %v2539, %v2551
    %v2553 = vpop.f32.mrf.mxu0
    %2554 = vdwg.mxu0
    %2555 = vmatpush.bf16.msra.mxu0 %v1919
    %2556 = vmatpush.bf16.msra.mxu0 %v1911
    %2557 = vmatpush.bf16.msra.mxu0 %v1903
    %2558 = vmatpush.bf16.msra.mxu0 %v1895
    %2559 = vmatpush.bf16.msra.mxu0 %v1887
    %2560 = vmatpush.bf16.msra.mxu0 %v1879
    %2561 = vmatpush.bf16.msra.mxu0 %v1871
    %2562 = vmatpush.bf16.msra.mxu0 %v1863
    %2563 = vmatmul.bf16.gmra.mxu0 %v102
    %v2564 = vpop.f32.mrf.mxu0
    %v2565 = vadd.f32 %v2552, %v2564
    %v2566 = vpop.f32.mrf.mxu0
    %2567 = vdwg.mxu0
    %2568 = vmatpush.bf16.msra.mxu0 %v1983
    %2569 = vmatpush.bf16.msra.mxu0 %v1975
    %2570 = vmatpush.bf16.msra.mxu0 %v1967
    %2571 = vmatpush.bf16.msra.mxu0 %v1959
    %2572 = vmatpush.bf16.msra.mxu0 %v1951
    %2573 = vmatpush.bf16.msra.mxu0 %v1943
    %2574 = vmatpush.bf16.msra.mxu0 %v1935
    %2575 = vmatpush.bf16.msra.mxu0 %v1927
    %2576 = vmatmul.bf16.gmra.mxu0 %v103
    %v2577 = vpop.f32.mrf.mxu0
    %v2578 = vadd.f32 %v2565, %v2577
    %v2579 = vpop.f32.mrf.mxu0
    %2580 = vdwg.mxu0
    %2581 = vmatpush.bf16.msra.mxu0 %v2047
    %2582 = vmatpush.bf16.msra.mxu0 %v2039
    %2583 = vmatpush.bf16.msra.mxu0 %v2031
    %2584 = vmatpush.bf16.msra.mxu0 %v2023
    %2585 = vmatpush.bf16.msra.mxu0 %v2015
    %2586 = vmatpush.bf16.msra.mxu0 %v2007
    %2587 = vmatpush.bf16.msra.mxu0 %v1999
    %2588 = vmatpush.bf16.msra.mxu0 %v1991
    %2589 = vmatmul.bf16.gmra.mxu0 %v104
    %v2590 = vpop.f32.mrf.mxu0
    %v2591 = vadd.f32 %v2578, %v2590
    %v2592 = vpop.f32.mrf.mxu0
    %2593 = vdwg.mxu0
    %2594 = vmatpush.bf16.msra.mxu0 %v1728
    %2595 = vmatpush.bf16.msra.mxu0 %v1720
    %2596 = vmatpush.bf16.msra.mxu0 %v1712
    %2597 = vmatpush.bf16.msra.mxu0 %v1704
    %2598 = vmatpush.bf16.msra.mxu0 %v1696
    %2599 = vmatpush.bf16.msra.mxu0 %v1688
    %2600 = vmatpush.bf16.msra.mxu0 %v1680
    %2601 = vmatpush.bf16.msra.mxu0 %v1672
    %2602 = vmatmul.bf16.gmra.mxu0 %v99
    %v2603 = vpop.f32.mrf.mxu0
    %v2604 = vadd.f32 %v512, %v2603
    %v2605 = vpop.f32.mrf.mxu0
    %2606 = vdwg.mxu0
    %2607 = vmatpush.bf16.msra.mxu0 %v1792
    %2608 = vmatpush.bf16.msra.mxu0 %v1784
    %2609 = vmatpush.bf16.msra.mxu0 %v1776
    %2610 = vmatpush.bf16.msra.mxu0 %v1768
    %2611 = vmatpush.bf16.msra.mxu0 %v1760
    %2612 = vmatpush.bf16.msra.mxu0 %v1752
    %2613 = vmatpush.bf16.msra.mxu0 %v1744
    %2614 = vmatpush.bf16.msra.mxu0 %v1736
    %2615 = vmatmul.bf16.gmra.mxu0 %v100
    %v2616 = vpop.f32.mrf.mxu0
    %v2617 = vadd.f32 %v2604, %v2616
    %v2618 = vpop.f32.mrf.mxu0
    %2619 = vdwg.mxu0
    %2620 = vmatpush.bf16.msra.mxu0 %v1856
    %2621 = vmatpush.bf16.msra.mxu0 %v1848
    %2622 = vmatpush.bf16.msra.mxu0 %v1840
    %2623 = vmatpush.bf16.msra.mxu0 %v1832
    %2624 = vmatpush.bf16.msra.mxu0 %v1824
    %2625 = vmatpush.bf16.msra.mxu0 %v1816
    %2626 = vmatpush.bf16.msra.mxu0 %v1808
    %2627 = vmatpush.bf16.msra.mxu0 %v1800
    %2628 = vmatmul.bf16.gmra.mxu0 %v101
    %v2629 = vpop.f32.mrf.mxu0
    %v2630 = vadd.f32 %v2617, %v2629
    %v2631 = vpop.f32.mrf.mxu0
    %2632 = vdwg.mxu0
    %2633 = vmatpush.bf16.msra.mxu0 %v1920
    %2634 = vmatpush.bf16.msra.mxu0 %v1912
    %2635 = vmatpush.bf16.msra.mxu0 %v1904
    %2636 = vmatpush.bf16.msra.mxu0 %v1896
    %2637 = vmatpush.bf16.msra.mxu0 %v1888
    %2638 = vmatpush.bf16.msra.mxu0 %v1880
    %2639 = vmatpush.bf16.msra.mxu0 %v1872
    %2640 = vmatpush.bf16.msra.mxu0 %v1864
    %2641 = vmatmul.bf16.gmra.mxu0 %v102
    %v2642 = vpop.f32.mrf.mxu0
    %v2643 = vadd.f32 %v2630, %v2642
    %v2644 = vpop.f32.mrf.mxu0
    %2645 = vdwg.mxu0
    %2646 = vmatpush.bf16.msra.mxu0 %v1984
    %2647 = vmatpush.bf16.msra.mxu0 %v1976
    %2648 = vmatpush.bf16.msra.mxu0 %v1968
    %2649 = vmatpush.bf16.msra.mxu0 %v1960
    %2650 = vmatpush.bf16.msra.mxu0 %v1952
    %2651 = vmatpush.bf16.msra.mxu0 %v1944
    %2652 = vmatpush.bf16.msra.mxu0 %v1936
    %2653 = vmatpush.bf16.msra.mxu0 %v1928
    %2654 = vmatmul.bf16.gmra.mxu0 %v103
    %v2655 = vpop.f32.mrf.mxu0
    %v2656 = vadd.f32 %v2643, %v2655
    %v2657 = vpop.f32.mrf.mxu0
    %2658 = vdwg.mxu0
    %2659 = vmatpush.bf16.msra.mxu0 %v2048
    %2660 = vmatpush.bf16.msra.mxu0 %v2040
    %2661 = vmatpush.bf16.msra.mxu0 %v2032
    %2662 = vmatpush.bf16.msra.mxu0 %v2024
    %2663 = vmatpush.bf16.msra.mxu0 %v2016
    %2664 = vmatpush.bf16.msra.mxu0 %v2008
    %2665 = vmatpush.bf16.msra.mxu0 %v2000
    %2666 = vmatpush.bf16.msra.mxu0 %v1992
    %2667 = vmatmul.bf16.gmra.mxu0 %v104
    %v2668 = vpop.f32.mrf.mxu0
    %v2669 = vadd.f32 %v2656, %v2668
    %v2670 = vpop.f32.mrf.mxu0
    %2671 = vdwg.mxu0
    %2672 = vmatpush.bf16.msra.mxu0 %v1729
    %2673 = vmatpush.bf16.msra.mxu0 %v1721
    %2674 = vmatpush.bf16.msra.mxu0 %v1713
    %2675 = vmatpush.bf16.msra.mxu0 %v1705
    %2676 = vmatpush.bf16.msra.mxu0 %v1697
    %2677 = vmatpush.bf16.msra.mxu0 %v1689
    %2678 = vmatpush.bf16.msra.mxu0 %v1681
    %2679 = vmatpush.bf16.msra.mxu0 %v1673
    %2680 = vmatmul.bf16.gmra.mxu0 %v99
    %v2681 = vpop.f32.mrf.mxu0
    %v2682 = vadd.f32 %v513, %v2681
    %v2683 = vpop.f32.mrf.mxu0
    %2684 = vdwg.mxu0
    %2685 = vmatpush.bf16.msra.mxu0 %v1793
    %2686 = vmatpush.bf16.msra.mxu0 %v1785
    %2687 = vmatpush.bf16.msra.mxu0 %v1777
    %2688 = vmatpush.bf16.msra.mxu0 %v1769
    %2689 = vmatpush.bf16.msra.mxu0 %v1761
    %2690 = vmatpush.bf16.msra.mxu0 %v1753
    %2691 = vmatpush.bf16.msra.mxu0 %v1745
    %2692 = vmatpush.bf16.msra.mxu0 %v1737
    %2693 = vmatmul.bf16.gmra.mxu0 %v100
    %v2694 = vpop.f32.mrf.mxu0
    %v2695 = vadd.f32 %v2682, %v2694
    %v2696 = vpop.f32.mrf.mxu0
    %2697 = vdwg.mxu0
    %2698 = vmatpush.bf16.msra.mxu0 %v1857
    %2699 = vmatpush.bf16.msra.mxu0 %v1849
    %2700 = vmatpush.bf16.msra.mxu0 %v1841
    %2701 = vmatpush.bf16.msra.mxu0 %v1833
    %2702 = vmatpush.bf16.msra.mxu0 %v1825
    %2703 = vmatpush.bf16.msra.mxu0 %v1817
    %2704 = vmatpush.bf16.msra.mxu0 %v1809
    %2705 = vmatpush.bf16.msra.mxu0 %v1801
    %2706 = vmatmul.bf16.gmra.mxu0 %v101
    %v2707 = vpop.f32.mrf.mxu0
    %v2708 = vadd.f32 %v2695, %v2707
    %v2709 = vpop.f32.mrf.mxu0
    %2710 = vdwg.mxu0
    %2711 = vmatpush.bf16.msra.mxu0 %v1921
    %2712 = vmatpush.bf16.msra.mxu0 %v1913
    %2713 = vmatpush.bf16.msra.mxu0 %v1905
    %2714 = vmatpush.bf16.msra.mxu0 %v1897
    %2715 = vmatpush.bf16.msra.mxu0 %v1889
    %2716 = vmatpush.bf16.msra.mxu0 %v1881
    %2717 = vmatpush.bf16.msra.mxu0 %v1873
    %2718 = vmatpush.bf16.msra.mxu0 %v1865
    %2719 = vmatmul.bf16.gmra.mxu0 %v102
    %v2720 = vpop.f32.mrf.mxu0
    %v2721 = vadd.f32 %v2708, %v2720
    %v2722 = vpop.f32.mrf.mxu0
    %2723 = vdwg.mxu0
    %2724 = vmatpush.bf16.msra.mxu0 %v1985
    %2725 = vmatpush.bf16.msra.mxu0 %v1977
    %2726 = vmatpush.bf16.msra.mxu0 %v1969
    %2727 = vmatpush.bf16.msra.mxu0 %v1961
    %2728 = vmatpush.bf16.msra.mxu0 %v1953
    %2729 = vmatpush.bf16.msra.mxu0 %v1945
    %2730 = vmatpush.bf16.msra.mxu0 %v1937
    %2731 = vmatpush.bf16.msra.mxu0 %v1929
    %2732 = vmatmul.bf16.gmra.mxu0 %v103
    %v2733 = vpop.f32.mrf.mxu0
    %v2734 = vadd.f32 %v2721, %v2733
    %v2735 = vpop.f32.mrf.mxu0
    %2736 = vdwg.mxu0
    %2737 = vmatpush.bf16.msra.mxu0 %v2049
    %2738 = vmatpush.bf16.msra.mxu0 %v2041
    %2739 = vmatpush.bf16.msra.mxu0 %v2033
    %2740 = vmatpush.bf16.msra.mxu0 %v2025
    %2741 = vmatpush.bf16.msra.mxu0 %v2017
    %2742 = vmatpush.bf16.msra.mxu0 %v2009
    %2743 = vmatpush.bf16.msra.mxu0 %v2001
    %2744 = vmatpush.bf16.msra.mxu0 %v1993
    %2745 = vmatmul.bf16.gmra.mxu0 %v104
    %v2746 = vpop.f32.mrf.mxu0
    %v2747 = vadd.f32 %v2734, %v2746
    %v2748 = vpop.f32.mrf.mxu0
    %2749 = vdwg.mxu0
    %2750 = vmatpush.bf16.msra.mxu0 %v1730
    %2751 = vmatpush.bf16.msra.mxu0 %v1722
    %2752 = vmatpush.bf16.msra.mxu0 %v1714
    %2753 = vmatpush.bf16.msra.mxu0 %v1706
    %2754 = vmatpush.bf16.msra.mxu0 %v1698
    %2755 = vmatpush.bf16.msra.mxu0 %v1690
    %2756 = vmatpush.bf16.msra.mxu0 %v1682
    %2757 = vmatpush.bf16.msra.mxu0 %v1674
    %2758 = vmatmul.bf16.gmra.mxu0 %v99
    %v2759 = vpop.f32.mrf.mxu0
    %v2760 = vadd.f32 %v514, %v2759
    %v2761 = vpop.f32.mrf.mxu0
    %2762 = vdwg.mxu0
    %2763 = vmatpush.bf16.msra.mxu0 %v1794
    %2764 = vmatpush.bf16.msra.mxu0 %v1786
    %2765 = vmatpush.bf16.msra.mxu0 %v1778
    %2766 = vmatpush.bf16.msra.mxu0 %v1770
    %2767 = vmatpush.bf16.msra.mxu0 %v1762
    %2768 = vmatpush.bf16.msra.mxu0 %v1754
    %2769 = vmatpush.bf16.msra.mxu0 %v1746
    %2770 = vmatpush.bf16.msra.mxu0 %v1738
    %2771 = vmatmul.bf16.gmra.mxu0 %v100
    %v2772 = vpop.f32.mrf.mxu0
    %v2773 = vadd.f32 %v2760, %v2772
    %v2774 = vpop.f32.mrf.mxu0
    %2775 = vdwg.mxu0
    %2776 = vmatpush.bf16.msra.mxu0 %v1858
    %2777 = vmatpush.bf16.msra.mxu0 %v1850
    %2778 = vmatpush.bf16.msra.mxu0 %v1842
    %2779 = vmatpush.bf16.msra.mxu0 %v1834
    %2780 = vmatpush.bf16.msra.mxu0 %v1826
    %2781 = vmatpush.bf16.msra.mxu0 %v1818
    %2782 = vmatpush.bf16.msra.mxu0 %v1810
    %2783 = vmatpush.bf16.msra.mxu0 %v1802
    %2784 = vmatmul.bf16.gmra.mxu0 %v101
    %v2785 = vpop.f32.mrf.mxu0
    %v2786 = vadd.f32 %v2773, %v2785
    %v2787 = vpop.f32.mrf.mxu0
    %2788 = vdwg.mxu0
    %2789 = vmatpush.bf16.msra.mxu0 %v1922
    %2790 = vmatpush.bf16.msra.mxu0 %v1914
    %2791 = vmatpush.bf16.msra.mxu0 %v1906
    %2792 = vmatpush.bf16.msra.mxu0 %v1898
    %2793 = vmatpush.bf16.msra.mxu0 %v1890
    %2794 = vmatpush.bf16.msra.mxu0 %v1882
    %2795 = vmatpush.bf16.msra.mxu0 %v1874
    %2796 = vmatpush.bf16.msra.mxu0 %v1866
    %2797 = vmatmul.bf16.gmra.mxu0 %v102
    %v2798 = vpop.f32.mrf.mxu0
    %v2799 = vadd.f32 %v2786, %v2798
    %v2800 = vpop.f32.mrf.mxu0
    %2801 = vdwg.mxu0
    %2802 = vmatpush.bf16.msra.mxu0 %v1986
    %2803 = vmatpush.bf16.msra.mxu0 %v1978
    %2804 = vmatpush.bf16.msra.mxu0 %v1970
    %2805 = vmatpush.bf16.msra.mxu0 %v1962
    %2806 = vmatpush.bf16.msra.mxu0 %v1954
    %2807 = vmatpush.bf16.msra.mxu0 %v1946
    %2808 = vmatpush.bf16.msra.mxu0 %v1938
    %2809 = vmatpush.bf16.msra.mxu0 %v1930
    %2810 = vmatmul.bf16.gmra.mxu0 %v103
    %v2811 = vpop.f32.mrf.mxu0
    %v2812 = vadd.f32 %v2799, %v2811
    %v2813 = vpop.f32.mrf.mxu0
    %2814 = vdwg.mxu0
    %2815 = vmatpush.bf16.msra.mxu0 %v2050
    %2816 = vmatpush.bf16.msra.mxu0 %v2042
    %2817 = vmatpush.bf16.msra.mxu0 %v2034
    %2818 = vmatpush.bf16.msra.mxu0 %v2026
    %2819 = vmatpush.bf16.msra.mxu0 %v2018
    %2820 = vmatpush.bf16.msra.mxu0 %v2010
    %2821 = vmatpush.bf16.msra.mxu0 %v2002
    %2822 = vmatpush.bf16.msra.mxu0 %v1994
    %2823 = vmatmul.bf16.gmra.mxu0 %v104
    %v2824 = vpop.f32.mrf.mxu0
    %v2825 = vadd.f32 %v2812, %v2824
    %v2826 = vpop.f32.mrf.mxu0
    %2827 = vdwg.mxu0
    %2828 = vmatpush.bf16.msra.mxu0 %v1731
    %2829 = vmatpush.bf16.msra.mxu0 %v1723
    %2830 = vmatpush.bf16.msra.mxu0 %v1715
    %2831 = vmatpush.bf16.msra.mxu0 %v1707
    %2832 = vmatpush.bf16.msra.mxu0 %v1699
    %2833 = vmatpush.bf16.msra.mxu0 %v1691
    %2834 = vmatpush.bf16.msra.mxu0 %v1683
    %2835 = vmatpush.bf16.msra.mxu0 %v1675
    %2836 = vmatmul.bf16.gmra.mxu0 %v99
    %v2837 = vpop.f32.mrf.mxu0
    %v2838 = vadd.f32 %v515, %v2837
    %v2839 = vpop.f32.mrf.mxu0
    %2840 = vdwg.mxu0
    %2841 = vmatpush.bf16.msra.mxu0 %v1795
    %2842 = vmatpush.bf16.msra.mxu0 %v1787
    %2843 = vmatpush.bf16.msra.mxu0 %v1779
    %2844 = vmatpush.bf16.msra.mxu0 %v1771
    %2845 = vmatpush.bf16.msra.mxu0 %v1763
    %2846 = vmatpush.bf16.msra.mxu0 %v1755
    %2847 = vmatpush.bf16.msra.mxu0 %v1747
    %2848 = vmatpush.bf16.msra.mxu0 %v1739
    %2849 = vmatmul.bf16.gmra.mxu0 %v100
    %v2850 = vpop.f32.mrf.mxu0
    %v2851 = vadd.f32 %v2838, %v2850
    %v2852 = vpop.f32.mrf.mxu0
    %2853 = vdwg.mxu0
    %2854 = vmatpush.bf16.msra.mxu0 %v1859
    %2855 = vmatpush.bf16.msra.mxu0 %v1851
    %2856 = vmatpush.bf16.msra.mxu0 %v1843
    %2857 = vmatpush.bf16.msra.mxu0 %v1835
    %2858 = vmatpush.bf16.msra.mxu0 %v1827
    %2859 = vmatpush.bf16.msra.mxu0 %v1819
    %2860 = vmatpush.bf16.msra.mxu0 %v1811
    %2861 = vmatpush.bf16.msra.mxu0 %v1803
    %2862 = vmatmul.bf16.gmra.mxu0 %v101
    %v2863 = vpop.f32.mrf.mxu0
    %v2864 = vadd.f32 %v2851, %v2863
    %v2865 = vpop.f32.mrf.mxu0
    %2866 = vdwg.mxu0
    %2867 = vmatpush.bf16.msra.mxu0 %v1923
    %2868 = vmatpush.bf16.msra.mxu0 %v1915
    %2869 = vmatpush.bf16.msra.mxu0 %v1907
    %2870 = vmatpush.bf16.msra.mxu0 %v1899
    %2871 = vmatpush.bf16.msra.mxu0 %v1891
    %2872 = vmatpush.bf16.msra.mxu0 %v1883
    %2873 = vmatpush.bf16.msra.mxu0 %v1875
    %2874 = vmatpush.bf16.msra.mxu0 %v1867
    %2875 = vmatmul.bf16.gmra.mxu0 %v102
    %v2876 = vpop.f32.mrf.mxu0
    %v2877 = vadd.f32 %v2864, %v2876
    %v2878 = vpop.f32.mrf.mxu0
    %2879 = vdwg.mxu0
    %2880 = vmatpush.bf16.msra.mxu0 %v1987
    %2881 = vmatpush.bf16.msra.mxu0 %v1979
    %2882 = vmatpush.bf16.msra.mxu0 %v1971
    %2883 = vmatpush.bf16.msra.mxu0 %v1963
    %2884 = vmatpush.bf16.msra.mxu0 %v1955
    %2885 = vmatpush.bf16.msra.mxu0 %v1947
    %2886 = vmatpush.bf16.msra.mxu0 %v1939
    %2887 = vmatpush.bf16.msra.mxu0 %v1931
    %2888 = vmatmul.bf16.gmra.mxu0 %v103
    %v2889 = vpop.f32.mrf.mxu0
    %v2890 = vadd.f32 %v2877, %v2889
    %v2891 = vpop.f32.mrf.mxu0
    %2892 = vdwg.mxu0
    %2893 = vmatpush.bf16.msra.mxu0 %v2051
    %2894 = vmatpush.bf16.msra.mxu0 %v2043
    %2895 = vmatpush.bf16.msra.mxu0 %v2035
    %2896 = vmatpush.bf16.msra.mxu0 %v2027
    %2897 = vmatpush.bf16.msra.mxu0 %v2019
    %2898 = vmatpush.bf16.msra.mxu0 %v2011
    %2899 = vmatpush.bf16.msra.mxu0 %v2003
    %2900 = vmatpush.bf16.msra.mxu0 %v1995
    %2901 = vmatmul.bf16.gmra.mxu0 %v104
    %v2902 = vpop.f32.mrf.mxu0
    %v2903 = vadd.f32 %v2890, %v2902
    %v2904 = vpop.f32.mrf.mxu0
    %2905 = vdwg.mxu0
    %2906 = vmatpush.bf16.msra.mxu0 %v1732
    %2907 = vmatpush.bf16.msra.mxu0 %v1724
    %2908 = vmatpush.bf16.msra.mxu0 %v1716
    %2909 = vmatpush.bf16.msra.mxu0 %v1708
    %2910 = vmatpush.bf16.msra.mxu0 %v1700
    %2911 = vmatpush.bf16.msra.mxu0 %v1692
    %2912 = vmatpush.bf16.msra.mxu0 %v1684
    %2913 = vmatpush.bf16.msra.mxu0 %v1676
    %2914 = vmatmul.bf16.gmra.mxu0 %v99
    %v2915 = vpop.f32.mrf.mxu0
    %v2916 = vadd.f32 %v516, %v2915
    %v2917 = vpop.f32.mrf.mxu0
    %2918 = vdwg.mxu0
    %2919 = vmatpush.bf16.msra.mxu0 %v1796
    %2920 = vmatpush.bf16.msra.mxu0 %v1788
    %2921 = vmatpush.bf16.msra.mxu0 %v1780
    %2922 = vmatpush.bf16.msra.mxu0 %v1772
    %2923 = vmatpush.bf16.msra.mxu0 %v1764
    %2924 = vmatpush.bf16.msra.mxu0 %v1756
    %2925 = vmatpush.bf16.msra.mxu0 %v1748
    %2926 = vmatpush.bf16.msra.mxu0 %v1740
    %2927 = vmatmul.bf16.gmra.mxu0 %v100
    %v2928 = vpop.f32.mrf.mxu0
    %v2929 = vadd.f32 %v2916, %v2928
    %v2930 = vpop.f32.mrf.mxu0
    %2931 = vdwg.mxu0
    %2932 = vmatpush.bf16.msra.mxu0 %v1860
    %2933 = vmatpush.bf16.msra.mxu0 %v1852
    %2934 = vmatpush.bf16.msra.mxu0 %v1844
    %2935 = vmatpush.bf16.msra.mxu0 %v1836
    %2936 = vmatpush.bf16.msra.mxu0 %v1828
    %2937 = vmatpush.bf16.msra.mxu0 %v1820
    %2938 = vmatpush.bf16.msra.mxu0 %v1812
    %2939 = vmatpush.bf16.msra.mxu0 %v1804
    %2940 = vmatmul.bf16.gmra.mxu0 %v101
    %v2941 = vpop.f32.mrf.mxu0
    %v2942 = vadd.f32 %v2929, %v2941
    %v2943 = vpop.f32.mrf.mxu0
    %2944 = vdwg.mxu0
    %2945 = vmatpush.bf16.msra.mxu0 %v1924
    %2946 = vmatpush.bf16.msra.mxu0 %v1916
    %2947 = vmatpush.bf16.msra.mxu0 %v1908
    %2948 = vmatpush.bf16.msra.mxu0 %v1900
    %2949 = vmatpush.bf16.msra.mxu0 %v1892
    %2950 = vmatpush.bf16.msra.mxu0 %v1884
    %2951 = vmatpush.bf16.msra.mxu0 %v1876
    %2952 = vmatpush.bf16.msra.mxu0 %v1868
    %2953 = vmatmul.bf16.gmra.mxu0 %v102
    %v2954 = vpop.f32.mrf.mxu0
    %v2955 = vadd.f32 %v2942, %v2954
    %v2956 = vpop.f32.mrf.mxu0
    %2957 = vdwg.mxu0
    %2958 = vmatpush.bf16.msra.mxu0 %v1988
    %2959 = vmatpush.bf16.msra.mxu0 %v1980
    %2960 = vmatpush.bf16.msra.mxu0 %v1972
    %2961 = vmatpush.bf16.msra.mxu0 %v1964
    %2962 = vmatpush.bf16.msra.mxu0 %v1956
    %2963 = vmatpush.bf16.msra.mxu0 %v1948
    %2964 = vmatpush.bf16.msra.mxu0 %v1940
    %2965 = vmatpush.bf16.msra.mxu0 %v1932
    %2966 = vmatmul.bf16.gmra.mxu0 %v103
    %v2967 = vpop.f32.mrf.mxu0
    %v2968 = vadd.f32 %v2955, %v2967
    %v2969 = vpop.f32.mrf.mxu0
    %2970 = vdwg.mxu0
    %2971 = vmatpush.bf16.msra.mxu0 %v2052
    %2972 = vmatpush.bf16.msra.mxu0 %v2044
    %2973 = vmatpush.bf16.msra.mxu0 %v2036
    %2974 = vmatpush.bf16.msra.mxu0 %v2028
    %2975 = vmatpush.bf16.msra.mxu0 %v2020
    %2976 = vmatpush.bf16.msra.mxu0 %v2012
    %2977 = vmatpush.bf16.msra.mxu0 %v2004
    %2978 = vmatpush.bf16.msra.mxu0 %v1996
    %2979 = vmatmul.bf16.gmra.mxu0 %v104
    %v2980 = vpop.f32.mrf.mxu0
    %v2981 = vadd.f32 %v2968, %v2980
    %v2982 = vpop.f32.mrf.mxu0
    %2983 = vdwg.mxu0
    %2984 = vmatpush.bf16.msra.mxu0 %v1733
    %2985 = vmatpush.bf16.msra.mxu0 %v1725
    %2986 = vmatpush.bf16.msra.mxu0 %v1717
    %2987 = vmatpush.bf16.msra.mxu0 %v1709
    %2988 = vmatpush.bf16.msra.mxu0 %v1701
    %2989 = vmatpush.bf16.msra.mxu0 %v1693
    %2990 = vmatpush.bf16.msra.mxu0 %v1685
    %2991 = vmatpush.bf16.msra.mxu0 %v1677
    %2992 = vmatmul.bf16.gmra.mxu0 %v99
    %v2993 = vpop.f32.mrf.mxu0
    %v2994 = vadd.f32 %v517, %v2993
    %v2995 = vpop.f32.mrf.mxu0
    %2996 = vdwg.mxu0
    %2997 = vmatpush.bf16.msra.mxu0 %v1797
    %2998 = vmatpush.bf16.msra.mxu0 %v1789
    %2999 = vmatpush.bf16.msra.mxu0 %v1781
    %3000 = vmatpush.bf16.msra.mxu0 %v1773
    %3001 = vmatpush.bf16.msra.mxu0 %v1765
    %3002 = vmatpush.bf16.msra.mxu0 %v1757
    %3003 = vmatpush.bf16.msra.mxu0 %v1749
    %3004 = vmatpush.bf16.msra.mxu0 %v1741
    %3005 = vmatmul.bf16.gmra.mxu0 %v100
    %v3006 = vpop.f32.mrf.mxu0
    %v3007 = vadd.f32 %v2994, %v3006
    %v3008 = vpop.f32.mrf.mxu0
    %3009 = vdwg.mxu0
    %3010 = vmatpush.bf16.msra.mxu0 %v1861
    %3011 = vmatpush.bf16.msra.mxu0 %v1853
    %3012 = vmatpush.bf16.msra.mxu0 %v1845
    %3013 = vmatpush.bf16.msra.mxu0 %v1837
    %3014 = vmatpush.bf16.msra.mxu0 %v1829
    %3015 = vmatpush.bf16.msra.mxu0 %v1821
    %3016 = vmatpush.bf16.msra.mxu0 %v1813
    %3017 = vmatpush.bf16.msra.mxu0 %v1805
    %3018 = vmatmul.bf16.gmra.mxu0 %v101
    %v3019 = vpop.f32.mrf.mxu0
    %v3020 = vadd.f32 %v3007, %v3019
    %v3021 = vpop.f32.mrf.mxu0
    %3022 = vdwg.mxu0
    %3023 = vmatpush.bf16.msra.mxu0 %v1925
    %3024 = vmatpush.bf16.msra.mxu0 %v1917
    %3025 = vmatpush.bf16.msra.mxu0 %v1909
    %3026 = vmatpush.bf16.msra.mxu0 %v1901
    %3027 = vmatpush.bf16.msra.mxu0 %v1893
    %3028 = vmatpush.bf16.msra.mxu0 %v1885
    %3029 = vmatpush.bf16.msra.mxu0 %v1877
    %3030 = vmatpush.bf16.msra.mxu0 %v1869
    %3031 = vmatmul.bf16.gmra.mxu0 %v102
    %v3032 = vpop.f32.mrf.mxu0
    %v3033 = vadd.f32 %v3020, %v3032
    %v3034 = vpop.f32.mrf.mxu0
    %3035 = vdwg.mxu0
    %3036 = vmatpush.bf16.msra.mxu0 %v1989
    %3037 = vmatpush.bf16.msra.mxu0 %v1981
    %3038 = vmatpush.bf16.msra.mxu0 %v1973
    %3039 = vmatpush.bf16.msra.mxu0 %v1965
    %3040 = vmatpush.bf16.msra.mxu0 %v1957
    %3041 = vmatpush.bf16.msra.mxu0 %v1949
    %3042 = vmatpush.bf16.msra.mxu0 %v1941
    %3043 = vmatpush.bf16.msra.mxu0 %v1933
    %3044 = vmatmul.bf16.gmra.mxu0 %v103
    %v3045 = vpop.f32.mrf.mxu0
    %v3046 = vadd.f32 %v3033, %v3045
    %v3047 = vpop.f32.mrf.mxu0
    %3048 = vdwg.mxu0
    %3049 = vmatpush.bf16.msra.mxu0 %v2053
    %3050 = vmatpush.bf16.msra.mxu0 %v2045
    %3051 = vmatpush.bf16.msra.mxu0 %v2037
    %3052 = vmatpush.bf16.msra.mxu0 %v2029
    %3053 = vmatpush.bf16.msra.mxu0 %v2021
    %3054 = vmatpush.bf16.msra.mxu0 %v2013
    %3055 = vmatpush.bf16.msra.mxu0 %v2005
    %3056 = vmatpush.bf16.msra.mxu0 %v1997
    %3057 = vmatmul.bf16.gmra.mxu0 %v104
    %v3058 = vpop.f32.mrf.mxu0
    %v3059 = vadd.f32 %v3046, %v3058
    %v3060 = vpop.f32.mrf.mxu0
    %3061 = vdwg.mxu0
    %v3062 = vmax.f32 %v2513, 0.0
    %v3063 = vmax.f32 %v2591, 0.0
    %v3064 = vmax.f32 %v2669, 0.0
    %v3065 = vmax.f32 %v2747, 0.0
    %v3066 = vmax.f32 %v2825, 0.0
    %v3067 = vmax.f32 %v2903, 0.0
    %v3068 = vmax.f32 %v2981, 0.0
    %v3069 = vmax.f32 %v3059, 0.0
    %v3070 = vpack.c.bf16 %v3062, %v3062
    %v3071 = vpack.c.bf16 %v3063, %v3063
    %v3072 = vpack.c.bf16 %v3064, %v3064
    %v3073 = vpack.c.bf16 %v3065, %v3065
    %v3074 = vpack.c.bf16 %v3066, %v3066
    %v3075 = vpack.c.bf16 %v3067, %v3067
    %v3076 = vpack.c.bf16 %v3068, %v3068
    %v3077 = vpack.c.bf16 %v3069, %v3069
    %v3078 = vld [vmem:[#allocation8] sm:$0xff]
    %v3079 = vld [vmem:[#allocation8 + $0x8] sm:$0xff]
    %v3080 = vld [vmem:[#allocation8 + $0x10] sm:$0xff]
    %v3081 = vld [vmem:[#allocation8 + $0x18] sm:$0xff]
    %v3082 = vld [vmem:[#allocation8 + $0x20] sm:$0xff]
    %v3083 = vld [vmem:[#allocation8 + $0x28] sm:$0xff]
    %v3084 = vld [vmem:[#allocation8 + $0x30] sm:$0xff]
    %v3085 = vld [vmem:[#allocation8 + $0x38] sm:$0xff]
    %v3086 = vld [vmem:[#allocation8 + $0x40] sm:$0xff]
    %v3087 = vld [vmem:[#allocation8 + $0x48] sm:$0xff]
    %v3088 = vld [vmem:[#allocation8 + $0x50] sm:$0xff]
    %v3089 = vld [vmem:[#allocation8 + $0x58] sm:$0xff]
    %v3090 = vld [vmem:[#allocation8 + $0x60] sm:$0xff]
    %v3091 = vld [vmem:[#allocation8 + $0x68] sm:$0xff]
    %v3092 = vld [vmem:[#allocation8 + $0x70] sm:$0xff]
    %v3093 = vld [vmem:[#allocation8 + $0x78] sm:$0xff]
    %v3094 = vld [vmem:[#allocation8 + $0x80] sm:$0xff]
    %v3095 = vld [vmem:[#allocation8 + $0x88] sm:$0xff]
    %v3096 = vld [vmem:[#allocation8 + $0x90] sm:$0xff]
    %v3097 = vld [vmem:[#allocation8 + $0x98] sm:$0xff]
    %v3098 = vld [vmem:[#allocation8 + $0xa0] sm:$0xff]
    %v3099 = vld [vmem:[#allocation8 + $0xa8] sm:$0xff]
    %v3100 = vld [vmem:[#allocation8 + $0xb0] sm:$0xff]
    %v3101 = vld [vmem:[#allocation8 + $0xb8] sm:$0xff]
    %v3102 = vld [vmem:[#allocation8 + $0xc0] sm:$0xff]
    %v3103 = vld [vmem:[#allocation8 + $0xc8] sm:$0xff]
    %v3104 = vld [vmem:[#allocation8 + $0xd0] sm:$0xff]
    %v3105 = vld [vmem:[#allocation8 + $0xd8] sm:$0xff]
    %v3106 = vld [vmem:[#allocation8 + $0xe0] sm:$0xff]
    %v3107 = vld [vmem:[#allocation8 + $0xe8] sm:$0xff]
    %v3108 = vld [vmem:[#allocation8 + $0xf0] sm:$0xff]
    %v3109 = vld [vmem:[#allocation8 + $0xf8] sm:$0xff]
    %v3110 = vld [vmem:[#allocation8 + $0x100] sm:$0xff]
    %v3111 = vld [vmem:[#allocation8 + $0x108] sm:$0xff]
    %v3112 = vld [vmem:[#allocation8 + $0x110] sm:$0xff]
    %v3113 = vld [vmem:[#allocation8 + $0x118] sm:$0xff]
    %v3114 = vld [vmem:[#allocation8 + $0x120] sm:$0xff]
    %v3115 = vld [vmem:[#allocation8 + $0x128] sm:$0xff]
    %v3116 = vld [vmem:[#allocation8 + $0x130] sm:$0xff]
    %v3117 = vld [vmem:[#allocation8 + $0x138] sm:$0xff]
    %v3118 = vld [vmem:[#allocation8 + $0x140] sm:$0xff]
    %v3119 = vld [vmem:[#allocation8 + $0x148] sm:$0xff]
    %v3120 = vld [vmem:[#allocation8 + $0x150] sm:$0xff]
    %v3121 = vld [vmem:[#allocation8 + $0x158] sm:$0xff]
    %v3122 = vld [vmem:[#allocation8 + $0x160] sm:$0xff]
    %v3123 = vld [vmem:[#allocation8 + $0x168] sm:$0xff]
    %v3124 = vld [vmem:[#allocation8 + $0x170] sm:$0xff]
    %v3125 = vld [vmem:[#allocation8 + $0x178] sm:$0xff]
    %v3126 = vld [vmem:[#allocation8 + $0x180] sm:$0xff]
    %v3127 = vld [vmem:[#allocation8 + $0x188] sm:$0xff]
    %v3128 = vld [vmem:[#allocation8 + $0x190] sm:$0xff]
    %v3129 = vld [vmem:[#allocation8 + $0x198] sm:$0xff]
    %v3130 = vld [vmem:[#allocation8 + $0x1a0] sm:$0xff]
    %v3131 = vld [vmem:[#allocation8 + $0x1a8] sm:$0xff]
    %v3132 = vld [vmem:[#allocation8 + $0x1b0] sm:$0xff]
    %v3133 = vld [vmem:[#allocation8 + $0x1b8] sm:$0xff]
    %v3134 = vld [vmem:[#allocation8 + $0x1c0] sm:$0xff]
    %v3135 = vld [vmem:[#allocation8 + $0x1c8] sm:$0xff]
    %v3136 = vld [vmem:[#allocation8 + $0x1d0] sm:$0xff]
    %v3137 = vld [vmem:[#allocation8 + $0x1d8] sm:$0xff]
    %v3138 = vld [vmem:[#allocation8 + $0x1e0] sm:$0xff]
    %v3139 = vld [vmem:[#allocation8 + $0x1e8] sm:$0xff]
    %v3140 = vld [vmem:[#allocation8 + $0x1f0] sm:$0xff]
    %v3141 = vld [vmem:[#allocation8 + $0x1f8] sm:$0xff]
    %v3142 = vld [vmem:[#allocation8 + $0x200] sm:$0xff]
    %v3143 = vld [vmem:[#allocation8 + $0x208] sm:$0xff]
    %v3144 = vld [vmem:[#allocation8 + $0x210] sm:$0xff]
    %v3145 = vld [vmem:[#allocation8 + $0x218] sm:$0xff]
    %v3146 = vld [vmem:[#allocation8 + $0x220] sm:$0xff]
    %v3147 = vld [vmem:[#allocation8 + $0x228] sm:$0xff]
    %v3148 = vld [vmem:[#allocation8 + $0x230] sm:$0xff]
    %v3149 = vld [vmem:[#allocation8 + $0x238] sm:$0xff]
    %v3150 = vld [vmem:[#allocation8 + $0x240] sm:$0xff]
    %v3151 = vld [vmem:[#allocation8 + $0x248] sm:$0xff]
    %v3152 = vld [vmem:[#allocation8 + $0x250] sm:$0xff]
    %v3153 = vld [vmem:[#allocation8 + $0x258] sm:$0xff]
    %v3154 = vld [vmem:[#allocation8 + $0x260] sm:$0xff]
    %v3155 = vld [vmem:[#allocation8 + $0x268] sm:$0xff]
    %v3156 = vld [vmem:[#allocation8 + $0x270] sm:$0xff]
    %v3157 = vld [vmem:[#allocation8 + $0x278] sm:$0xff]
    %v3158 = vld [vmem:[#allocation8 + $0x280] sm:$0xff]
    %v3159 = vld [vmem:[#allocation8 + $0x288] sm:$0xff]
    %v3160 = vld [vmem:[#allocation8 + $0x290] sm:$0xff]
    %v3161 = vld [vmem:[#allocation8 + $0x298] sm:$0xff]
    %v3162 = vld [vmem:[#allocation8 + $0x2a0] sm:$0xff]
    %v3163 = vld [vmem:[#allocation8 + $0x2a8] sm:$0xff]
    %v3164 = vld [vmem:[#allocation8 + $0x2b0] sm:$0xff]
    %v3165 = vld [vmem:[#allocation8 + $0x2b8] sm:$0xff]
    %v3166 = vld [vmem:[#allocation8 + $0x2c0] sm:$0xff]
    %v3167 = vld [vmem:[#allocation8 + $0x2c8] sm:$0xff]
    %v3168 = vld [vmem:[#allocation8 + $0x2d0] sm:$0xff]
    %v3169 = vld [vmem:[#allocation8 + $0x2d8] sm:$0xff]
    %v3170 = vld [vmem:[#allocation8 + $0x2e0] sm:$0xff]
    %v3171 = vld [vmem:[#allocation8 + $0x2e8] sm:$0xff]
    %v3172 = vld [vmem:[#allocation8 + $0x2f0] sm:$0xff]
    %v3173 = vld [vmem:[#allocation8 + $0x2f8] sm:$0xff]
    %v3174 = vld [vmem:[#allocation8 + $0x300] sm:$0xff]
    %v3175 = vld [vmem:[#allocation8 + $0x308] sm:$0xff]
    %v3176 = vld [vmem:[#allocation8 + $0x310] sm:$0xff]
    %v3177 = vld [vmem:[#allocation8 + $0x318] sm:$0xff]
    %v3178 = vld [vmem:[#allocation8 + $0x320] sm:$0xff]
    %v3179 = vld [vmem:[#allocation8 + $0x328] sm:$0xff]
    %v3180 = vld [vmem:[#allocation8 + $0x330] sm:$0xff]
    %v3181 = vld [vmem:[#allocation8 + $0x338] sm:$0xff]
    %v3182 = vld [vmem:[#allocation8 + $0x340] sm:$0xff]
    %v3183 = vld [vmem:[#allocation8 + $0x348] sm:$0xff]
    %v3184 = vld [vmem:[#allocation8 + $0x350] sm:$0xff]
    %v3185 = vld [vmem:[#allocation8 + $0x358] sm:$0xff]
    %v3186 = vld [vmem:[#allocation8 + $0x360] sm:$0xff]
    %v3187 = vld [vmem:[#allocation8 + $0x368] sm:$0xff]
    %v3188 = vld [vmem:[#allocation8 + $0x370] sm:$0xff]
    %v3189 = vld [vmem:[#allocation8 + $0x378] sm:$0xff]
    %v3190 = vld [vmem:[#allocation8 + $0x380] sm:$0xff]
    %v3191 = vld [vmem:[#allocation8 + $0x388] sm:$0xff]
    %v3192 = vld [vmem:[#allocation8 + $0x390] sm:$0xff]
    %v3193 = vld [vmem:[#allocation8 + $0x398] sm:$0xff]
    %v3194 = vld [vmem:[#allocation8 + $0x3a0] sm:$0xff]
    %v3195 = vld [vmem:[#allocation8 + $0x3a8] sm:$0xff]
    %v3196 = vld [vmem:[#allocation8 + $0x3b0] sm:$0xff]
    %v3197 = vld [vmem:[#allocation8 + $0x3b8] sm:$0xff]
    %v3198 = vld [vmem:[#allocation8 + $0x3c0] sm:$0xff]
    %v3199 = vld [vmem:[#allocation8 + $0x3c8] sm:$0xff]
    %v3200 = vld [vmem:[#allocation8 + $0x3d0] sm:$0xff]
    %v3201 = vld [vmem:[#allocation8 + $0x3d8] sm:$0xff]
    %v3202 = vld [vmem:[#allocation8 + $0x3e0] sm:$0xff]
    %v3203 = vld [vmem:[#allocation8 + $0x3e8] sm:$0xff]
    %v3204 = vld [vmem:[#allocation8 + $0x3f0] sm:$0xff]
    %v3205 = vld [vmem:[#allocation8 + $0x3f8] sm:$0xff]
    %v3206 = vld [vmem:[#allocation8 + $0x400] sm:$0xff]
    %v3207 = vld [vmem:[#allocation8 + $0x408] sm:$0xff]
    %v3208 = vld [vmem:[#allocation8 + $0x410] sm:$0xff]
    %v3209 = vld [vmem:[#allocation8 + $0x418] sm:$0xff]
    %v3210 = vld [vmem:[#allocation8 + $0x420] sm:$0xff]
    %v3211 = vld [vmem:[#allocation8 + $0x428] sm:$0xff]
    %v3212 = vld [vmem:[#allocation8 + $0x430] sm:$0xff]
    %v3213 = vld [vmem:[#allocation8 + $0x438] sm:$0xff]
    %v3214 = vld [vmem:[#allocation8 + $0x440] sm:$0xff]
    %v3215 = vld [vmem:[#allocation8 + $0x448] sm:$0xff]
    %v3216 = vld [vmem:[#allocation8 + $0x450] sm:$0xff]
    %v3217 = vld [vmem:[#allocation8 + $0x458] sm:$0xff]
    %v3218 = vld [vmem:[#allocation8 + $0x460] sm:$0xff]
    %v3219 = vld [vmem:[#allocation8 + $0x468] sm:$0xff]
    %v3220 = vld [vmem:[#allocation8 + $0x470] sm:$0xff]
    %v3221 = vld [vmem:[#allocation8 + $0x478] sm:$0xff]
    %v3222 = vld [vmem:[#allocation8 + $0x480] sm:$0xff]
    %v3223 = vld [vmem:[#allocation8 + $0x488] sm:$0xff]
    %v3224 = vld [vmem:[#allocation8 + $0x490] sm:$0xff]
    %v3225 = vld [vmem:[#allocation8 + $0x498] sm:$0xff]
    %v3226 = vld [vmem:[#allocation8 + $0x4a0] sm:$0xff]
    %v3227 = vld [vmem:[#allocation8 + $0x4a8] sm:$0xff]
    %v3228 = vld [vmem:[#allocation8 + $0x4b0] sm:$0xff]
    %v3229 = vld [vmem:[#allocation8 + $0x4b8] sm:$0xff]
    %v3230 = vld [vmem:[#allocation8 + $0x4c0] sm:$0xff]
    %v3231 = vld [vmem:[#allocation8 + $0x4c8] sm:$0xff]
    %v3232 = vld [vmem:[#allocation8 + $0x4d0] sm:$0xff]
    %v3233 = vld [vmem:[#allocation8 + $0x4d8] sm:$0xff]
    %v3234 = vld [vmem:[#allocation8 + $0x4e0] sm:$0xff]
    %v3235 = vld [vmem:[#allocation8 + $0x4e8] sm:$0xff]
    %v3236 = vld [vmem:[#allocation8 + $0x4f0] sm:$0xff]
    %v3237 = vld [vmem:[#allocation8 + $0x4f8] sm:$0xff]
    %v3238 = vld [vmem:[#allocation8 + $0x500] sm:$0xff]
    %v3239 = vld [vmem:[#allocation8 + $0x508] sm:$0xff]
    %v3240 = vld [vmem:[#allocation8 + $0x510] sm:$0xff]
    %v3241 = vld [vmem:[#allocation8 + $0x518] sm:$0xff]
    %v3242 = vld [vmem:[#allocation8 + $0x520] sm:$0xff]
    %v3243 = vld [vmem:[#allocation8 + $0x528] sm:$0xff]
    %v3244 = vld [vmem:[#allocation8 + $0x530] sm:$0xff]
    %v3245 = vld [vmem:[#allocation8 + $0x538] sm:$0xff]
    %v3246 = vld [vmem:[#allocation8 + $0x540] sm:$0xff]
    %v3247 = vld [vmem:[#allocation8 + $0x548] sm:$0xff]
    %v3248 = vld [vmem:[#allocation8 + $0x550] sm:$0xff]
    %v3249 = vld [vmem:[#allocation8 + $0x558] sm:$0xff]
    %v3250 = vld [vmem:[#allocation8 + $0x560] sm:$0xff]
    %v3251 = vld [vmem:[#allocation8 + $0x568] sm:$0xff]
    %v3252 = vld [vmem:[#allocation8 + $0x570] sm:$0xff]
    %v3253 = vld [vmem:[#allocation8 + $0x578] sm:$0xff]
    %v3254 = vld [vmem:[#allocation8 + $0x580] sm:$0xff]
    %v3255 = vld [vmem:[#allocation8 + $0x588] sm:$0xff]
    %v3256 = vld [vmem:[#allocation8 + $0x590] sm:$0xff]
    %v3257 = vld [vmem:[#allocation8 + $0x598] sm:$0xff]
    %v3258 = vld [vmem:[#allocation8 + $0x5a0] sm:$0xff]
    %v3259 = vld [vmem:[#allocation8 + $0x5a8] sm:$0xff]
    %v3260 = vld [vmem:[#allocation8 + $0x5b0] sm:$0xff]
    %v3261 = vld [vmem:[#allocation8 + $0x5b8] sm:$0xff]
    %v3262 = vld [vmem:[#allocation8 + $0x5c0] sm:$0xff]
    %v3263 = vld [vmem:[#allocation8 + $0x5c8] sm:$0xff]
    %v3264 = vld [vmem:[#allocation8 + $0x5d0] sm:$0xff]
    %v3265 = vld [vmem:[#allocation8 + $0x5d8] sm:$0xff]
    %v3266 = vld [vmem:[#allocation8 + $0x5e0] sm:$0xff]
    %v3267 = vld [vmem:[#allocation8 + $0x5e8] sm:$0xff]
    %v3268 = vld [vmem:[#allocation8 + $0x5f0] sm:$0xff]
    %v3269 = vld [vmem:[#allocation8 + $0x5f8] sm:$0xff]
    %v3270 = vld [vmem:[#allocation8 + $0x600] sm:$0xff]
    %v3271 = vld [vmem:[#allocation8 + $0x608] sm:$0xff]
    %v3272 = vld [vmem:[#allocation8 + $0x610] sm:$0xff]
    %v3273 = vld [vmem:[#allocation8 + $0x618] sm:$0xff]
    %v3274 = vld [vmem:[#allocation8 + $0x620] sm:$0xff]
    %v3275 = vld [vmem:[#allocation8 + $0x628] sm:$0xff]
    %v3276 = vld [vmem:[#allocation8 + $0x630] sm:$0xff]
    %v3277 = vld [vmem:[#allocation8 + $0x638] sm:$0xff]
    %v3278 = vld [vmem:[#allocation8 + $0x640] sm:$0xff]
    %v3279 = vld [vmem:[#allocation8 + $0x648] sm:$0xff]
    %v3280 = vld [vmem:[#allocation8 + $0x650] sm:$0xff]
    %v3281 = vld [vmem:[#allocation8 + $0x658] sm:$0xff]
    %v3282 = vld [vmem:[#allocation8 + $0x660] sm:$0xff]
    %v3283 = vld [vmem:[#allocation8 + $0x668] sm:$0xff]
    %v3284 = vld [vmem:[#allocation8 + $0x670] sm:$0xff]
    %v3285 = vld [vmem:[#allocation8 + $0x678] sm:$0xff]
    %v3286 = vld [vmem:[#allocation8 + $0x680] sm:$0xff]
    %v3287 = vld [vmem:[#allocation8 + $0x688] sm:$0xff]
    %v3288 = vld [vmem:[#allocation8 + $0x690] sm:$0xff]
    %v3289 = vld [vmem:[#allocation8 + $0x698] sm:$0xff]
    %v3290 = vld [vmem:[#allocation8 + $0x6a0] sm:$0xff]
    %v3291 = vld [vmem:[#allocation8 + $0x6a8] sm:$0xff]
    %v3292 = vld [vmem:[#allocation8 + $0x6b0] sm:$0xff]
    %v3293 = vld [vmem:[#allocation8 + $0x6b8] sm:$0xff]
    %v3294 = vld [vmem:[#allocation8 + $0x6c0] sm:$0xff]
    %v3295 = vld [vmem:[#allocation8 + $0x6c8] sm:$0xff]
    %v3296 = vld [vmem:[#allocation8 + $0x6d0] sm:$0xff]
    %v3297 = vld [vmem:[#allocation8 + $0x6d8] sm:$0xff]
    %v3298 = vld [vmem:[#allocation8 + $0x6e0] sm:$0xff]
    %v3299 = vld [vmem:[#allocation8 + $0x6e8] sm:$0xff]
    %v3300 = vld [vmem:[#allocation8 + $0x6f0] sm:$0xff]
    %v3301 = vld [vmem:[#allocation8 + $0x6f8] sm:$0xff]
    %v3302 = vld [vmem:[#allocation8 + $0x700] sm:$0xff]
    %v3303 = vld [vmem:[#allocation8 + $0x708] sm:$0xff]
    %v3304 = vld [vmem:[#allocation8 + $0x710] sm:$0xff]
    %v3305 = vld [vmem:[#allocation8 + $0x718] sm:$0xff]
    %v3306 = vld [vmem:[#allocation8 + $0x720] sm:$0xff]
    %v3307 = vld [vmem:[#allocation8 + $0x728] sm:$0xff]
    %v3308 = vld [vmem:[#allocation8 + $0x730] sm:$0xff]
    %v3309 = vld [vmem:[#allocation8 + $0x738] sm:$0xff]
    %v3310 = vld [vmem:[#allocation8 + $0x740] sm:$0xff]
    %v3311 = vld [vmem:[#allocation8 + $0x748] sm:$0xff]
    %v3312 = vld [vmem:[#allocation8 + $0x750] sm:$0xff]
    %v3313 = vld [vmem:[#allocation8 + $0x758] sm:$0xff]
    %v3314 = vld [vmem:[#allocation8 + $0x760] sm:$0xff]
    %v3315 = vld [vmem:[#allocation8 + $0x768] sm:$0xff]
    %v3316 = vld [vmem:[#allocation8 + $0x770] sm:$0xff]
    %v3317 = vld [vmem:[#allocation8 + $0x778] sm:$0xff]
    %v3318 = vld [vmem:[#allocation8 + $0x780] sm:$0xff]
    %v3319 = vld [vmem:[#allocation8 + $0x788] sm:$0xff]
    %v3320 = vld [vmem:[#allocation8 + $0x790] sm:$0xff]
    %v3321 = vld [vmem:[#allocation8 + $0x798] sm:$0xff]
    %v3322 = vld [vmem:[#allocation8 + $0x7a0] sm:$0xff]
    %v3323 = vld [vmem:[#allocation8 + $0x7a8] sm:$0xff]
    %v3324 = vld [vmem:[#allocation8 + $0x7b0] sm:$0xff]
    %v3325 = vld [vmem:[#allocation8 + $0x7b8] sm:$0xff]
    %v3326 = vld [vmem:[#allocation8 + $0x7c0] sm:$0xff]
    %v3327 = vld [vmem:[#allocation8 + $0x7c8] sm:$0xff]
    %v3328 = vld [vmem:[#allocation8 + $0x7d0] sm:$0xff]
    %v3329 = vld [vmem:[#allocation8 + $0x7d8] sm:$0xff]
    %v3330 = vld [vmem:[#allocation8 + $0x7e0] sm:$0xff]
    %v3331 = vld [vmem:[#allocation8 + $0x7e8] sm:$0xff]
    %v3332 = vld [vmem:[#allocation8 + $0x7f0] sm:$0xff]
    %v3333 = vld [vmem:[#allocation8 + $0x7f8] sm:$0xff]
    %v3334 = vld [vmem:[#allocation8 + $0x800] sm:$0xff]
    %v3335 = vld [vmem:[#allocation8 + $0x808] sm:$0xff]
    %v3336 = vld [vmem:[#allocation8 + $0x810] sm:$0xff]
    %v3337 = vld [vmem:[#allocation8 + $0x818] sm:$0xff]
    %v3338 = vld [vmem:[#allocation8 + $0x820] sm:$0xff]
    %v3339 = vld [vmem:[#allocation8 + $0x828] sm:$0xff]
    %v3340 = vld [vmem:[#allocation8 + $0x830] sm:$0xff]
    %v3341 = vld [vmem:[#allocation8 + $0x838] sm:$0xff]
    %v3342 = vld [vmem:[#allocation8 + $0x840] sm:$0xff]
    %v3343 = vld [vmem:[#allocation8 + $0x848] sm:$0xff]
    %v3344 = vld [vmem:[#allocation8 + $0x850] sm:$0xff]
    %v3345 = vld [vmem:[#allocation8 + $0x858] sm:$0xff]
    %v3346 = vld [vmem:[#allocation8 + $0x860] sm:$0xff]
    %v3347 = vld [vmem:[#allocation8 + $0x868] sm:$0xff]
    %v3348 = vld [vmem:[#allocation8 + $0x870] sm:$0xff]
    %v3349 = vld [vmem:[#allocation8 + $0x878] sm:$0xff]
    %v3350 = vld [vmem:[#allocation8 + $0x880] sm:$0xff]
    %v3351 = vld [vmem:[#allocation8 + $0x888] sm:$0xff]
    %v3352 = vld [vmem:[#allocation8 + $0x890] sm:$0xff]
    %v3353 = vld [vmem:[#allocation8 + $0x898] sm:$0xff]
    %v3354 = vld [vmem:[#allocation8 + $0x8a0] sm:$0xff]
    %v3355 = vld [vmem:[#allocation8 + $0x8a8] sm:$0xff]
    %v3356 = vld [vmem:[#allocation8 + $0x8b0] sm:$0xff]
    %v3357 = vld [vmem:[#allocation8 + $0x8b8] sm:$0xff]
    %v3358 = vld [vmem:[#allocation8 + $0x8c0] sm:$0xff]
    %v3359 = vld [vmem:[#allocation8 + $0x8c8] sm:$0xff]
    %v3360 = vld [vmem:[#allocation8 + $0x8d0] sm:$0xff]
    %v3361 = vld [vmem:[#allocation8 + $0x8d8] sm:$0xff]
    %v3362 = vld [vmem:[#allocation8 + $0x8e0] sm:$0xff]
    %v3363 = vld [vmem:[#allocation8 + $0x8e8] sm:$0xff]
    %v3364 = vld [vmem:[#allocation8 + $0x8f0] sm:$0xff]
    %v3365 = vld [vmem:[#allocation8 + $0x8f8] sm:$0xff]
    %v3366 = vld [vmem:[#allocation8 + $0x900] sm:$0xff]
    %v3367 = vld [vmem:[#allocation8 + $0x908] sm:$0xff]
    %v3368 = vld [vmem:[#allocation8 + $0x910] sm:$0xff]
    %v3369 = vld [vmem:[#allocation8 + $0x918] sm:$0xff]
    %v3370 = vld [vmem:[#allocation8 + $0x920] sm:$0xff]
    %v3371 = vld [vmem:[#allocation8 + $0x928] sm:$0xff]
    %v3372 = vld [vmem:[#allocation8 + $0x930] sm:$0xff]
    %v3373 = vld [vmem:[#allocation8 + $0x938] sm:$0xff]
    %v3374 = vld [vmem:[#allocation8 + $0x940] sm:$0xff]
    %v3375 = vld [vmem:[#allocation8 + $0x948] sm:$0xff]
    %v3376 = vld [vmem:[#allocation8 + $0x950] sm:$0xff]
    %v3377 = vld [vmem:[#allocation8 + $0x958] sm:$0xff]
    %v3378 = vld [vmem:[#allocation8 + $0x960] sm:$0xff]
    %v3379 = vld [vmem:[#allocation8 + $0x968] sm:$0xff]
    %v3380 = vld [vmem:[#allocation8 + $0x970] sm:$0xff]
    %v3381 = vld [vmem:[#allocation8 + $0x978] sm:$0xff]
    %v3382 = vld [vmem:[#allocation8 + $0x980] sm:$0xff]
    %v3383 = vld [vmem:[#allocation8 + $0x988] sm:$0xff]
    %v3384 = vld [vmem:[#allocation8 + $0x990] sm:$0xff]
    %v3385 = vld [vmem:[#allocation8 + $0x998] sm:$0xff]
    %v3386 = vld [vmem:[#allocation8 + $0x9a0] sm:$0xff]
    %v3387 = vld [vmem:[#allocation8 + $0x9a8] sm:$0xff]
    %v3388 = vld [vmem:[#allocation8 + $0x9b0] sm:$0xff]
    %v3389 = vld [vmem:[#allocation8 + $0x9b8] sm:$0xff]
    %v3390 = vld [vmem:[#allocation8 + $0x9c0] sm:$0xff]
    %v3391 = vld [vmem:[#allocation8 + $0x9c8] sm:$0xff]
    %v3392 = vld [vmem:[#allocation8 + $0x9d0] sm:$0xff]
    %v3393 = vld [vmem:[#allocation8 + $0x9d8] sm:$0xff]
    %v3394 = vld [vmem:[#allocation8 + $0x9e0] sm:$0xff]
    %v3395 = vld [vmem:[#allocation8 + $0x9e8] sm:$0xff]
    %v3396 = vld [vmem:[#allocation8 + $0x9f0] sm:$0xff]
    %v3397 = vld [vmem:[#allocation8 + $0x9f8] sm:$0xff]
    %v3398 = vld [vmem:[#allocation8 + $0xa00] sm:$0xff]
    %v3399 = vld [vmem:[#allocation8 + $0xa08] sm:$0xff]
    %v3400 = vld [vmem:[#allocation8 + $0xa10] sm:$0xff]
    %v3401 = vld [vmem:[#allocation8 + $0xa18] sm:$0xff]
    %v3402 = vld [vmem:[#allocation8 + $0xa20] sm:$0xff]
    %v3403 = vld [vmem:[#allocation8 + $0xa28] sm:$0xff]
    %v3404 = vld [vmem:[#allocation8 + $0xa30] sm:$0xff]
    %v3405 = vld [vmem:[#allocation8 + $0xa38] sm:$0xff]
    %v3406 = vld [vmem:[#allocation8 + $0xa40] sm:$0xff]
    %v3407 = vld [vmem:[#allocation8 + $0xa48] sm:$0xff]
    %v3408 = vld [vmem:[#allocation8 + $0xa50] sm:$0xff]
    %v3409 = vld [vmem:[#allocation8 + $0xa58] sm:$0xff]
    %v3410 = vld [vmem:[#allocation8 + $0xa60] sm:$0xff]
    %v3411 = vld [vmem:[#allocation8 + $0xa68] sm:$0xff]
    %v3412 = vld [vmem:[#allocation8 + $0xa70] sm:$0xff]
    %v3413 = vld [vmem:[#allocation8 + $0xa78] sm:$0xff]
    %v3414 = vld [vmem:[#allocation8 + $0xa80] sm:$0xff]
    %v3415 = vld [vmem:[#allocation8 + $0xa88] sm:$0xff]
    %v3416 = vld [vmem:[#allocation8 + $0xa90] sm:$0xff]
    %v3417 = vld [vmem:[#allocation8 + $0xa98] sm:$0xff]
    %v3418 = vld [vmem:[#allocation8 + $0xaa0] sm:$0xff]
    %v3419 = vld [vmem:[#allocation8 + $0xaa8] sm:$0xff]
    %v3420 = vld [vmem:[#allocation8 + $0xab0] sm:$0xff]
    %v3421 = vld [vmem:[#allocation8 + $0xab8] sm:$0xff]
    %v3422 = vld [vmem:[#allocation8 + $0xac0] sm:$0xff]
    %v3423 = vld [vmem:[#allocation8 + $0xac8] sm:$0xff]
    %v3424 = vld [vmem:[#allocation8 + $0xad0] sm:$0xff]
    %v3425 = vld [vmem:[#allocation8 + $0xad8] sm:$0xff]
    %v3426 = vld [vmem:[#allocation8 + $0xae0] sm:$0xff]
    %v3427 = vld [vmem:[#allocation8 + $0xae8] sm:$0xff]
    %v3428 = vld [vmem:[#allocation8 + $0xaf0] sm:$0xff]
    %v3429 = vld [vmem:[#allocation8 + $0xaf8] sm:$0xff]
    %v3430 = vld [vmem:[#allocation8 + $0xb00] sm:$0xff]
    %v3431 = vld [vmem:[#allocation8 + $0xb08] sm:$0xff]
    %v3432 = vld [vmem:[#allocation8 + $0xb10] sm:$0xff]
    %v3433 = vld [vmem:[#allocation8 + $0xb18] sm:$0xff]
    %v3434 = vld [vmem:[#allocation8 + $0xb20] sm:$0xff]
    %v3435 = vld [vmem:[#allocation8 + $0xb28] sm:$0xff]
    %v3436 = vld [vmem:[#allocation8 + $0xb30] sm:$0xff]
    %v3437 = vld [vmem:[#allocation8 + $0xb38] sm:$0xff]
    %v3438 = vld [vmem:[#allocation8 + $0xb40] sm:$0xff]
    %v3439 = vld [vmem:[#allocation8 + $0xb48] sm:$0xff]
    %v3440 = vld [vmem:[#allocation8 + $0xb50] sm:$0xff]
    %v3441 = vld [vmem:[#allocation8 + $0xb58] sm:$0xff]
    %v3442 = vld [vmem:[#allocation8 + $0xb60] sm:$0xff]
    %v3443 = vld [vmem:[#allocation8 + $0xb68] sm:$0xff]
    %v3444 = vld [vmem:[#allocation8 + $0xb70] sm:$0xff]
    %v3445 = vld [vmem:[#allocation8 + $0xb78] sm:$0xff]
    %v3446 = vld [vmem:[#allocation8 + $0xb80] sm:$0xff]
    %v3447 = vld [vmem:[#allocation8 + $0xb88] sm:$0xff]
    %v3448 = vld [vmem:[#allocation8 + $0xb90] sm:$0xff]
    %v3449 = vld [vmem:[#allocation8 + $0xb98] sm:$0xff]
    %v3450 = vld [vmem:[#allocation8 + $0xba0] sm:$0xff]
    %v3451 = vld [vmem:[#allocation8 + $0xba8] sm:$0xff]
    %v3452 = vld [vmem:[#allocation8 + $0xbb0] sm:$0xff]
    %v3453 = vld [vmem:[#allocation8 + $0xbb8] sm:$0xff]
    %v3454 = vld [vmem:[#allocation8 + $0xbc0] sm:$0xff]
    %v3455 = vld [vmem:[#allocation8 + $0xbc8] sm:$0xff]
    %v3456 = vld [vmem:[#allocation8 + $0xbd0] sm:$0xff]
    %v3457 = vld [vmem:[#allocation8 + $0xbd8] sm:$0xff]
    %v3458 = vld [vmem:[#allocation8 + $0xbe0] sm:$0xff]
    %v3459 = vld [vmem:[#allocation8 + $0xbe8] sm:$0xff]
    %v3460 = vld [vmem:[#allocation8 + $0xbf0] sm:$0xff]
    %v3461 = vld [vmem:[#allocation8 + $0xbf8] sm:$0xff]
    %v3462 = vld [vmem:[#allocation10] sm:$0x3f]
    %v3463 = vunpack.c.l.bf16 %v3462
    %v3464 = vunpack.c.h.bf16 %v3462
    %v3467 = vperm.slane %v3463, 0
    %v3468 = vperm.slane %v3463, 2
    %v3469 = vperm.slane %v3463, 4
    %v3470 = vperm.slane %v3463, 6
    %v3471 = vperm.slane %v3464, 0
    %v3472 = vperm.slane %v3464, 2
    %v3479 = vperm.slane %v3467, 0
    %v3480 = vperm.slane %v3468, 0
    %v3481 = vperm.slane %v3469, 0
    %v3482 = vperm.slane %v3470, 0
    %v3483 = vperm.slane %v3471, 0
    %v3484 = vperm.slane %v3472, 0
    %v3869 = vunpack.c.l.b16 %v3078
    %v3870 = vunpack.c.h.b16 %v3078
    %v3871 = vunpack.c.l.b16 %v3079
    %v3872 = vunpack.c.h.b16 %v3079
    %v3873 = vunpack.c.l.b16 %v3080
    %v3874 = vunpack.c.h.b16 %v3080
    %v3875 = vunpack.c.l.b16 %v3081
    %v3876 = vunpack.c.h.b16 %v3081
    %v3877 = vunpack.c.l.b16 %v3082
    %v3878 = vunpack.c.h.b16 %v3082
    %v3879 = vunpack.c.l.b16 %v3083
    %v3880 = vunpack.c.h.b16 %v3083
    %v3881 = vunpack.c.l.b16 %v3084
    %v3882 = vunpack.c.h.b16 %v3084
    %v3883 = vunpack.c.l.b16 %v3085
    %v3884 = vunpack.c.h.b16 %v3085
    %v3885 = vunpack.c.l.b16 %v3086
    %v3886 = vunpack.c.h.b16 %v3086
    %v3887 = vunpack.c.l.b16 %v3087
    %v3888 = vunpack.c.h.b16 %v3087
    %v3889 = vunpack.c.l.b16 %v3088
    %v3890 = vunpack.c.h.b16 %v3088
    %v3891 = vunpack.c.l.b16 %v3089
    %v3892 = vunpack.c.h.b16 %v3089
    %v3893 = vunpack.c.l.b16 %v3090
    %v3894 = vunpack.c.h.b16 %v3090
    %v3895 = vunpack.c.l.b16 %v3091
    %v3896 = vunpack.c.h.b16 %v3091
    %v3897 = vunpack.c.l.b16 %v3092
    %v3898 = vunpack.c.h.b16 %v3092
    %v3899 = vunpack.c.l.b16 %v3093
    %v3900 = vunpack.c.h.b16 %v3093
    %v3901 = vunpack.c.l.b16 %v3094
    %v3902 = vunpack.c.h.b16 %v3094
    %v3903 = vunpack.c.l.b16 %v3095
    %v3904 = vunpack.c.h.b16 %v3095
    %v3905 = vunpack.c.l.b16 %v3096
    %v3906 = vunpack.c.h.b16 %v3096
    %v3907 = vunpack.c.l.b16 %v3097
    %v3908 = vunpack.c.h.b16 %v3097
    %v3909 = vunpack.c.l.b16 %v3098
    %v3910 = vunpack.c.h.b16 %v3098
    %v3911 = vunpack.c.l.b16 %v3099
    %v3912 = vunpack.c.h.b16 %v3099
    %v3913 = vunpack.c.l.b16 %v3100
    %v3914 = vunpack.c.h.b16 %v3100
    %v3915 = vunpack.c.l.b16 %v3101
    %v3916 = vunpack.c.h.b16 %v3101
    %v3917 = vunpack.c.l.b16 %v3102
    %v3918 = vunpack.c.h.b16 %v3102
    %v3919 = vunpack.c.l.b16 %v3103
    %v3920 = vunpack.c.h.b16 %v3103
    %v3921 = vunpack.c.l.b16 %v3104
    %v3922 = vunpack.c.h.b16 %v3104
    %v3923 = vunpack.c.l.b16 %v3105
    %v3924 = vunpack.c.h.b16 %v3105
    %v3925 = vunpack.c.l.b16 %v3106
    %v3926 = vunpack.c.h.b16 %v3106
    %v3927 = vunpack.c.l.b16 %v3107
    %v3928 = vunpack.c.h.b16 %v3107
    %v3929 = vunpack.c.l.b16 %v3108
    %v3930 = vunpack.c.h.b16 %v3108
    %v3931 = vunpack.c.l.b16 %v3109
    %v3932 = vunpack.c.h.b16 %v3109
    %v3933 = vunpack.c.l.b16 %v3110
    %v3934 = vunpack.c.h.b16 %v3110
    %v3935 = vunpack.c.l.b16 %v3111
    %v3936 = vunpack.c.h.b16 %v3111
    %v3937 = vunpack.c.l.b16 %v3112
    %v3938 = vunpack.c.h.b16 %v3112
    %v3939 = vunpack.c.l.b16 %v3113
    %v3940 = vunpack.c.h.b16 %v3113
    %v3941 = vunpack.c.l.b16 %v3114
    %v3942 = vunpack.c.h.b16 %v3114
    %v3943 = vunpack.c.l.b16 %v3115
    %v3944 = vunpack.c.h.b16 %v3115
    %v3945 = vunpack.c.l.b16 %v3116
    %v3946 = vunpack.c.h.b16 %v3116
    %v3947 = vunpack.c.l.b16 %v3117
    %v3948 = vunpack.c.h.b16 %v3117
    %v3949 = vunpack.c.l.b16 %v3118
    %v3950 = vunpack.c.h.b16 %v3118
    %v3951 = vunpack.c.l.b16 %v3119
    %v3952 = vunpack.c.h.b16 %v3119
    %v3953 = vunpack.c.l.b16 %v3120
    %v3954 = vunpack.c.h.b16 %v3120
    %v3955 = vunpack.c.l.b16 %v3121
    %v3956 = vunpack.c.h.b16 %v3121
    %v3957 = vunpack.c.l.b16 %v3122
    %v3958 = vunpack.c.h.b16 %v3122
    %v3959 = vunpack.c.l.b16 %v3123
    %v3960 = vunpack.c.h.b16 %v3123
    %v3961 = vunpack.c.l.b16 %v3124
    %v3962 = vunpack.c.h.b16 %v3124
    %v3963 = vunpack.c.l.b16 %v3125
    %v3964 = vunpack.c.h.b16 %v3125
    %v3965 = vunpack.c.l.b16 %v3126
    %v3966 = vunpack.c.h.b16 %v3126
    %v3967 = vunpack.c.l.b16 %v3127
    %v3968 = vunpack.c.h.b16 %v3127
    %v3969 = vunpack.c.l.b16 %v3128
    %v3970 = vunpack.c.h.b16 %v3128
    %v3971 = vunpack.c.l.b16 %v3129
    %v3972 = vunpack.c.h.b16 %v3129
    %v3973 = vunpack.c.l.b16 %v3130
    %v3974 = vunpack.c.h.b16 %v3130
    %v3975 = vunpack.c.l.b16 %v3131
    %v3976 = vunpack.c.h.b16 %v3131
    %v3977 = vunpack.c.l.b16 %v3132
    %v3978 = vunpack.c.h.b16 %v3132
    %v3979 = vunpack.c.l.b16 %v3133
    %v3980 = vunpack.c.h.b16 %v3133
    %v3981 = vunpack.c.l.b16 %v3134
    %v3982 = vunpack.c.h.b16 %v3134
    %v3983 = vunpack.c.l.b16 %v3135
    %v3984 = vunpack.c.h.b16 %v3135
    %v3985 = vunpack.c.l.b16 %v3136
    %v3986 = vunpack.c.h.b16 %v3136
    %v3987 = vunpack.c.l.b16 %v3137
    %v3988 = vunpack.c.h.b16 %v3137
    %v3989 = vunpack.c.l.b16 %v3138
    %v3990 = vunpack.c.h.b16 %v3138
    %v3991 = vunpack.c.l.b16 %v3139
    %v3992 = vunpack.c.h.b16 %v3139
    %v3993 = vunpack.c.l.b16 %v3140
    %v3994 = vunpack.c.h.b16 %v3140
    %v3995 = vunpack.c.l.b16 %v3141
    %v3996 = vunpack.c.h.b16 %v3141
    %v3997 = vunpack.c.l.b16 %v3142
    %v3998 = vunpack.c.h.b16 %v3142
    %v3999 = vunpack.c.l.b16 %v3143
    %v4000 = vunpack.c.h.b16 %v3143
    %v4001 = vunpack.c.l.b16 %v3144
    %v4002 = vunpack.c.h.b16 %v3144
    %v4003 = vunpack.c.l.b16 %v3145
    %v4004 = vunpack.c.h.b16 %v3145
    %v4005 = vunpack.c.l.b16 %v3146
    %v4006 = vunpack.c.h.b16 %v3146
    %v4007 = vunpack.c.l.b16 %v3147
    %v4008 = vunpack.c.h.b16 %v3147
    %v4009 = vunpack.c.l.b16 %v3148
    %v4010 = vunpack.c.h.b16 %v3148
    %v4011 = vunpack.c.l.b16 %v3149
    %v4012 = vunpack.c.h.b16 %v3149
    %v4013 = vunpack.c.l.b16 %v3150
    %v4014 = vunpack.c.h.b16 %v3150
    %v4015 = vunpack.c.l.b16 %v3151
    %v4016 = vunpack.c.h.b16 %v3151
    %v4017 = vunpack.c.l.b16 %v3152
    %v4018 = vunpack.c.h.b16 %v3152
    %v4019 = vunpack.c.l.b16 %v3153
    %v4020 = vunpack.c.h.b16 %v3153
    %v4021 = vunpack.c.l.b16 %v3154
    %v4022 = vunpack.c.h.b16 %v3154
    %v4023 = vunpack.c.l.b16 %v3155
    %v4024 = vunpack.c.h.b16 %v3155
    %v4025 = vunpack.c.l.b16 %v3156
    %v4026 = vunpack.c.h.b16 %v3156
    %v4027 = vunpack.c.l.b16 %v3157
    %v4028 = vunpack.c.h.b16 %v3157
    %v4029 = vunpack.c.l.b16 %v3158
    %v4030 = vunpack.c.h.b16 %v3158
    %v4031 = vunpack.c.l.b16 %v3159
    %v4032 = vunpack.c.h.b16 %v3159
    %v4033 = vunpack.c.l.b16 %v3160
    %v4034 = vunpack.c.h.b16 %v3160
    %v4035 = vunpack.c.l.b16 %v3161
    %v4036 = vunpack.c.h.b16 %v3161
    %v4037 = vunpack.c.l.b16 %v3162
    %v4038 = vunpack.c.h.b16 %v3162
    %v4039 = vunpack.c.l.b16 %v3163
    %v4040 = vunpack.c.h.b16 %v3163
    %v4041 = vunpack.c.l.b16 %v3164
    %v4042 = vunpack.c.h.b16 %v3164
    %v4043 = vunpack.c.l.b16 %v3165
    %v4044 = vunpack.c.h.b16 %v3165
    %v4045 = vunpack.c.l.b16 %v3166
    %v4046 = vunpack.c.h.b16 %v3166
    %v4047 = vunpack.c.l.b16 %v3167
    %v4048 = vunpack.c.h.b16 %v3167
    %v4049 = vunpack.c.l.b16 %v3168
    %v4050 = vunpack.c.h.b16 %v3168
    %v4051 = vunpack.c.l.b16 %v3169
    %v4052 = vunpack.c.h.b16 %v3169
    %v4053 = vunpack.c.l.b16 %v3170
    %v4054 = vunpack.c.h.b16 %v3170
    %v4055 = vunpack.c.l.b16 %v3171
    %v4056 = vunpack.c.h.b16 %v3171
    %v4057 = vunpack.c.l.b16 %v3172
    %v4058 = vunpack.c.h.b16 %v3172
    %v4059 = vunpack.c.l.b16 %v3173
    %v4060 = vunpack.c.h.b16 %v3173
    %v4061 = vunpack.c.l.b16 %v3174
    %v4062 = vunpack.c.h.b16 %v3174
    %v4063 = vunpack.c.l.b16 %v3175
    %v4064 = vunpack.c.h.b16 %v3175
    %v4065 = vunpack.c.l.b16 %v3176
    %v4066 = vunpack.c.h.b16 %v3176
    %v4067 = vunpack.c.l.b16 %v3177
    %v4068 = vunpack.c.h.b16 %v3177
    %v4069 = vunpack.c.l.b16 %v3178
    %v4070 = vunpack.c.h.b16 %v3178
    %v4071 = vunpack.c.l.b16 %v3179
    %v4072 = vunpack.c.h.b16 %v3179
    %v4073 = vunpack.c.l.b16 %v3180
    %v4074 = vunpack.c.h.b16 %v3180
    %v4075 = vunpack.c.l.b16 %v3181
    %v4076 = vunpack.c.h.b16 %v3181
    %v4077 = vunpack.c.l.b16 %v3182
    %v4078 = vunpack.c.h.b16 %v3182
    %v4079 = vunpack.c.l.b16 %v3183
    %v4080 = vunpack.c.h.b16 %v3183
    %v4081 = vunpack.c.l.b16 %v3184
    %v4082 = vunpack.c.h.b16 %v3184
    %v4083 = vunpack.c.l.b16 %v3185
    %v4084 = vunpack.c.h.b16 %v3185
    %v4085 = vunpack.c.l.b16 %v3186
    %v4086 = vunpack.c.h.b16 %v3186
    %v4087 = vunpack.c.l.b16 %v3187
    %v4088 = vunpack.c.h.b16 %v3187
    %v4089 = vunpack.c.l.b16 %v3188
    %v4090 = vunpack.c.h.b16 %v3188
    %v4091 = vunpack.c.l.b16 %v3189
    %v4092 = vunpack.c.h.b16 %v3189
    %v4093 = vunpack.c.l.b16 %v3190
    %v4094 = vunpack.c.h.b16 %v3190
    %v4095 = vunpack.c.l.b16 %v3191
    %v4096 = vunpack.c.h.b16 %v3191
    %v4097 = vunpack.c.l.b16 %v3192
    %v4098 = vunpack.c.h.b16 %v3192
    %v4099 = vunpack.c.l.b16 %v3193
    %v4100 = vunpack.c.h.b16 %v3193
    %v4101 = vunpack.c.l.b16 %v3194
    %v4102 = vunpack.c.h.b16 %v3194
    %v4103 = vunpack.c.l.b16 %v3195
    %v4104 = vunpack.c.h.b16 %v3195
    %v4105 = vunpack.c.l.b16 %v3196
    %v4106 = vunpack.c.h.b16 %v3196
    %v4107 = vunpack.c.l.b16 %v3197
    %v4108 = vunpack.c.h.b16 %v3197
    %v4109 = vunpack.c.l.b16 %v3198
    %v4110 = vunpack.c.h.b16 %v3198
    %v4111 = vunpack.c.l.b16 %v3199
    %v4112 = vunpack.c.h.b16 %v3199
    %v4113 = vunpack.c.l.b16 %v3200
    %v4114 = vunpack.c.h.b16 %v3200
    %v4115 = vunpack.c.l.b16 %v3201
    %v4116 = vunpack.c.h.b16 %v3201
    %v4117 = vunpack.c.l.b16 %v3202
    %v4118 = vunpack.c.h.b16 %v3202
    %v4119 = vunpack.c.l.b16 %v3203
    %v4120 = vunpack.c.h.b16 %v3203
    %v4121 = vunpack.c.l.b16 %v3204
    %v4122 = vunpack.c.h.b16 %v3204
    %v4123 = vunpack.c.l.b16 %v3205
    %v4124 = vunpack.c.h.b16 %v3205
    %v4125 = vunpack.c.l.b16 %v3206
    %v4126 = vunpack.c.h.b16 %v3206
    %v4127 = vunpack.c.l.b16 %v3207
    %v4128 = vunpack.c.h.b16 %v3207
    %v4129 = vunpack.c.l.b16 %v3208
    %v4130 = vunpack.c.h.b16 %v3208
    %v4131 = vunpack.c.l.b16 %v3209
    %v4132 = vunpack.c.h.b16 %v3209
    %v4133 = vunpack.c.l.b16 %v3210
    %v4134 = vunpack.c.h.b16 %v3210
    %v4135 = vunpack.c.l.b16 %v3211
    %v4136 = vunpack.c.h.b16 %v3211
    %v4137 = vunpack.c.l.b16 %v3212
    %v4138 = vunpack.c.h.b16 %v3212
    %v4139 = vunpack.c.l.b16 %v3213
    %v4140 = vunpack.c.h.b16 %v3213
    %v4141 = vunpack.c.l.b16 %v3214
    %v4142 = vunpack.c.h.b16 %v3214
    %v4143 = vunpack.c.l.b16 %v3215
    %v4144 = vunpack.c.h.b16 %v3215
    %v4145 = vunpack.c.l.b16 %v3216
    %v4146 = vunpack.c.h.b16 %v3216
    %v4147 = vunpack.c.l.b16 %v3217
    %v4148 = vunpack.c.h.b16 %v3217
    %v4149 = vunpack.c.l.b16 %v3218
    %v4150 = vunpack.c.h.b16 %v3218
    %v4151 = vunpack.c.l.b16 %v3219
    %v4152 = vunpack.c.h.b16 %v3219
    %v4153 = vunpack.c.l.b16 %v3220
    %v4154 = vunpack.c.h.b16 %v3220
    %v4155 = vunpack.c.l.b16 %v3221
    %v4156 = vunpack.c.h.b16 %v3221
    %v4157 = vunpack.c.l.b16 %v3222
    %v4158 = vunpack.c.h.b16 %v3222
    %v4159 = vunpack.c.l.b16 %v3223
    %v4160 = vunpack.c.h.b16 %v3223
    %v4161 = vunpack.c.l.b16 %v3224
    %v4162 = vunpack.c.h.b16 %v3224
    %v4163 = vunpack.c.l.b16 %v3225
    %v4164 = vunpack.c.h.b16 %v3225
    %v4165 = vunpack.c.l.b16 %v3226
    %v4166 = vunpack.c.h.b16 %v3226
    %v4167 = vunpack.c.l.b16 %v3227
    %v4168 = vunpack.c.h.b16 %v3227
    %v4169 = vunpack.c.l.b16 %v3228
    %v4170 = vunpack.c.h.b16 %v3228
    %v4171 = vunpack.c.l.b16 %v3229
    %v4172 = vunpack.c.h.b16 %v3229
    %v4173 = vunpack.c.l.b16 %v3230
    %v4174 = vunpack.c.h.b16 %v3230
    %v4175 = vunpack.c.l.b16 %v3231
    %v4176 = vunpack.c.h.b16 %v3231
    %v4177 = vunpack.c.l.b16 %v3232
    %v4178 = vunpack.c.h.b16 %v3232
    %v4179 = vunpack.c.l.b16 %v3233
    %v4180 = vunpack.c.h.b16 %v3233
    %v4181 = vunpack.c.l.b16 %v3234
    %v4182 = vunpack.c.h.b16 %v3234
    %v4183 = vunpack.c.l.b16 %v3235
    %v4184 = vunpack.c.h.b16 %v3235
    %v4185 = vunpack.c.l.b16 %v3236
    %v4186 = vunpack.c.h.b16 %v3236
    %v4187 = vunpack.c.l.b16 %v3237
    %v4188 = vunpack.c.h.b16 %v3237
    %v4189 = vunpack.c.l.b16 %v3238
    %v4190 = vunpack.c.h.b16 %v3238
    %v4191 = vunpack.c.l.b16 %v3239
    %v4192 = vunpack.c.h.b16 %v3239
    %v4193 = vunpack.c.l.b16 %v3240
    %v4194 = vunpack.c.h.b16 %v3240
    %v4195 = vunpack.c.l.b16 %v3241
    %v4196 = vunpack.c.h.b16 %v3241
    %v4197 = vunpack.c.l.b16 %v3242
    %v4198 = vunpack.c.h.b16 %v3242
    %v4199 = vunpack.c.l.b16 %v3243
    %v4200 = vunpack.c.h.b16 %v3243
    %v4201 = vunpack.c.l.b16 %v3244
    %v4202 = vunpack.c.h.b16 %v3244
    %v4203 = vunpack.c.l.b16 %v3245
    %v4204 = vunpack.c.h.b16 %v3245
    %v4205 = vunpack.c.l.b16 %v3246
    %v4206 = vunpack.c.h.b16 %v3246
    %v4207 = vunpack.c.l.b16 %v3247
    %v4208 = vunpack.c.h.b16 %v3247
    %v4209 = vunpack.c.l.b16 %v3248
    %v4210 = vunpack.c.h.b16 %v3248
    %v4211 = vunpack.c.l.b16 %v3249
    %v4212 = vunpack.c.h.b16 %v3249
    %v4213 = vunpack.c.l.b16 %v3250
    %v4214 = vunpack.c.h.b16 %v3250
    %v4215 = vunpack.c.l.b16 %v3251
    %v4216 = vunpack.c.h.b16 %v3251
    %v4217 = vunpack.c.l.b16 %v3252
    %v4218 = vunpack.c.h.b16 %v3252
    %v4219 = vunpack.c.l.b16 %v3253
    %v4220 = vunpack.c.h.b16 %v3253
    %v4221 = vunpack.c.l.b16 %v3254
    %v4222 = vunpack.c.h.b16 %v3254
    %v4223 = vunpack.c.l.b16 %v3255
    %v4224 = vunpack.c.h.b16 %v3255
    %v4225 = vunpack.c.l.b16 %v3256
    %v4226 = vunpack.c.h.b16 %v3256
    %v4227 = vunpack.c.l.b16 %v3257
    %v4228 = vunpack.c.h.b16 %v3257
    %v4229 = vunpack.c.l.b16 %v3258
    %v4230 = vunpack.c.h.b16 %v3258
    %v4231 = vunpack.c.l.b16 %v3259
    %v4232 = vunpack.c.h.b16 %v3259
    %v4233 = vunpack.c.l.b16 %v3260
    %v4234 = vunpack.c.h.b16 %v3260
    %v4235 = vunpack.c.l.b16 %v3261
    %v4236 = vunpack.c.h.b16 %v3261
    %v4237 = vunpack.c.l.b16 %v3262
    %v4238 = vunpack.c.h.b16 %v3262
    %v4239 = vunpack.c.l.b16 %v3263
    %v4240 = vunpack.c.h.b16 %v3263
    %v4241 = vunpack.c.l.b16 %v3264
    %v4242 = vunpack.c.h.b16 %v3264
    %v4243 = vunpack.c.l.b16 %v3265
    %v4244 = vunpack.c.h.b16 %v3265
    %v4245 = vunpack.c.l.b16 %v3266
    %v4246 = vunpack.c.h.b16 %v3266
    %v4247 = vunpack.c.l.b16 %v3267
    %v4248 = vunpack.c.h.b16 %v3267
    %v4249 = vunpack.c.l.b16 %v3268
    %v4250 = vunpack.c.h.b16 %v3268
    %v4251 = vunpack.c.l.b16 %v3269
    %v4252 = vunpack.c.h.b16 %v3269
    %v4253 = vunpack.c.l.b16 %v3270
    %v4254 = vunpack.c.h.b16 %v3270
    %v4255 = vunpack.c.l.b16 %v3271
    %v4256 = vunpack.c.h.b16 %v3271
    %v4257 = vunpack.c.l.b16 %v3272
    %v4258 = vunpack.c.h.b16 %v3272
    %v4259 = vunpack.c.l.b16 %v3273
    %v4260 = vunpack.c.h.b16 %v3273
    %v4261 = vunpack.c.l.b16 %v3274
    %v4262 = vunpack.c.h.b16 %v3274
    %v4263 = vunpack.c.l.b16 %v3275
    %v4264 = vunpack.c.h.b16 %v3275
    %v4265 = vunpack.c.l.b16 %v3276
    %v4266 = vunpack.c.h.b16 %v3276
    %v4267 = vunpack.c.l.b16 %v3277
    %v4268 = vunpack.c.h.b16 %v3277
    %v4269 = vunpack.c.l.b16 %v3278
    %v4270 = vunpack.c.h.b16 %v3278
    %v4271 = vunpack.c.l.b16 %v3279
    %v4272 = vunpack.c.h.b16 %v3279
    %v4273 = vunpack.c.l.b16 %v3280
    %v4274 = vunpack.c.h.b16 %v3280
    %v4275 = vunpack.c.l.b16 %v3281
    %v4276 = vunpack.c.h.b16 %v3281
    %v4277 = vunpack.c.l.b16 %v3282
    %v4278 = vunpack.c.h.b16 %v3282
    %v4279 = vunpack.c.l.b16 %v3283
    %v4280 = vunpack.c.h.b16 %v3283
    %v4281 = vunpack.c.l.b16 %v3284
    %v4282 = vunpack.c.h.b16 %v3284
    %v4283 = vunpack.c.l.b16 %v3285
    %v4284 = vunpack.c.h.b16 %v3285
    %v4285 = vunpack.c.l.b16 %v3286
    %v4286 = vunpack.c.h.b16 %v3286
    %v4287 = vunpack.c.l.b16 %v3287
    %v4288 = vunpack.c.h.b16 %v3287
    %v4289 = vunpack.c.l.b16 %v3288
    %v4290 = vunpack.c.h.b16 %v3288
    %v4291 = vunpack.c.l.b16 %v3289
    %v4292 = vunpack.c.h.b16 %v3289
    %v4293 = vunpack.c.l.b16 %v3290
    %v4294 = vunpack.c.h.b16 %v3290
    %v4295 = vunpack.c.l.b16 %v3291
    %v4296 = vunpack.c.h.b16 %v3291
    %v4297 = vunpack.c.l.b16 %v3292
    %v4298 = vunpack.c.h.b16 %v3292
    %v4299 = vunpack.c.l.b16 %v3293
    %v4300 = vunpack.c.h.b16 %v3293
    %v4301 = vunpack.c.l.b16 %v3294
    %v4302 = vunpack.c.h.b16 %v3294
    %v4303 = vunpack.c.l.b16 %v3295
    %v4304 = vunpack.c.h.b16 %v3295
    %v4305 = vunpack.c.l.b16 %v3296
    %v4306 = vunpack.c.h.b16 %v3296
    %v4307 = vunpack.c.l.b16 %v3297
    %v4308 = vunpack.c.h.b16 %v3297
    %v4309 = vunpack.c.l.b16 %v3298
    %v4310 = vunpack.c.h.b16 %v3298
    %v4311 = vunpack.c.l.b16 %v3299
    %v4312 = vunpack.c.h.b16 %v3299
    %v4313 = vunpack.c.l.b16 %v3300
    %v4314 = vunpack.c.h.b16 %v3300
    %v4315 = vunpack.c.l.b16 %v3301
    %v4316 = vunpack.c.h.b16 %v3301
    %v4317 = vunpack.c.l.b16 %v3302
    %v4318 = vunpack.c.h.b16 %v3302
    %v4319 = vunpack.c.l.b16 %v3303
    %v4320 = vunpack.c.h.b16 %v3303
    %v4321 = vunpack.c.l.b16 %v3304
    %v4322 = vunpack.c.h.b16 %v3304
    %v4323 = vunpack.c.l.b16 %v3305
    %v4324 = vunpack.c.h.b16 %v3305
    %v4325 = vunpack.c.l.b16 %v3306
    %v4326 = vunpack.c.h.b16 %v3306
    %v4327 = vunpack.c.l.b16 %v3307
    %v4328 = vunpack.c.h.b16 %v3307
    %v4329 = vunpack.c.l.b16 %v3308
    %v4330 = vunpack.c.h.b16 %v3308
    %v4331 = vunpack.c.l.b16 %v3309
    %v4332 = vunpack.c.h.b16 %v3309
    %v4333 = vunpack.c.l.b16 %v3310
    %v4334 = vunpack.c.h.b16 %v3310
    %v4335 = vunpack.c.l.b16 %v3311
    %v4336 = vunpack.c.h.b16 %v3311
    %v4337 = vunpack.c.l.b16 %v3312
    %v4338 = vunpack.c.h.b16 %v3312
    %v4339 = vunpack.c.l.b16 %v3313
    %v4340 = vunpack.c.h.b16 %v3313
    %v4341 = vunpack.c.l.b16 %v3314
    %v4342 = vunpack.c.h.b16 %v3314
    %v4343 = vunpack.c.l.b16 %v3315
    %v4344 = vunpack.c.h.b16 %v3315
    %v4345 = vunpack.c.l.b16 %v3316
    %v4346 = vunpack.c.h.b16 %v3316
    %v4347 = vunpack.c.l.b16 %v3317
    %v4348 = vunpack.c.h.b16 %v3317
    %v4349 = vunpack.c.l.b16 %v3318
    %v4350 = vunpack.c.h.b16 %v3318
    %v4351 = vunpack.c.l.b16 %v3319
    %v4352 = vunpack.c.h.b16 %v3319
    %v4353 = vunpack.c.l.b16 %v3320
    %v4354 = vunpack.c.h.b16 %v3320
    %v4355 = vunpack.c.l.b16 %v3321
    %v4356 = vunpack.c.h.b16 %v3321
    %v4357 = vunpack.c.l.b16 %v3322
    %v4358 = vunpack.c.h.b16 %v3322
    %v4359 = vunpack.c.l.b16 %v3323
    %v4360 = vunpack.c.h.b16 %v3323
    %v4361 = vunpack.c.l.b16 %v3324
    %v4362 = vunpack.c.h.b16 %v3324
    %v4363 = vunpack.c.l.b16 %v3325
    %v4364 = vunpack.c.h.b16 %v3325
    %v4365 = vunpack.c.l.b16 %v3326
    %v4366 = vunpack.c.h.b16 %v3326
    %v4367 = vunpack.c.l.b16 %v3327
    %v4368 = vunpack.c.h.b16 %v3327
    %v4369 = vunpack.c.l.b16 %v3328
    %v4370 = vunpack.c.h.b16 %v3328
    %v4371 = vunpack.c.l.b16 %v3329
    %v4372 = vunpack.c.h.b16 %v3329
    %v4373 = vunpack.c.l.b16 %v3330
    %v4374 = vunpack.c.h.b16 %v3330
    %v4375 = vunpack.c.l.b16 %v3331
    %v4376 = vunpack.c.h.b16 %v3331
    %v4377 = vunpack.c.l.b16 %v3332
    %v4378 = vunpack.c.h.b16 %v3332
    %v4379 = vunpack.c.l.b16 %v3333
    %v4380 = vunpack.c.h.b16 %v3333
    %v4381 = vunpack.c.l.b16 %v3334
    %v4382 = vunpack.c.h.b16 %v3334
    %v4383 = vunpack.c.l.b16 %v3335
    %v4384 = vunpack.c.h.b16 %v3335
    %v4385 = vunpack.c.l.b16 %v3336
    %v4386 = vunpack.c.h.b16 %v3336
    %v4387 = vunpack.c.l.b16 %v3337
    %v4388 = vunpack.c.h.b16 %v3337
    %v4389 = vunpack.c.l.b16 %v3338
    %v4390 = vunpack.c.h.b16 %v3338
    %v4391 = vunpack.c.l.b16 %v3339
    %v4392 = vunpack.c.h.b16 %v3339
    %v4393 = vunpack.c.l.b16 %v3340
    %v4394 = vunpack.c.h.b16 %v3340
    %v4395 = vunpack.c.l.b16 %v3341
    %v4396 = vunpack.c.h.b16 %v3341
    %v4397 = vunpack.c.l.b16 %v3342
    %v4398 = vunpack.c.h.b16 %v3342
    %v4399 = vunpack.c.l.b16 %v3343
    %v4400 = vunpack.c.h.b16 %v3343
    %v4401 = vunpack.c.l.b16 %v3344
    %v4402 = vunpack.c.h.b16 %v3344
    %v4403 = vunpack.c.l.b16 %v3345
    %v4404 = vunpack.c.h.b16 %v3345
    %v4405 = vunpack.c.l.b16 %v3346
    %v4406 = vunpack.c.h.b16 %v3346
    %v4407 = vunpack.c.l.b16 %v3347
    %v4408 = vunpack.c.h.b16 %v3347
    %v4409 = vunpack.c.l.b16 %v3348
    %v4410 = vunpack.c.h.b16 %v3348
    %v4411 = vunpack.c.l.b16 %v3349
    %v4412 = vunpack.c.h.b16 %v3349
    %v4413 = vunpack.c.l.b16 %v3350
    %v4414 = vunpack.c.h.b16 %v3350
    %v4415 = vunpack.c.l.b16 %v3351
    %v4416 = vunpack.c.h.b16 %v3351
    %v4417 = vunpack.c.l.b16 %v3352
    %v4418 = vunpack.c.h.b16 %v3352
    %v4419 = vunpack.c.l.b16 %v3353
    %v4420 = vunpack.c.h.b16 %v3353
    %v4421 = vunpack.c.l.b16 %v3354
    %v4422 = vunpack.c.h.b16 %v3354
    %v4423 = vunpack.c.l.b16 %v3355
    %v4424 = vunpack.c.h.b16 %v3355
    %v4425 = vunpack.c.l.b16 %v3356
    %v4426 = vunpack.c.h.b16 %v3356
    %v4427 = vunpack.c.l.b16 %v3357
    %v4428 = vunpack.c.h.b16 %v3357
    %v4429 = vunpack.c.l.b16 %v3358
    %v4430 = vunpack.c.h.b16 %v3358
    %v4431 = vunpack.c.l.b16 %v3359
    %v4432 = vunpack.c.h.b16 %v3359
    %v4433 = vunpack.c.l.b16 %v3360
    %v4434 = vunpack.c.h.b16 %v3360
    %v4435 = vunpack.c.l.b16 %v3361
    %v4436 = vunpack.c.h.b16 %v3361
    %v4437 = vunpack.c.l.b16 %v3362
    %v4438 = vunpack.c.h.b16 %v3362
    %v4439 = vunpack.c.l.b16 %v3363
    %v4440 = vunpack.c.h.b16 %v3363
    %v4441 = vunpack.c.l.b16 %v3364
    %v4442 = vunpack.c.h.b16 %v3364
    %v4443 = vunpack.c.l.b16 %v3365
    %v4444 = vunpack.c.h.b16 %v3365
    %v4445 = vunpack.c.l.b16 %v3366
    %v4446 = vunpack.c.h.b16 %v3366
    %v4447 = vunpack.c.l.b16 %v3367
    %v4448 = vunpack.c.h.b16 %v3367
    %v4449 = vunpack.c.l.b16 %v3368
    %v4450 = vunpack.c.h.b16 %v3368
    %v4451 = vunpack.c.l.b16 %v3369
    %v4452 = vunpack.c.h.b16 %v3369
    %v4453 = vunpack.c.l.b16 %v3370
    %v4454 = vunpack.c.h.b16 %v3370
    %v4455 = vunpack.c.l.b16 %v3371
    %v4456 = vunpack.c.h.b16 %v3371
    %v4457 = vunpack.c.l.b16 %v3372
    %v4458 = vunpack.c.h.b16 %v3372
    %v4459 = vunpack.c.l.b16 %v3373
    %v4460 = vunpack.c.h.b16 %v3373
    %v4461 = vunpack.c.l.b16 %v3374
    %v4462 = vunpack.c.h.b16 %v3374
    %v4463 = vunpack.c.l.b16 %v3375
    %v4464 = vunpack.c.h.b16 %v3375
    %v4465 = vunpack.c.l.b16 %v3376
    %v4466 = vunpack.c.h.b16 %v3376
    %v4467 = vunpack.c.l.b16 %v3377
    %v4468 = vunpack.c.h.b16 %v3377
    %v4469 = vunpack.c.l.b16 %v3378
    %v4470 = vunpack.c.h.b16 %v3378
    %v4471 = vunpack.c.l.b16 %v3379
    %v4472 = vunpack.c.h.b16 %v3379
    %v4473 = vunpack.c.l.b16 %v3380
    %v4474 = vunpack.c.h.b16 %v3380
    %v4475 = vunpack.c.l.b16 %v3381
    %v4476 = vunpack.c.h.b16 %v3381
    %v4477 = vunpack.c.l.b16 %v3382
    %v4478 = vunpack.c.h.b16 %v3382
    %v4479 = vunpack.c.l.b16 %v3383
    %v4480 = vunpack.c.h.b16 %v3383
    %v4481 = vunpack.c.l.b16 %v3384
    %v4482 = vunpack.c.h.b16 %v3384
    %v4483 = vunpack.c.l.b16 %v3385
    %v4484 = vunpack.c.h.b16 %v3385
    %v4485 = vunpack.c.l.b16 %v3386
    %v4486 = vunpack.c.h.b16 %v3386
    %v4487 = vunpack.c.l.b16 %v3387
    %v4488 = vunpack.c.h.b16 %v3387
    %v4489 = vunpack.c.l.b16 %v3388
    %v4490 = vunpack.c.h.b16 %v3388
    %v4491 = vunpack.c.l.b16 %v3389
    %v4492 = vunpack.c.h.b16 %v3389
    %v4493 = vunpack.c.l.b16 %v3390
    %v4494 = vunpack.c.h.b16 %v3390
    %v4495 = vunpack.c.l.b16 %v3391
    %v4496 = vunpack.c.h.b16 %v3391
    %v4497 = vunpack.c.l.b16 %v3392
    %v4498 = vunpack.c.h.b16 %v3392
    %v4499 = vunpack.c.l.b16 %v3393
    %v4500 = vunpack.c.h.b16 %v3393
    %v4501 = vunpack.c.l.b16 %v3394
    %v4502 = vunpack.c.h.b16 %v3394
    %v4503 = vunpack.c.l.b16 %v3395
    %v4504 = vunpack.c.h.b16 %v3395
    %v4505 = vunpack.c.l.b16 %v3396
    %v4506 = vunpack.c.h.b16 %v3396
    %v4507 = vunpack.c.l.b16 %v3397
    %v4508 = vunpack.c.h.b16 %v3397
    %v4509 = vunpack.c.l.b16 %v3398
    %v4510 = vunpack.c.h.b16 %v3398
    %v4511 = vunpack.c.l.b16 %v3399
    %v4512 = vunpack.c.h.b16 %v3399
    %v4513 = vunpack.c.l.b16 %v3400
    %v4514 = vunpack.c.h.b16 %v3400
    %v4515 = vunpack.c.l.b16 %v3401
    %v4516 = vunpack.c.h.b16 %v3401
    %v4517 = vunpack.c.l.b16 %v3402
    %v4518 = vunpack.c.h.b16 %v3402
    %v4519 = vunpack.c.l.b16 %v3403
    %v4520 = vunpack.c.h.b16 %v3403
    %v4521 = vunpack.c.l.b16 %v3404
    %v4522 = vunpack.c.h.b16 %v3404
    %v4523 = vunpack.c.l.b16 %v3405
    %v4524 = vunpack.c.h.b16 %v3405
    %v4525 = vunpack.c.l.b16 %v3406
    %v4526 = vunpack.c.h.b16 %v3406
    %v4527 = vunpack.c.l.b16 %v3407
    %v4528 = vunpack.c.h.b16 %v3407
    %v4529 = vunpack.c.l.b16 %v3408
    %v4530 = vunpack.c.h.b16 %v3408
    %v4531 = vunpack.c.l.b16 %v3409
    %v4532 = vunpack.c.h.b16 %v3409
    %v4533 = vunpack.c.l.b16 %v3410
    %v4534 = vunpack.c.h.b16 %v3410
    %v4535 = vunpack.c.l.b16 %v3411
    %v4536 = vunpack.c.h.b16 %v3411
    %v4537 = vunpack.c.l.b16 %v3412
    %v4538 = vunpack.c.h.b16 %v3412
    %v4539 = vunpack.c.l.b16 %v3413
    %v4540 = vunpack.c.h.b16 %v3413
    %v4541 = vunpack.c.l.b16 %v3414
    %v4542 = vunpack.c.h.b16 %v3414
    %v4543 = vunpack.c.l.b16 %v3415
    %v4544 = vunpack.c.h.b16 %v3415
    %v4545 = vunpack.c.l.b16 %v3416
    %v4546 = vunpack.c.h.b16 %v3416
    %v4547 = vunpack.c.l.b16 %v3417
    %v4548 = vunpack.c.h.b16 %v3417
    %v4549 = vunpack.c.l.b16 %v3418
    %v4550 = vunpack.c.h.b16 %v3418
    %v4551 = vunpack.c.l.b16 %v3419
    %v4552 = vunpack.c.h.b16 %v3419
    %v4553 = vunpack.c.l.b16 %v3420
    %v4554 = vunpack.c.h.b16 %v3420
    %v4555 = vunpack.c.l.b16 %v3421
    %v4556 = vunpack.c.h.b16 %v3421
    %v4557 = vunpack.c.l.b16 %v3422
    %v4558 = vunpack.c.h.b16 %v3422
    %v4559 = vunpack.c.l.b16 %v3423
    %v4560 = vunpack.c.h.b16 %v3423
    %v4561 = vunpack.c.l.b16 %v3424
    %v4562 = vunpack.c.h.b16 %v3424
    %v4563 = vunpack.c.l.b16 %v3425
    %v4564 = vunpack.c.h.b16 %v3425
    %v4565 = vunpack.c.l.b16 %v3426
    %v4566 = vunpack.c.h.b16 %v3426
    %v4567 = vunpack.c.l.b16 %v3427
    %v4568 = vunpack.c.h.b16 %v3427
    %v4569 = vunpack.c.l.b16 %v3428
    %v4570 = vunpack.c.h.b16 %v3428
    %v4571 = vunpack.c.l.b16 %v3429
    %v4572 = vunpack.c.h.b16 %v3429
    %v4573 = vunpack.c.l.b16 %v3430
    %v4574 = vunpack.c.h.b16 %v3430
    %v4575 = vunpack.c.l.b16 %v3431
    %v4576 = vunpack.c.h.b16 %v3431
    %v4577 = vunpack.c.l.b16 %v3432
    %v4578 = vunpack.c.h.b16 %v3432
    %v4579 = vunpack.c.l.b16 %v3433
    %v4580 = vunpack.c.h.b16 %v3433
    %v4581 = vunpack.c.l.b16 %v3434
    %v4582 = vunpack.c.h.b16 %v3434
    %v4583 = vunpack.c.l.b16 %v3435
    %v4584 = vunpack.c.h.b16 %v3435
    %v4585 = vunpack.c.l.b16 %v3436
    %v4586 = vunpack.c.h.b16 %v3436
    %v4587 = vunpack.c.l.b16 %v3437
    %v4588 = vunpack.c.h.b16 %v3437
    %v4589 = vunpack.c.l.b16 %v3438
    %v4590 = vunpack.c.h.b16 %v3438
    %v4591 = vunpack.c.l.b16 %v3439
    %v4592 = vunpack.c.h.b16 %v3439
    %v4593 = vunpack.c.l.b16 %v3440
    %v4594 = vunpack.c.h.b16 %v3440
    %v4595 = vunpack.c.l.b16 %v3441
    %v4596 = vunpack.c.h.b16 %v3441
    %v4597 = vunpack.c.l.b16 %v3442
    %v4598 = vunpack.c.h.b16 %v3442
    %v4599 = vunpack.c.l.b16 %v3443
    %v4600 = vunpack.c.h.b16 %v3443
    %v4601 = vunpack.c.l.b16 %v3444
    %v4602 = vunpack.c.h.b16 %v3444
    %v4603 = vunpack.c.l.b16 %v3445
    %v4604 = vunpack.c.h.b16 %v3445
    %v4605 = vunpack.c.l.b16 %v3446
    %v4606 = vunpack.c.h.b16 %v3446
    %v4607 = vunpack.c.l.b16 %v3447
    %v4608 = vunpack.c.h.b16 %v3447
    %v4609 = vunpack.c.l.b16 %v3448
    %v4610 = vunpack.c.h.b16 %v3448
    %v4611 = vunpack.c.l.b16 %v3449
    %v4612 = vunpack.c.h.b16 %v3449
    %v4613 = vunpack.c.l.b16 %v3450
    %v4614 = vunpack.c.h.b16 %v3450
    %v4615 = vunpack.c.l.b16 %v3451
    %v4616 = vunpack.c.h.b16 %v3451
    %v4617 = vunpack.c.l.b16 %v3452
    %v4618 = vunpack.c.h.b16 %v3452
    %v4619 = vunpack.c.l.b16 %v3453
    %v4620 = vunpack.c.h.b16 %v3453
    %v4621 = vunpack.c.l.b16 %v3454
    %v4622 = vunpack.c.h.b16 %v3454
    %v4623 = vunpack.c.l.b16 %v3455
    %v4624 = vunpack.c.h.b16 %v3455
    %v4625 = vunpack.c.l.b16 %v3456
    %v4626 = vunpack.c.h.b16 %v3456
    %v4627 = vunpack.c.l.b16 %v3457
    %v4628 = vunpack.c.h.b16 %v3457
    %v4629 = vunpack.c.l.b16 %v3458
    %v4630 = vunpack.c.h.b16 %v3458
    %v4631 = vunpack.c.l.b16 %v3459
    %v4632 = vunpack.c.h.b16 %v3459
    %v4633 = vunpack.c.l.b16 %v3460
    %v4634 = vunpack.c.h.b16 %v3460
    %v4635 = vunpack.c.l.b16 %v3461
    %v4636 = vunpack.c.h.b16 %v3461
    %v4637 = vpack.c.b16 %v3875, %v3869
    %v4638 = vpack.c.b16 %v3876, %v3870
    %v4639 = vpack.c.b16 %v3877, %v3871
    %v4640 = vpack.c.b16 %v3878, %v3872
    %v4641 = vpack.c.b16 %v3879, %v3873
    %v4642 = vpack.c.b16 %v3880, %v3874
    %v4643 = vpack.c.b16 %v3887, %v3881
    %v4644 = vpack.c.b16 %v3888, %v3882
    %v4645 = vpack.c.b16 %v3889, %v3883
    %v4646 = vpack.c.b16 %v3890, %v3884
    %v4647 = vpack.c.b16 %v3891, %v3885
    %v4648 = vpack.c.b16 %v3892, %v3886
    %v4649 = vpack.c.b16 %v3899, %v3893
    %v4650 = vpack.c.b16 %v3900, %v3894
    %v4651 = vpack.c.b16 %v3901, %v3895
    %v4652 = vpack.c.b16 %v3902, %v3896
    %v4653 = vpack.c.b16 %v3903, %v3897
    %v4654 = vpack.c.b16 %v3904, %v3898
    %v4655 = vpack.c.b16 %v3911, %v3905
    %v4656 = vpack.c.b16 %v3912, %v3906
    %v4657 = vpack.c.b16 %v3913, %v3907
    %v4658 = vpack.c.b16 %v3914, %v3908
    %v4659 = vpack.c.b16 %v3915, %v3909
    %v4660 = vpack.c.b16 %v3916, %v3910
    %v4661 = vpack.c.b16 %v3923, %v3917
    %v4662 = vpack.c.b16 %v3924, %v3918
    %v4663 = vpack.c.b16 %v3925, %v3919
    %v4664 = vpack.c.b16 %v3926, %v3920
    %v4665 = vpack.c.b16 %v3927, %v3921
    %v4666 = vpack.c.b16 %v3928, %v3922
    %v4667 = vpack.c.b16 %v3935, %v3929
    %v4668 = vpack.c.b16 %v3936, %v3930
    %v4669 = vpack.c.b16 %v3937, %v3931
    %v4670 = vpack.c.b16 %v3938, %v3932
    %v4671 = vpack.c.b16 %v3939, %v3933
    %v4672 = vpack.c.b16 %v3940, %v3934
    %v4673 = vpack.c.b16 %v3947, %v3941
    %v4674 = vpack.c.b16 %v3948, %v3942
    %v4675 = vpack.c.b16 %v3949, %v3943
    %v4676 = vpack.c.b16 %v3950, %v3944
    %v4677 = vpack.c.b16 %v3951, %v3945
    %v4678 = vpack.c.b16 %v3952, %v3946
    %v4679 = vpack.c.b16 %v3959, %v3953
    %v4680 = vpack.c.b16 %v3960, %v3954
    %v4681 = vpack.c.b16 %v3961, %v3955
    %v4682 = vpack.c.b16 %v3962, %v3956
    %v4683 = vpack.c.b16 %v3963, %v3957
    %v4684 = vpack.c.b16 %v3964, %v3958
    %v4685 = vpack.c.b16 %v3971, %v3965
    %v4686 = vpack.c.b16 %v3972, %v3966
    %v4687 = vpack.c.b16 %v3973, %v3967
    %v4688 = vpack.c.b16 %v3974, %v3968
    %v4689 = vpack.c.b16 %v3975, %v3969
    %v4690 = vpack.c.b16 %v3976, %v3970
    %v4691 = vpack.c.b16 %v3983, %v3977
    %v4692 = vpack.c.b16 %v3984, %v3978
    %v4693 = vpack.c.b16 %v3985, %v3979
    %v4694 = vpack.c.b16 %v3986, %v3980
    %v4695 = vpack.c.b16 %v3987, %v3981
    %v4696 = vpack.c.b16 %v3988, %v3982
    %v4697 = vpack.c.b16 %v3995, %v3989
    %v4698 = vpack.c.b16 %v3996, %v3990
    %v4699 = vpack.c.b16 %v3997, %v3991
    %v4700 = vpack.c.b16 %v3998, %v3992
    %v4701 = vpack.c.b16 %v3999, %v3993
    %v4702 = vpack.c.b16 %v4000, %v3994
    %v4703 = vpack.c.b16 %v4007, %v4001
    %v4704 = vpack.c.b16 %v4008, %v4002
    %v4705 = vpack.c.b16 %v4009, %v4003
    %v4706 = vpack.c.b16 %v4010, %v4004
    %v4707 = vpack.c.b16 %v4011, %v4005
    %v4708 = vpack.c.b16 %v4012, %v4006
    %v4709 = vpack.c.b16 %v4019, %v4013
    %v4710 = vpack.c.b16 %v4020, %v4014
    %v4711 = vpack.c.b16 %v4021, %v4015
    %v4712 = vpack.c.b16 %v4022, %v4016
    %v4713 = vpack.c.b16 %v4023, %v4017
    %v4714 = vpack.c.b16 %v4024, %v4018
    %v4715 = vpack.c.b16 %v4031, %v4025
    %v4716 = vpack.c.b16 %v4032, %v4026
    %v4717 = vpack.c.b16 %v4033, %v4027
    %v4718 = vpack.c.b16 %v4034, %v4028
    %v4719 = vpack.c.b16 %v4035, %v4029
    %v4720 = vpack.c.b16 %v4036, %v4030
    %v4721 = vpack.c.b16 %v4043, %v4037
    %v4722 = vpack.c.b16 %v4044, %v4038
    %v4723 = vpack.c.b16 %v4045, %v4039
    %v4724 = vpack.c.b16 %v4046, %v4040
    %v4725 = vpack.c.b16 %v4047, %v4041
    %v4726 = vpack.c.b16 %v4048, %v4042
    %v4727 = vpack.c.b16 %v4055, %v4049
    %v4728 = vpack.c.b16 %v4056, %v4050
    %v4729 = vpack.c.b16 %v4057, %v4051
    %v4730 = vpack.c.b16 %v4058, %v4052
    %v4731 = vpack.c.b16 %v4059, %v4053
    %v4732 = vpack.c.b16 %v4060, %v4054
    %v4733 = vpack.c.b16 %v4067, %v4061
    %v4734 = vpack.c.b16 %v4068, %v4062
    %v4735 = vpack.c.b16 %v4069, %v4063
    %v4736 = vpack.c.b16 %v4070, %v4064
    %v4737 = vpack.c.b16 %v4071, %v4065
    %v4738 = vpack.c.b16 %v4072, %v4066
    %v4739 = vpack.c.b16 %v4079, %v4073
    %v4740 = vpack.c.b16 %v4080, %v4074
    %v4741 = vpack.c.b16 %v4081, %v4075
    %v4742 = vpack.c.b16 %v4082, %v4076
    %v4743 = vpack.c.b16 %v4083, %v4077
    %v4744 = vpack.c.b16 %v4084, %v4078
    %v4745 = vpack.c.b16 %v4091, %v4085
    %v4746 = vpack.c.b16 %v4092, %v4086
    %v4747 = vpack.c.b16 %v4093, %v4087
    %v4748 = vpack.c.b16 %v4094, %v4088
    %v4749 = vpack.c.b16 %v4095, %v4089
    %v4750 = vpack.c.b16 %v4096, %v4090
    %v4751 = vpack.c.b16 %v4103, %v4097
    %v4752 = vpack.c.b16 %v4104, %v4098
    %v4753 = vpack.c.b16 %v4105, %v4099
    %v4754 = vpack.c.b16 %v4106, %v4100
    %v4755 = vpack.c.b16 %v4107, %v4101
    %v4756 = vpack.c.b16 %v4108, %v4102
    %v4757 = vpack.c.b16 %v4115, %v4109
    %v4758 = vpack.c.b16 %v4116, %v4110
    %v4759 = vpack.c.b16 %v4117, %v4111
    %v4760 = vpack.c.b16 %v4118, %v4112
    %v4761 = vpack.c.b16 %v4119, %v4113
    %v4762 = vpack.c.b16 %v4120, %v4114
    %v4763 = vpack.c.b16 %v4127, %v4121
    %v4764 = vpack.c.b16 %v4128, %v4122
    %v4765 = vpack.c.b16 %v4129, %v4123
    %v4766 = vpack.c.b16 %v4130, %v4124
    %v4767 = vpack.c.b16 %v4131, %v4125
    %v4768 = vpack.c.b16 %v4132, %v4126
    %v4769 = vpack.c.b16 %v4139, %v4133
    %v4770 = vpack.c.b16 %v4140, %v4134
    %v4771 = vpack.c.b16 %v4141, %v4135
    %v4772 = vpack.c.b16 %v4142, %v4136
    %v4773 = vpack.c.b16 %v4143, %v4137
    %v4774 = vpack.c.b16 %v4144, %v4138
    %v4775 = vpack.c.b16 %v4151, %v4145
    %v4776 = vpack.c.b16 %v4152, %v4146
    %v4777 = vpack.c.b16 %v4153, %v4147
    %v4778 = vpack.c.b16 %v4154, %v4148
    %v4779 = vpack.c.b16 %v4155, %v4149
    %v4780 = vpack.c.b16 %v4156, %v4150
    %v4781 = vpack.c.b16 %v4163, %v4157
    %v4782 = vpack.c.b16 %v4164, %v4158
    %v4783 = vpack.c.b16 %v4165, %v4159
    %v4784 = vpack.c.b16 %v4166, %v4160
    %v4785 = vpack.c.b16 %v4167, %v4161
    %v4786 = vpack.c.b16 %v4168, %v4162
    %v4787 = vpack.c.b16 %v4175, %v4169
    %v4788 = vpack.c.b16 %v4176, %v4170
    %v4789 = vpack.c.b16 %v4177, %v4171
    %v4790 = vpack.c.b16 %v4178, %v4172
    %v4791 = vpack.c.b16 %v4179, %v4173
    %v4792 = vpack.c.b16 %v4180, %v4174
    %v4793 = vpack.c.b16 %v4187, %v4181
    %v4794 = vpack.c.b16 %v4188, %v4182
    %v4795 = vpack.c.b16 %v4189, %v4183
    %v4796 = vpack.c.b16 %v4190, %v4184
    %v4797 = vpack.c.b16 %v4191, %v4185
    %v4798 = vpack.c.b16 %v4192, %v4186
    %v4799 = vpack.c.b16 %v4199, %v4193
    %v4800 = vpack.c.b16 %v4200, %v4194
    %v4801 = vpack.c.b16 %v4201, %v4195
    %v4802 = vpack.c.b16 %v4202, %v4196
    %v4803 = vpack.c.b16 %v4203, %v4197
    %v4804 = vpack.c.b16 %v4204, %v4198
    %v4805 = vpack.c.b16 %v4211, %v4205
    %v4806 = vpack.c.b16 %v4212, %v4206
    %v4807 = vpack.c.b16 %v4213, %v4207
    %v4808 = vpack.c.b16 %v4214, %v4208
    %v4809 = vpack.c.b16 %v4215, %v4209
    %v4810 = vpack.c.b16 %v4216, %v4210
    %v4811 = vpack.c.b16 %v4223, %v4217
    %v4812 = vpack.c.b16 %v4224, %v4218
    %v4813 = vpack.c.b16 %v4225, %v4219
    %v4814 = vpack.c.b16 %v4226, %v4220
    %v4815 = vpack.c.b16 %v4227, %v4221
    %v4816 = vpack.c.b16 %v4228, %v4222
    %v4817 = vpack.c.b16 %v4235, %v4229
    %v4818 = vpack.c.b16 %v4236, %v4230
    %v4819 = vpack.c.b16 %v4237, %v4231
    %v4820 = vpack.c.b16 %v4238, %v4232
    %v4821 = vpack.c.b16 %v4239, %v4233
    %v4822 = vpack.c.b16 %v4240, %v4234
    %v4823 = vpack.c.b16 %v4247, %v4241
    %v4824 = vpack.c.b16 %v4248, %v4242
    %v4825 = vpack.c.b16 %v4249, %v4243
    %v4826 = vpack.c.b16 %v4250, %v4244
    %v4827 = vpack.c.b16 %v4251, %v4245
    %v4828 = vpack.c.b16 %v4252, %v4246
    %v4829 = vpack.c.b16 %v4259, %v4253
    %v4830 = vpack.c.b16 %v4260, %v4254
    %v4831 = vpack.c.b16 %v4261, %v4255
    %v4832 = vpack.c.b16 %v4262, %v4256
    %v4833 = vpack.c.b16 %v4263, %v4257
    %v4834 = vpack.c.b16 %v4264, %v4258
    %v4835 = vpack.c.b16 %v4271, %v4265
    %v4836 = vpack.c.b16 %v4272, %v4266
    %v4837 = vpack.c.b16 %v4273, %v4267
    %v4838 = vpack.c.b16 %v4274, %v4268
    %v4839 = vpack.c.b16 %v4275, %v4269
    %v4840 = vpack.c.b16 %v4276, %v4270
    %v4841 = vpack.c.b16 %v4283, %v4277
    %v4842 = vpack.c.b16 %v4284, %v4278
    %v4843 = vpack.c.b16 %v4285, %v4279
    %v4844 = vpack.c.b16 %v4286, %v4280
    %v4845 = vpack.c.b16 %v4287, %v4281
    %v4846 = vpack.c.b16 %v4288, %v4282
    %v4847 = vpack.c.b16 %v4295, %v4289
    %v4848 = vpack.c.b16 %v4296, %v4290
    %v4849 = vpack.c.b16 %v4297, %v4291
    %v4850 = vpack.c.b16 %v4298, %v4292
    %v4851 = vpack.c.b16 %v4299, %v4293
    %v4852 = vpack.c.b16 %v4300, %v4294
    %v4853 = vpack.c.b16 %v4307, %v4301
    %v4854 = vpack.c.b16 %v4308, %v4302
    %v4855 = vpack.c.b16 %v4309, %v4303
    %v4856 = vpack.c.b16 %v4310, %v4304
    %v4857 = vpack.c.b16 %v4311, %v4305
    %v4858 = vpack.c.b16 %v4312, %v4306
    %v4859 = vpack.c.b16 %v4319, %v4313
    %v4860 = vpack.c.b16 %v4320, %v4314
    %v4861 = vpack.c.b16 %v4321, %v4315
    %v4862 = vpack.c.b16 %v4322, %v4316
    %v4863 = vpack.c.b16 %v4323, %v4317
    %v4864 = vpack.c.b16 %v4324, %v4318
    %v4865 = vpack.c.b16 %v4331, %v4325
    %v4866 = vpack.c.b16 %v4332, %v4326
    %v4867 = vpack.c.b16 %v4333, %v4327
    %v4868 = vpack.c.b16 %v4334, %v4328
    %v4869 = vpack.c.b16 %v4335, %v4329
    %v4870 = vpack.c.b16 %v4336, %v4330
    %v4871 = vpack.c.b16 %v4343, %v4337
    %v4872 = vpack.c.b16 %v4344, %v4338
    %v4873 = vpack.c.b16 %v4345, %v4339
    %v4874 = vpack.c.b16 %v4346, %v4340
    %v4875 = vpack.c.b16 %v4347, %v4341
    %v4876 = vpack.c.b16 %v4348, %v4342
    %v4877 = vpack.c.b16 %v4355, %v4349
    %v4878 = vpack.c.b16 %v4356, %v4350
    %v4879 = vpack.c.b16 %v4357, %v4351
    %v4880 = vpack.c.b16 %v4358, %v4352
    %v4881 = vpack.c.b16 %v4359, %v4353
    %v4882 = vpack.c.b16 %v4360, %v4354
    %v4883 = vpack.c.b16 %v4367, %v4361
    %v4884 = vpack.c.b16 %v4368, %v4362
    %v4885 = vpack.c.b16 %v4369, %v4363
    %v4886 = vpack.c.b16 %v4370, %v4364
    %v4887 = vpack.c.b16 %v4371, %v4365
    %v4888 = vpack.c.b16 %v4372, %v4366
    %v4889 = vpack.c.b16 %v4379, %v4373
    %v4890 = vpack.c.b16 %v4380, %v4374
    %v4891 = vpack.c.b16 %v4381, %v4375
    %v4892 = vpack.c.b16 %v4382, %v4376
    %v4893 = vpack.c.b16 %v4383, %v4377
    %v4894 = vpack.c.b16 %v4384, %v4378
    %v4895 = vpack.c.b16 %v4391, %v4385
    %v4896 = vpack.c.b16 %v4392, %v4386
    %v4897 = vpack.c.b16 %v4393, %v4387
    %v4898 = vpack.c.b16 %v4394, %v4388
    %v4899 = vpack.c.b16 %v4395, %v4389
    %v4900 = vpack.c.b16 %v4396, %v4390
    %v4901 = vpack.c.b16 %v4403, %v4397
    %v4902 = vpack.c.b16 %v4404, %v4398
    %v4903 = vpack.c.b16 %v4405, %v4399
    %v4904 = vpack.c.b16 %v4406, %v4400
    %v4905 = vpack.c.b16 %v4407, %v4401
    %v4906 = vpack.c.b16 %v4408, %v4402
    %v4907 = vpack.c.b16 %v4415, %v4409
    %v4908 = vpack.c.b16 %v4416, %v4410
    %v4909 = vpack.c.b16 %v4417, %v4411
    %v4910 = vpack.c.b16 %v4418, %v4412
    %v4911 = vpack.c.b16 %v4419, %v4413
    %v4912 = vpack.c.b16 %v4420, %v4414
    %v4913 = vpack.c.b16 %v4427, %v4421
    %v4914 = vpack.c.b16 %v4428, %v4422
    %v4915 = vpack.c.b16 %v4429, %v4423
    %v4916 = vpack.c.b16 %v4430, %v4424
    %v4917 = vpack.c.b16 %v4431, %v4425
    %v4918 = vpack.c.b16 %v4432, %v4426
    %v4919 = vpack.c.b16 %v4439, %v4433
    %v4920 = vpack.c.b16 %v4440, %v4434
    %v4921 = vpack.c.b16 %v4441, %v4435
    %v4922 = vpack.c.b16 %v4442, %v4436
    %v4923 = vpack.c.b16 %v4443, %v4437
    %v4924 = vpack.c.b16 %v4444, %v4438
    %v4925 = vpack.c.b16 %v4451, %v4445
    %v4926 = vpack.c.b16 %v4452, %v4446
    %v4927 = vpack.c.b16 %v4453, %v4447
    %v4928 = vpack.c.b16 %v4454, %v4448
    %v4929 = vpack.c.b16 %v4455, %v4449
    %v4930 = vpack.c.b16 %v4456, %v4450
    %v4931 = vpack.c.b16 %v4463, %v4457
    %v4932 = vpack.c.b16 %v4464, %v4458
    %v4933 = vpack.c.b16 %v4465, %v4459
    %v4934 = vpack.c.b16 %v4466, %v4460
    %v4935 = vpack.c.b16 %v4467, %v4461
    %v4936 = vpack.c.b16 %v4468, %v4462
    %v4937 = vpack.c.b16 %v4475, %v4469
    %v4938 = vpack.c.b16 %v4476, %v4470
    %v4939 = vpack.c.b16 %v4477, %v4471
    %v4940 = vpack.c.b16 %v4478, %v4472
    %v4941 = vpack.c.b16 %v4479, %v4473
    %v4942 = vpack.c.b16 %v4480, %v4474
    %v4943 = vpack.c.b16 %v4487, %v4481
    %v4944 = vpack.c.b16 %v4488, %v4482
    %v4945 = vpack.c.b16 %v4489, %v4483
    %v4946 = vpack.c.b16 %v4490, %v4484
    %v4947 = vpack.c.b16 %v4491, %v4485
    %v4948 = vpack.c.b16 %v4492, %v4486
    %v4949 = vpack.c.b16 %v4499, %v4493
    %v4950 = vpack.c.b16 %v4500, %v4494
    %v4951 = vpack.c.b16 %v4501, %v4495
    %v4952 = vpack.c.b16 %v4502, %v4496
    %v4953 = vpack.c.b16 %v4503, %v4497
    %v4954 = vpack.c.b16 %v4504, %v4498
    %v4955 = vpack.c.b16 %v4511, %v4505
    %v4956 = vpack.c.b16 %v4512, %v4506
    %v4957 = vpack.c.b16 %v4513, %v4507
    %v4958 = vpack.c.b16 %v4514, %v4508
    %v4959 = vpack.c.b16 %v4515, %v4509
    %v4960 = vpack.c.b16 %v4516, %v4510
    %v4961 = vpack.c.b16 %v4523, %v4517
    %v4962 = vpack.c.b16 %v4524, %v4518
    %v4963 = vpack.c.b16 %v4525, %v4519
    %v4964 = vpack.c.b16 %v4526, %v4520
    %v4965 = vpack.c.b16 %v4527, %v4521
    %v4966 = vpack.c.b16 %v4528, %v4522
    %v4967 = vpack.c.b16 %v4535, %v4529
    %v4968 = vpack.c.b16 %v4536, %v4530
    %v4969 = vpack.c.b16 %v4537, %v4531
    %v4970 = vpack.c.b16 %v4538, %v4532
    %v4971 = vpack.c.b16 %v4539, %v4533
    %v4972 = vpack.c.b16 %v4540, %v4534
    %v4973 = vpack.c.b16 %v4547, %v4541
    %v4974 = vpack.c.b16 %v4548, %v4542
    %v4975 = vpack.c.b16 %v4549, %v4543
    %v4976 = vpack.c.b16 %v4550, %v4544
    %v4977 = vpack.c.b16 %v4551, %v4545
    %v4978 = vpack.c.b16 %v4552, %v4546
    %v4979 = vpack.c.b16 %v4559, %v4553
    %v4980 = vpack.c.b16 %v4560, %v4554
    %v4981 = vpack.c.b16 %v4561, %v4555
    %v4982 = vpack.c.b16 %v4562, %v4556
    %v4983 = vpack.c.b16 %v4563, %v4557
    %v4984 = vpack.c.b16 %v4564, %v4558
    %v4985 = vpack.c.b16 %v4571, %v4565
    %v4986 = vpack.c.b16 %v4572, %v4566
    %v4987 = vpack.c.b16 %v4573, %v4567
    %v4988 = vpack.c.b16 %v4574, %v4568
    %v4989 = vpack.c.b16 %v4575, %v4569
    %v4990 = vpack.c.b16 %v4576, %v4570
    %v4991 = vpack.c.b16 %v4583, %v4577
    %v4992 = vpack.c.b16 %v4584, %v4578
    %v4993 = vpack.c.b16 %v4585, %v4579
    %v4994 = vpack.c.b16 %v4586, %v4580
    %v4995 = vpack.c.b16 %v4587, %v4581
    %v4996 = vpack.c.b16 %v4588, %v4582
    %v4997 = vpack.c.b16 %v4595, %v4589
    %v4998 = vpack.c.b16 %v4596, %v4590
    %v4999 = vpack.c.b16 %v4597, %v4591
    %v5000 = vpack.c.b16 %v4598, %v4592
    %v5001 = vpack.c.b16 %v4599, %v4593
    %v5002 = vpack.c.b16 %v4600, %v4594
    %v5003 = vpack.c.b16 %v4607, %v4601
    %v5004 = vpack.c.b16 %v4608, %v4602
    %v5005 = vpack.c.b16 %v4609, %v4603
    %v5006 = vpack.c.b16 %v4610, %v4604
    %v5007 = vpack.c.b16 %v4611, %v4605
    %v5008 = vpack.c.b16 %v4612, %v4606
    %v5009 = vpack.c.b16 %v4619, %v4613
    %v5010 = vpack.c.b16 %v4620, %v4614
    %v5011 = vpack.c.b16 %v4621, %v4615
    %v5012 = vpack.c.b16 %v4622, %v4616
    %v5013 = vpack.c.b16 %v4623, %v4617
    %v5014 = vpack.c.b16 %v4624, %v4618
    %v5015 = vpack.c.b16 %v4631, %v4625
    %v5016 = vpack.c.b16 %v4632, %v4626
    %v5017 = vpack.c.b16 %v4633, %v4627
    %v5018 = vpack.c.b16 %v4634, %v4628
    %v5019 = vpack.c.b16 %v4635, %v4629
    %v5020 = vpack.c.b16 %v4636, %v4630
    %5405 = vmatpush.bf16.msra.mxu0 %v4679
    %5406 = vmatpush.bf16.msra.mxu0 %v4673
    %5407 = vmatpush.bf16.msra.mxu0 %v4667
    %5408 = vmatpush.bf16.msra.mxu0 %v4661
    %5409 = vmatpush.bf16.msra.mxu0 %v4655
    %5410 = vmatpush.bf16.msra.mxu0 %v4649
    %5411 = vmatpush.bf16.msra.mxu0 %v4643
    %5412 = vmatpush.bf16.msra.mxu0 %v4637
    %5413 = vmatmul.bf16.gmra.mxu0 %v3070
    %v5414 = vpop.f32.mrf.mxu0
    %v5415 = vadd.f32 %v3479, %v5414
    %v5416 = vpop.f32.mrf.mxu0
    %5417 = vdwg.mxu0
    %5418 = vmatpush.bf16.msra.mxu0 %v4727
    %5419 = vmatpush.bf16.msra.mxu0 %v4721
    %5420 = vmatpush.bf16.msra.mxu0 %v4715
    %5421 = vmatpush.bf16.msra.mxu0 %v4709
    %5422 = vmatpush.bf16.msra.mxu0 %v4703
    %5423 = vmatpush.bf16.msra.mxu0 %v4697
    %5424 = vmatpush.bf16.msra.mxu0 %v4691
    %5425 = vmatpush.bf16.msra.mxu0 %v4685
    %5426 = vmatmul.bf16.gmra.mxu0 %v3071
    %v5427 = vpop.f32.mrf.mxu0
    %v5428 = vadd.f32 %v5415, %v5427
    %v5429 = vpop.f32.mrf.mxu0
    %5430 = vdwg.mxu0
    %5431 = vmatpush.bf16.msra.mxu0 %v4775
    %5432 = vmatpush.bf16.msra.mxu0 %v4769
    %5433 = vmatpush.bf16.msra.mxu0 %v4763
    %5434 = vmatpush.bf16.msra.mxu0 %v4757
    %5435 = vmatpush.bf16.msra.mxu0 %v4751
    %5436 = vmatpush.bf16.msra.mxu0 %v4745
    %5437 = vmatpush.bf16.msra.mxu0 %v4739
    %5438 = vmatpush.bf16.msra.mxu0 %v4733
    %5439 = vmatmul.bf16.gmra.mxu0 %v3072
    %v5440 = vpop.f32.mrf.mxu0
    %v5441 = vadd.f32 %v5428, %v5440
    %v5442 = vpop.f32.mrf.mxu0
    %5443 = vdwg.mxu0
    %5444 = vmatpush.bf16.msra.mxu0 %v4823
    %5445 = vmatpush.bf16.msra.mxu0 %v4817
    %5446 = vmatpush.bf16.msra.mxu0 %v4811
    %5447 = vmatpush.bf16.msra.mxu0 %v4805
    %5448 = vmatpush.bf16.msra.mxu0 %v4799
    %5449 = vmatpush.bf16.msra.mxu0 %v4793
    %5450 = vmatpush.bf16.msra.mxu0 %v4787
    %5451 = vmatpush.bf16.msra.mxu0 %v4781
    %5452 = vmatmul.bf16.gmra.mxu0 %v3073
    %v5453 = vpop.f32.mrf.mxu0
    %v5454 = vadd.f32 %v5441, %v5453
    %v5455 = vpop.f32.mrf.mxu0
    %5456 = vdwg.mxu0
    %5457 = vmatpush.bf16.msra.mxu0 %v4871
    %5458 = vmatpush.bf16.msra.mxu0 %v4865
    %5459 = vmatpush.bf16.msra.mxu0 %v4859
    %5460 = vmatpush.bf16.msra.mxu0 %v4853
    %5461 = vmatpush.bf16.msra.mxu0 %v4847
    %5462 = vmatpush.bf16.msra.mxu0 %v4841
    %5463 = vmatpush.bf16.msra.mxu0 %v4835
    %5464 = vmatpush.bf16.msra.mxu0 %v4829
    %5465 = vmatmul.bf16.gmra.mxu0 %v3074
    %v5466 = vpop.f32.mrf.mxu0
    %v5467 = vadd.f32 %v5454, %v5466
    %v5468 = vpop.f32.mrf.mxu0
    %5469 = vdwg.mxu0
    %5470 = vmatpush.bf16.msra.mxu0 %v4919
    %5471 = vmatpush.bf16.msra.mxu0 %v4913
    %5472 = vmatpush.bf16.msra.mxu0 %v4907
    %5473 = vmatpush.bf16.msra.mxu0 %v4901
    %5474 = vmatpush.bf16.msra.mxu0 %v4895
    %5475 = vmatpush.bf16.msra.mxu0 %v4889
    %5476 = vmatpush.bf16.msra.mxu0 %v4883
    %5477 = vmatpush.bf16.msra.mxu0 %v4877
    %5478 = vmatmul.bf16.gmra.mxu0 %v3075
    %v5479 = vpop.f32.mrf.mxu0
    %v5480 = vadd.f32 %v5467, %v5479
    %v5481 = vpop.f32.mrf.mxu0
    %5482 = vdwg.mxu0
    %5483 = vmatpush.bf16.msra.mxu0 %v4967
    %5484 = vmatpush.bf16.msra.mxu0 %v4961
    %5485 = vmatpush.bf16.msra.mxu0 %v4955
    %5486 = vmatpush.bf16.msra.mxu0 %v4949
    %5487 = vmatpush.bf16.msra.mxu0 %v4943
    %5488 = vmatpush.bf16.msra.mxu0 %v4937
    %5489 = vmatpush.bf16.msra.mxu0 %v4931
    %5490 = vmatpush.bf16.msra.mxu0 %v4925
    %5491 = vmatmul.bf16.gmra.mxu0 %v3076
    %v5492 = vpop.f32.mrf.mxu0
    %v5493 = vadd.f32 %v5480, %v5492
    %v5494 = vpop.f32.mrf.mxu0
    %5495 = vdwg.mxu0
    %5496 = vmatpush.bf16.msra.mxu0 %v5015
    %5497 = vmatpush.bf16.msra.mxu0 %v5009
    %5498 = vmatpush.bf16.msra.mxu0 %v5003
    %5499 = vmatpush.bf16.msra.mxu0 %v4997
    %5500 = vmatpush.bf16.msra.mxu0 %v4991
    %5501 = vmatpush.bf16.msra.mxu0 %v4985
    %5502 = vmatpush.bf16.msra.mxu0 %v4979
    %5503 = vmatpush.bf16.msra.mxu0 %v4973
    %5504 = vmatmul.bf16.gmra.mxu0 %v3077
    %v5505 = vpop.f32.mrf.mxu0
    %v5506 = vadd.f32 %v5493, %v5505
    %v5507 = vpop.f32.mrf.mxu0
    %5508 = vdwg.mxu0
    %5509 = vmatpush.bf16.msra.mxu0 %v4680
    %5510 = vmatpush.bf16.msra.mxu0 %v4674
    %5511 = vmatpush.bf16.msra.mxu0 %v4668
    %5512 = vmatpush.bf16.msra.mxu0 %v4662
    %5513 = vmatpush.bf16.msra.mxu0 %v4656
    %5514 = vmatpush.bf16.msra.mxu0 %v4650
    %5515 = vmatpush.bf16.msra.mxu0 %v4644
    %5516 = vmatpush.bf16.msra.mxu0 %v4638
    %5517 = vmatmul.bf16.gmra.mxu0 %v3070
    %v5518 = vpop.f32.mrf.mxu0
    %v5519 = vadd.f32 %v3480, %v5518
    %v5520 = vpop.f32.mrf.mxu0
    %5521 = vdwg.mxu0
    %5522 = vmatpush.bf16.msra.mxu0 %v4728
    %5523 = vmatpush.bf16.msra.mxu0 %v4722
    %5524 = vmatpush.bf16.msra.mxu0 %v4716
    %5525 = vmatpush.bf16.msra.mxu0 %v4710
    %5526 = vmatpush.bf16.msra.mxu0 %v4704
    %5527 = vmatpush.bf16.msra.mxu0 %v4698
    %5528 = vmatpush.bf16.msra.mxu0 %v4692
    %5529 = vmatpush.bf16.msra.mxu0 %v4686
    %5530 = vmatmul.bf16.gmra.mxu0 %v3071
    %v5531 = vpop.f32.mrf.mxu0
    %v5532 = vadd.f32 %v5519, %v5531
    %v5533 = vpop.f32.mrf.mxu0
    %5534 = vdwg.mxu0
    %5535 = vmatpush.bf16.msra.mxu0 %v4776
    %5536 = vmatpush.bf16.msra.mxu0 %v4770
    %5537 = vmatpush.bf16.msra.mxu0 %v4764
    %5538 = vmatpush.bf16.msra.mxu0 %v4758
    %5539 = vmatpush.bf16.msra.mxu0 %v4752
    %5540 = vmatpush.bf16.msra.mxu0 %v4746
    %5541 = vmatpush.bf16.msra.mxu0 %v4740
    %5542 = vmatpush.bf16.msra.mxu0 %v4734
    %5543 = vmatmul.bf16.gmra.mxu0 %v3072
    %v5544 = vpop.f32.mrf.mxu0
    %v5545 = vadd.f32 %v5532, %v5544
    %v5546 = vpop.f32.mrf.mxu0
    %5547 = vdwg.mxu0
    %5548 = vmatpush.bf16.msra.mxu0 %v4824
    %5549 = vmatpush.bf16.msra.mxu0 %v4818
    %5550 = vmatpush.bf16.msra.mxu0 %v4812
    %5551 = vmatpush.bf16.msra.mxu0 %v4806
    %5552 = vmatpush.bf16.msra.mxu0 %v4800
    %5553 = vmatpush.bf16.msra.mxu0 %v4794
    %5554 = vmatpush.bf16.msra.mxu0 %v4788
    %5555 = vmatpush.bf16.msra.mxu0 %v4782
    %5556 = vmatmul.bf16.gmra.mxu0 %v3073
    %v5557 = vpop.f32.mrf.mxu0
    %v5558 = vadd.f32 %v5545, %v5557
    %v5559 = vpop.f32.mrf.mxu0
    %5560 = vdwg.mxu0
    %5561 = vmatpush.bf16.msra.mxu0 %v4872
    %5562 = vmatpush.bf16.msra.mxu0 %v4866
    %5563 = vmatpush.bf16.msra.mxu0 %v4860
    %5564 = vmatpush.bf16.msra.mxu0 %v4854
    %5565 = vmatpush.bf16.msra.mxu0 %v4848
    %5566 = vmatpush.bf16.msra.mxu0 %v4842
    %5567 = vmatpush.bf16.msra.mxu0 %v4836
    %5568 = vmatpush.bf16.msra.mxu0 %v4830
    %5569 = vmatmul.bf16.gmra.mxu0 %v3074
    %v5570 = vpop.f32.mrf.mxu0
    %v5571 = vadd.f32 %v5558, %v5570
    %v5572 = vpop.f32.mrf.mxu0
    %5573 = vdwg.mxu0
    %5574 = vmatpush.bf16.msra.mxu0 %v4920
    %5575 = vmatpush.bf16.msra.mxu0 %v4914
    %5576 = vmatpush.bf16.msra.mxu0 %v4908
    %5577 = vmatpush.bf16.msra.mxu0 %v4902
    %5578 = vmatpush.bf16.msra.mxu0 %v4896
    %5579 = vmatpush.bf16.msra.mxu0 %v4890
    %5580 = vmatpush.bf16.msra.mxu0 %v4884
    %5581 = vmatpush.bf16.msra.mxu0 %v4878
    %5582 = vmatmul.bf16.gmra.mxu0 %v3075
    %v5583 = vpop.f32.mrf.mxu0
    %v5584 = vadd.f32 %v5571, %v5583
    %v5585 = vpop.f32.mrf.mxu0
    %5586 = vdwg.mxu0
    %5587 = vmatpush.bf16.msra.mxu0 %v4968
    %5588 = vmatpush.bf16.msra.mxu0 %v4962
    %5589 = vmatpush.bf16.msra.mxu0 %v4956
    %5590 = vmatpush.bf16.msra.mxu0 %v4950
    %5591 = vmatpush.bf16.msra.mxu0 %v4944
    %5592 = vmatpush.bf16.msra.mxu0 %v4938
    %5593 = vmatpush.bf16.msra.mxu0 %v4932
    %5594 = vmatpush.bf16.msra.mxu0 %v4926
    %5595 = vmatmul.bf16.gmra.mxu0 %v3076
    %v5596 = vpop.f32.mrf.mxu0
    %v5597 = vadd.f32 %v5584, %v5596
    %v5598 = vpop.f32.mrf.mxu0
    %5599 = vdwg.mxu0
    %5600 = vmatpush.bf16.msra.mxu0 %v5016
    %5601 = vmatpush.bf16.msra.mxu0 %v5010
    %5602 = vmatpush.bf16.msra.mxu0 %v5004
    %5603 = vmatpush.bf16.msra.mxu0 %v4998
    %5604 = vmatpush.bf16.msra.mxu0 %v4992
    %5605 = vmatpush.bf16.msra.mxu0 %v4986
    %5606 = vmatpush.bf16.msra.mxu0 %v4980
    %5607 = vmatpush.bf16.msra.mxu0 %v4974
    %5608 = vmatmul.bf16.gmra.mxu0 %v3077
    %v5609 = vpop.f32.mrf.mxu0
    %v5610 = vadd.f32 %v5597, %v5609
    %v5611 = vpop.f32.mrf.mxu0
    %5612 = vdwg.mxu0
    %5613 = vmatpush.bf16.msra.mxu0 %v4681
    %5614 = vmatpush.bf16.msra.mxu0 %v4675
    %5615 = vmatpush.bf16.msra.mxu0 %v4669
    %5616 = vmatpush.bf16.msra.mxu0 %v4663
    %5617 = vmatpush.bf16.msra.mxu0 %v4657
    %5618 = vmatpush.bf16.msra.mxu0 %v4651
    %5619 = vmatpush.bf16.msra.mxu0 %v4645
    %5620 = vmatpush.bf16.msra.mxu0 %v4639
    %5621 = vmatmul.bf16.gmra.mxu0 %v3070
    %v5622 = vpop.f32.mrf.mxu0
    %v5623 = vadd.f32 %v3481, %v5622
    %v5624 = vpop.f32.mrf.mxu0
    %5625 = vdwg.mxu0
    %5626 = vmatpush.bf16.msra.mxu0 %v4729
    %5627 = vmatpush.bf16.msra.mxu0 %v4723
    %5628 = vmatpush.bf16.msra.mxu0 %v4717
    %5629 = vmatpush.bf16.msra.mxu0 %v4711
    %5630 = vmatpush.bf16.msra.mxu0 %v4705
    %5631 = vmatpush.bf16.msra.mxu0 %v4699
    %5632 = vmatpush.bf16.msra.mxu0 %v4693
    %5633 = vmatpush.bf16.msra.mxu0 %v4687
    %5634 = vmatmul.bf16.gmra.mxu0 %v3071
    %v5635 = vpop.f32.mrf.mxu0
    %v5636 = vadd.f32 %v5623, %v5635
    %v5637 = vpop.f32.mrf.mxu0
    %5638 = vdwg.mxu0
    %5639 = vmatpush.bf16.msra.mxu0 %v4777
    %5640 = vmatpush.bf16.msra.mxu0 %v4771
    %5641 = vmatpush.bf16.msra.mxu0 %v4765
    %5642 = vmatpush.bf16.msra.mxu0 %v4759
    %5643 = vmatpush.bf16.msra.mxu0 %v4753
    %5644 = vmatpush.bf16.msra.mxu0 %v4747
    %5645 = vmatpush.bf16.msra.mxu0 %v4741
    %5646 = vmatpush.bf16.msra.mxu0 %v4735
    %5647 = vmatmul.bf16.gmra.mxu0 %v3072
    %v5648 = vpop.f32.mrf.mxu0
    %v5649 = vadd.f32 %v5636, %v5648
    %v5650 = vpop.f32.mrf.mxu0
    %5651 = vdwg.mxu0
    %5652 = vmatpush.bf16.msra.mxu0 %v4825
    %5653 = vmatpush.bf16.msra.mxu0 %v4819
    %5654 = vmatpush.bf16.msra.mxu0 %v4813
    %5655 = vmatpush.bf16.msra.mxu0 %v4807
    %5656 = vmatpush.bf16.msra.mxu0 %v4801
    %5657 = vmatpush.bf16.msra.mxu0 %v4795
    %5658 = vmatpush.bf16.msra.mxu0 %v4789
    %5659 = vmatpush.bf16.msra.mxu0 %v4783
    %5660 = vmatmul.bf16.gmra.mxu0 %v3073
    %v5661 = vpop.f32.mrf.mxu0
    %v5662 = vadd.f32 %v5649, %v5661
    %v5663 = vpop.f32.mrf.mxu0
    %5664 = vdwg.mxu0
    %5665 = vmatpush.bf16.msra.mxu0 %v4873
    %5666 = vmatpush.bf16.msra.mxu0 %v4867
    %5667 = vmatpush.bf16.msra.mxu0 %v4861
    %5668 = vmatpush.bf16.msra.mxu0 %v4855
    %5669 = vmatpush.bf16.msra.mxu0 %v4849
    %5670 = vmatpush.bf16.msra.mxu0 %v4843
    %5671 = vmatpush.bf16.msra.mxu0 %v4837
    %5672 = vmatpush.bf16.msra.mxu0 %v4831
    %5673 = vmatmul.bf16.gmra.mxu0 %v3074
    %v5674 = vpop.f32.mrf.mxu0
    %v5675 = vadd.f32 %v5662, %v5674
    %v5676 = vpop.f32.mrf.mxu0
    %5677 = vdwg.mxu0
    %5678 = vmatpush.bf16.msra.mxu0 %v4921
    %5679 = vmatpush.bf16.msra.mxu0 %v4915
    %5680 = vmatpush.bf16.msra.mxu0 %v4909
    %5681 = vmatpush.bf16.msra.mxu0 %v4903
    %5682 = vmatpush.bf16.msra.mxu0 %v4897
    %5683 = vmatpush.bf16.msra.mxu0 %v4891
    %5684 = vmatpush.bf16.msra.mxu0 %v4885
    %5685 = vmatpush.bf16.msra.mxu0 %v4879
    %5686 = vmatmul.bf16.gmra.mxu0 %v3075
    %v5687 = vpop.f32.mrf.mxu0
    %v5688 = vadd.f32 %v5675, %v5687
    %v5689 = vpop.f32.mrf.mxu0
    %5690 = vdwg.mxu0
    %5691 = vmatpush.bf16.msra.mxu0 %v4969
    %5692 = vmatpush.bf16.msra.mxu0 %v4963
    %5693 = vmatpush.bf16.msra.mxu0 %v4957
    %5694 = vmatpush.bf16.msra.mxu0 %v4951
    %5695 = vmatpush.bf16.msra.mxu0 %v4945
    %5696 = vmatpush.bf16.msra.mxu0 %v4939
    %5697 = vmatpush.bf16.msra.mxu0 %v4933
    %5698 = vmatpush.bf16.msra.mxu0 %v4927
    %5699 = vmatmul.bf16.gmra.mxu0 %v3076
    %v5700 = vpop.f32.mrf.mxu0
    %v5701 = vadd.f32 %v5688, %v5700
    %v5702 = vpop.f32.mrf.mxu0
    %5703 = vdwg.mxu0
    %5704 = vmatpush.bf16.msra.mxu0 %v5017
    %5705 = vmatpush.bf16.msra.mxu0 %v5011
    %5706 = vmatpush.bf16.msra.mxu0 %v5005
    %5707 = vmatpush.bf16.msra.mxu0 %v4999
    %5708 = vmatpush.bf16.msra.mxu0 %v4993
    %5709 = vmatpush.bf16.msra.mxu0 %v4987
    %5710 = vmatpush.bf16.msra.mxu0 %v4981
    %5711 = vmatpush.bf16.msra.mxu0 %v4975
    %5712 = vmatmul.bf16.gmra.mxu0 %v3077
    %v5713 = vpop.f32.mrf.mxu0
    %v5714 = vadd.f32 %v5701, %v5713
    %v5715 = vpop.f32.mrf.mxu0
    %5716 = vdwg.mxu0
    %5717 = vmatpush.bf16.msra.mxu0 %v4682
    %5718 = vmatpush.bf16.msra.mxu0 %v4676
    %5719 = vmatpush.bf16.msra.mxu0 %v4670
    %5720 = vmatpush.bf16.msra.mxu0 %v4664
    %5721 = vmatpush.bf16.msra.mxu0 %v4658
    %5722 = vmatpush.bf16.msra.mxu0 %v4652
    %5723 = vmatpush.bf16.msra.mxu0 %v4646
    %5724 = vmatpush.bf16.msra.mxu0 %v4640
    %5725 = vmatmul.bf16.gmra.mxu0 %v3070
    %v5726 = vpop.f32.mrf.mxu0
    %v5727 = vadd.f32 %v3482, %v5726
    %v5728 = vpop.f32.mrf.mxu0
    %5729 = vdwg.mxu0
    %5730 = vmatpush.bf16.msra.mxu0 %v4730
    %5731 = vmatpush.bf16.msra.mxu0 %v4724
    %5732 = vmatpush.bf16.msra.mxu0 %v4718
    %5733 = vmatpush.bf16.msra.mxu0 %v4712
    %5734 = vmatpush.bf16.msra.mxu0 %v4706
    %5735 = vmatpush.bf16.msra.mxu0 %v4700
    %5736 = vmatpush.bf16.msra.mxu0 %v4694
    %5737 = vmatpush.bf16.msra.mxu0 %v4688
    %5738 = vmatmul.bf16.gmra.mxu0 %v3071
    %v5739 = vpop.f32.mrf.mxu0
    %v5740 = vadd.f32 %v5727, %v5739
    %v5741 = vpop.f32.mrf.mxu0
    %5742 = vdwg.mxu0
    %5743 = vmatpush.bf16.msra.mxu0 %v4778
    %5744 = vmatpush.bf16.msra.mxu0 %v4772
    %5745 = vmatpush.bf16.msra.mxu0 %v4766
    %5746 = vmatpush.bf16.msra.mxu0 %v4760
    %5747 = vmatpush.bf16.msra.mxu0 %v4754
    %5748 = vmatpush.bf16.msra.mxu0 %v4748
    %5749 = vmatpush.bf16.msra.mxu0 %v4742
    %5750 = vmatpush.bf16.msra.mxu0 %v4736
    %5751 = vmatmul.bf16.gmra.mxu0 %v3072
    %v5752 = vpop.f32.mrf.mxu0
    %v5753 = vadd.f32 %v5740, %v5752
    %v5754 = vpop.f32.mrf.mxu0
    %5755 = vdwg.mxu0
    %5756 = vmatpush.bf16.msra.mxu0 %v4826
    %5757 = vmatpush.bf16.msra.mxu0 %v4820
    %5758 = vmatpush.bf16.msra.mxu0 %v4814
    %5759 = vmatpush.bf16.msra.mxu0 %v4808
    %5760 = vmatpush.bf16.msra.mxu0 %v4802
    %5761 = vmatpush.bf16.msra.mxu0 %v4796
    %5762 = vmatpush.bf16.msra.mxu0 %v4790
    %5763 = vmatpush.bf16.msra.mxu0 %v4784
    %5764 = vmatmul.bf16.gmra.mxu0 %v3073
    %v5765 = vpop.f32.mrf.mxu0
    %v5766 = vadd.f32 %v5753, %v5765
    %v5767 = vpop.f32.mrf.mxu0
    %5768 = vdwg.mxu0
    %5769 = vmatpush.bf16.msra.mxu0 %v4874
    %5770 = vmatpush.bf16.msra.mxu0 %v4868
    %5771 = vmatpush.bf16.msra.mxu0 %v4862
    %5772 = vmatpush.bf16.msra.mxu0 %v4856
    %5773 = vmatpush.bf16.msra.mxu0 %v4850
    %5774 = vmatpush.bf16.msra.mxu0 %v4844
    %5775 = vmatpush.bf16.msra.mxu0 %v4838
    %5776 = vmatpush.bf16.msra.mxu0 %v4832
    %5777 = vmatmul.bf16.gmra.mxu0 %v3074
    %v5778 = vpop.f32.mrf.mxu0
    %v5779 = vadd.f32 %v5766, %v5778
    %v5780 = vpop.f32.mrf.mxu0
    %5781 = vdwg.mxu0
    %5782 = vmatpush.bf16.msra.mxu0 %v4922
    %5783 = vmatpush.bf16.msra.mxu0 %v4916
    %5784 = vmatpush.bf16.msra.mxu0 %v4910
    %5785 = vmatpush.bf16.msra.mxu0 %v4904
    %5786 = vmatpush.bf16.msra.mxu0 %v4898
    %5787 = vmatpush.bf16.msra.mxu0 %v4892
    %5788 = vmatpush.bf16.msra.mxu0 %v4886
    %5789 = vmatpush.bf16.msra.mxu0 %v4880
    %5790 = vmatmul.bf16.gmra.mxu0 %v3075
    %v5791 = vpop.f32.mrf.mxu0
    %v5792 = vadd.f32 %v5779, %v5791
    %v5793 = vpop.f32.mrf.mxu0
    %5794 = vdwg.mxu0
    %5795 = vmatpush.bf16.msra.mxu0 %v4970
    %5796 = vmatpush.bf16.msra.mxu0 %v4964
    %5797 = vmatpush.bf16.msra.mxu0 %v4958
    %5798 = vmatpush.bf16.msra.mxu0 %v4952
    %5799 = vmatpush.bf16.msra.mxu0 %v4946
    %5800 = vmatpush.bf16.msra.mxu0 %v4940
    %5801 = vmatpush.bf16.msra.mxu0 %v4934
    %5802 = vmatpush.bf16.msra.mxu0 %v4928
    %5803 = vmatmul.bf16.gmra.mxu0 %v3076
    %v5804 = vpop.f32.mrf.mxu0
    %v5805 = vadd.f32 %v5792, %v5804
    %v5806 = vpop.f32.mrf.mxu0
    %5807 = vdwg.mxu0
    %5808 = vmatpush.bf16.msra.mxu0 %v5018
    %5809 = vmatpush.bf16.msra.mxu0 %v5012
    %5810 = vmatpush.bf16.msra.mxu0 %v5006
    %5811 = vmatpush.bf16.msra.mxu0 %v5000
    %5812 = vmatpush.bf16.msra.mxu0 %v4994
    %5813 = vmatpush.bf16.msra.mxu0 %v4988
    %5814 = vmatpush.bf16.msra.mxu0 %v4982
    %5815 = vmatpush.bf16.msra.mxu0 %v4976
    %5816 = vmatmul.bf16.gmra.mxu0 %v3077
    %v5817 = vpop.f32.mrf.mxu0
    %v5818 = vadd.f32 %v5805, %v5817
    %v5819 = vpop.f32.mrf.mxu0
    %5820 = vdwg.mxu0
    %5821 = vmatpush.bf16.msra.mxu0 %v4683
    %5822 = vmatpush.bf16.msra.mxu0 %v4677
    %5823 = vmatpush.bf16.msra.mxu0 %v4671
    %5824 = vmatpush.bf16.msra.mxu0 %v4665
    %5825 = vmatpush.bf16.msra.mxu0 %v4659
    %5826 = vmatpush.bf16.msra.mxu0 %v4653
    %5827 = vmatpush.bf16.msra.mxu0 %v4647
    %5828 = vmatpush.bf16.msra.mxu0 %v4641
    %5829 = vmatmul.bf16.gmra.mxu0 %v3070
    %v5830 = vpop.f32.mrf.mxu0
    %v5831 = vadd.f32 %v3483, %v5830
    %v5832 = vpop.f32.mrf.mxu0
    %5833 = vdwg.mxu0
    %5834 = vmatpush.bf16.msra.mxu0 %v4731
    %5835 = vmatpush.bf16.msra.mxu0 %v4725
    %5836 = vmatpush.bf16.msra.mxu0 %v4719
    %5837 = vmatpush.bf16.msra.mxu0 %v4713
    %5838 = vmatpush.bf16.msra.mxu0 %v4707
    %5839 = vmatpush.bf16.msra.mxu0 %v4701
    %5840 = vmatpush.bf16.msra.mxu0 %v4695
    %5841 = vmatpush.bf16.msra.mxu0 %v4689
    %5842 = vmatmul.bf16.gmra.mxu0 %v3071
    %v5843 = vpop.f32.mrf.mxu0
    %v5844 = vadd.f32 %v5831, %v5843
    %v5845 = vpop.f32.mrf.mxu0
    %5846 = vdwg.mxu0
    %5847 = vmatpush.bf16.msra.mxu0 %v4779
    %5848 = vmatpush.bf16.msra.mxu0 %v4773
    %5849 = vmatpush.bf16.msra.mxu0 %v4767
    %5850 = vmatpush.bf16.msra.mxu0 %v4761
    %5851 = vmatpush.bf16.msra.mxu0 %v4755
    %5852 = vmatpush.bf16.msra.mxu0 %v4749
    %5853 = vmatpush.bf16.msra.mxu0 %v4743
    %5854 = vmatpush.bf16.msra.mxu0 %v4737
    %5855 = vmatmul.bf16.gmra.mxu0 %v3072
    %v5856 = vpop.f32.mrf.mxu0
    %v5857 = vadd.f32 %v5844, %v5856
    %v5858 = vpop.f32.mrf.mxu0
    %5859 = vdwg.mxu0
    %5860 = vmatpush.bf16.msra.mxu0 %v4827
    %5861 = vmatpush.bf16.msra.mxu0 %v4821
    %5862 = vmatpush.bf16.msra.mxu0 %v4815
    %5863 = vmatpush.bf16.msra.mxu0 %v4809
    %5864 = vmatpush.bf16.msra.mxu0 %v4803
    %5865 = vmatpush.bf16.msra.mxu0 %v4797
    %5866 = vmatpush.bf16.msra.mxu0 %v4791
    %5867 = vmatpush.bf16.msra.mxu0 %v4785
    %5868 = vmatmul.bf16.gmra.mxu0 %v3073
    %v5869 = vpop.f32.mrf.mxu0
    %v5870 = vadd.f32 %v5857, %v5869
    %v5871 = vpop.f32.mrf.mxu0
    %5872 = vdwg.mxu0
    %5873 = vmatpush.bf16.msra.mxu0 %v4875
    %5874 = vmatpush.bf16.msra.mxu0 %v4869
    %5875 = vmatpush.bf16.msra.mxu0 %v4863
    %5876 = vmatpush.bf16.msra.mxu0 %v4857
    %5877 = vmatpush.bf16.msra.mxu0 %v4851
    %5878 = vmatpush.bf16.msra.mxu0 %v4845
    %5879 = vmatpush.bf16.msra.mxu0 %v4839
    %5880 = vmatpush.bf16.msra.mxu0 %v4833
    %5881 = vmatmul.bf16.gmra.mxu0 %v3074
    %v5882 = vpop.f32.mrf.mxu0
    %v5883 = vadd.f32 %v5870, %v5882
    %v5884 = vpop.f32.mrf.mxu0
    %5885 = vdwg.mxu0
    %5886 = vmatpush.bf16.msra.mxu0 %v4923
    %5887 = vmatpush.bf16.msra.mxu0 %v4917
    %5888 = vmatpush.bf16.msra.mxu0 %v4911
    %5889 = vmatpush.bf16.msra.mxu0 %v4905
    %5890 = vmatpush.bf16.msra.mxu0 %v4899
    %5891 = vmatpush.bf16.msra.mxu0 %v4893
    %5892 = vmatpush.bf16.msra.mxu0 %v4887
    %5893 = vmatpush.bf16.msra.mxu0 %v4881
    %5894 = vmatmul.bf16.gmra.mxu0 %v3075
    %v5895 = vpop.f32.mrf.mxu0
    %v5896 = vadd.f32 %v5883, %v5895
    %v5897 = vpop.f32.mrf.mxu0
    %5898 = vdwg.mxu0
    %5899 = vmatpush.bf16.msra.mxu0 %v4971
    %5900 = vmatpush.bf16.msra.mxu0 %v4965
    %5901 = vmatpush.bf16.msra.mxu0 %v4959
    %5902 = vmatpush.bf16.msra.mxu0 %v4953
    %5903 = vmatpush.bf16.msra.mxu0 %v4947
    %5904 = vmatpush.bf16.msra.mxu0 %v4941
    %5905 = vmatpush.bf16.msra.mxu0 %v4935
    %5906 = vmatpush.bf16.msra.mxu0 %v4929
    %5907 = vmatmul.bf16.gmra.mxu0 %v3076
    %v5908 = vpop.f32.mrf.mxu0
    %v5909 = vadd.f32 %v5896, %v5908
    %v5910 = vpop.f32.mrf.mxu0
    %5911 = vdwg.mxu0
    %5912 = vmatpush.bf16.msra.mxu0 %v5019
    %5913 = vmatpush.bf16.msra.mxu0 %v5013
    %5914 = vmatpush.bf16.msra.mxu0 %v5007
    %5915 = vmatpush.bf16.msra.mxu0 %v5001
    %5916 = vmatpush.bf16.msra.mxu0 %v4995
    %5917 = vmatpush.bf16.msra.mxu0 %v4989
    %5918 = vmatpush.bf16.msra.mxu0 %v4983
    %5919 = vmatpush.bf16.msra.mxu0 %v4977
    %5920 = vmatmul.bf16.gmra.mxu0 %v3077
    %v5921 = vpop.f32.mrf.mxu0
    %v5922 = vadd.f32 %v5909, %v5921
    %v5923 = vpop.f32.mrf.mxu0
    %5924 = vdwg.mxu0
    %5925 = vmatpush.bf16.msra.mxu0 %v4684
    %5926 = vmatpush.bf16.msra.mxu0 %v4678
    %5927 = vmatpush.bf16.msra.mxu0 %v4672
    %5928 = vmatpush.bf16.msra.mxu0 %v4666
    %5929 = vmatpush.bf16.msra.mxu0 %v4660
    %5930 = vmatpush.bf16.msra.mxu0 %v4654
    %5931 = vmatpush.bf16.msra.mxu0 %v4648
    %5932 = vmatpush.bf16.msra.mxu0 %v4642
    %5933 = vmatmul.bf16.gmra.mxu0 %v3070
    %v5934 = vpop.f32.mrf.mxu0
    %v5935 = vadd.f32 %v3484, %v5934
    %v5936 = vpop.f32.mrf.mxu0
    %5937 = vdwg.mxu0
    %5938 = vmatpush.bf16.msra.mxu0 %v4732
    %5939 = vmatpush.bf16.msra.mxu0 %v4726
    %5940 = vmatpush.bf16.msra.mxu0 %v4720
    %5941 = vmatpush.bf16.msra.mxu0 %v4714
    %5942 = vmatpush.bf16.msra.mxu0 %v4708
    %5943 = vmatpush.bf16.msra.mxu0 %v4702
    %5944 = vmatpush.bf16.msra.mxu0 %v4696
    %5945 = vmatpush.bf16.msra.mxu0 %v4690
    %5946 = vmatmul.bf16.gmra.mxu0 %v3071
    %v5947 = vpop.f32.mrf.mxu0
    %v5948 = vadd.f32 %v5935, %v5947
    %v5949 = vpop.f32.mrf.mxu0
    %5950 = vdwg.mxu0
    %5951 = vmatpush.bf16.msra.mxu0 %v4780
    %5952 = vmatpush.bf16.msra.mxu0 %v4774
    %5953 = vmatpush.bf16.msra.mxu0 %v4768
    %5954 = vmatpush.bf16.msra.mxu0 %v4762
    %5955 = vmatpush.bf16.msra.mxu0 %v4756
    %5956 = vmatpush.bf16.msra.mxu0 %v4750
    %5957 = vmatpush.bf16.msra.mxu0 %v4744
    %5958 = vmatpush.bf16.msra.mxu0 %v4738
    %5959 = vmatmul.bf16.gmra.mxu0 %v3072
    %v5960 = vpop.f32.mrf.mxu0
    %v5961 = vadd.f32 %v5948, %v5960
    %v5962 = vpop.f32.mrf.mxu0
    %5963 = vdwg.mxu0
    %5964 = vmatpush.bf16.msra.mxu0 %v4828
    %5965 = vmatpush.bf16.msra.mxu0 %v4822
    %5966 = vmatpush.bf16.msra.mxu0 %v4816
    %5967 = vmatpush.bf16.msra.mxu0 %v4810
    %5968 = vmatpush.bf16.msra.mxu0 %v4804
    %5969 = vmatpush.bf16.msra.mxu0 %v4798
    %5970 = vmatpush.bf16.msra.mxu0 %v4792
    %5971 = vmatpush.bf16.msra.mxu0 %v4786
    %5972 = vmatmul.bf16.gmra.mxu0 %v3073
    %v5973 = vpop.f32.mrf.mxu0
    %v5974 = vadd.f32 %v5961, %v5973
    %v5975 = vpop.f32.mrf.mxu0
    %5976 = vdwg.mxu0
    %5977 = vmatpush.bf16.msra.mxu0 %v4876
    %5978 = vmatpush.bf16.msra.mxu0 %v4870
    %5979 = vmatpush.bf16.msra.mxu0 %v4864
    %5980 = vmatpush.bf16.msra.mxu0 %v4858
    %5981 = vmatpush.bf16.msra.mxu0 %v4852
    %5982 = vmatpush.bf16.msra.mxu0 %v4846
    %5983 = vmatpush.bf16.msra.mxu0 %v4840
    %5984 = vmatpush.bf16.msra.mxu0 %v4834
    %5985 = vmatmul.bf16.gmra.mxu0 %v3074
    %v5986 = vpop.f32.mrf.mxu0
    %v5987 = vadd.f32 %v5974, %v5986
    %v5988 = vpop.f32.mrf.mxu0
    %5989 = vdwg.mxu0
    %5990 = vmatpush.bf16.msra.mxu0 %v4924
    %5991 = vmatpush.bf16.msra.mxu0 %v4918
    %5992 = vmatpush.bf16.msra.mxu0 %v4912
    %5993 = vmatpush.bf16.msra.mxu0 %v4906
    %5994 = vmatpush.bf16.msra.mxu0 %v4900
    %5995 = vmatpush.bf16.msra.mxu0 %v4894
    %5996 = vmatpush.bf16.msra.mxu0 %v4888
    %5997 = vmatpush.bf16.msra.mxu0 %v4882
    %5998 = vmatmul.bf16.gmra.mxu0 %v3075
    %v5999 = vpop.f32.mrf.mxu0
    %v6000 = vadd.f32 %v5987, %v5999
    %v6001 = vpop.f32.mrf.mxu0
    %6002 = vdwg.mxu0
    %6003 = vmatpush.bf16.msra.mxu0 %v4972
    %6004 = vmatpush.bf16.msra.mxu0 %v4966
    %6005 = vmatpush.bf16.msra.mxu0 %v4960
    %6006 = vmatpush.bf16.msra.mxu0 %v4954
    %6007 = vmatpush.bf16.msra.mxu0 %v4948
    %6008 = vmatpush.bf16.msra.mxu0 %v4942
    %6009 = vmatpush.bf16.msra.mxu0 %v4936
    %6010 = vmatpush.bf16.msra.mxu0 %v4930
    %6011 = vmatmul.bf16.gmra.mxu0 %v3076
    %v6012 = vpop.f32.mrf.mxu0
    %v6013 = vadd.f32 %v6000, %v6012
    %v6014 = vpop.f32.mrf.mxu0
    %6015 = vdwg.mxu0
    %6016 = vmatpush.bf16.msra.mxu0 %v5020
    %6017 = vmatpush.bf16.msra.mxu0 %v5014
    %6018 = vmatpush.bf16.msra.mxu0 %v5008
    %6019 = vmatpush.bf16.msra.mxu0 %v5002
    %6020 = vmatpush.bf16.msra.mxu0 %v4996
    %6021 = vmatpush.bf16.msra.mxu0 %v4990
    %6022 = vmatpush.bf16.msra.mxu0 %v4984
    %6023 = vmatpush.bf16.msra.mxu0 %v4978
    %6024 = vmatmul.bf16.gmra.mxu0 %v3077
    %v6025 = vpop.f32.mrf.mxu0
    %v6026 = vadd.f32 %v6013, %v6025
    %v6027 = vpop.f32.mrf.mxu0
    %6028 = vdwg.mxu0
    %6029 = vst [vmem:[#allocation11] sm:$0xff] %v5506
    %6030 = vst [vmem:[#allocation11 + $0x8] sm:$0xff] %v5610
    %6031 = vst [vmem:[#allocation11 + $0x10] sm:$0xff] %v5714
    %6032 = vst [vmem:[#allocation11 + $0x18] sm:$0xff] %v5818
    %6033 = vst [vmem:[#allocation11 + $0x20] sm:$0xff] %v5922
    %6034 = vst [vmem:[#allocation11 + $0x28] sm:$0xff] %v6026
    // Predicated region
    $region42: #{tpu_custom_call.1} parent=1 // pred_check
      _
    $region43: #{tpu_custom_call.1} parent=1 // pred_check_branch
      %6036 = sbr.rel (0) target = $region45
    $region44: #{tpu_custom_call.1} parent=1 // pred_region
      %6038 = vsyncadd [#allocation4], 0
      %s6040 = sshll.u32 [#allocation11], 4
      %s6041 = int_to_ptr.vmem [resolvable:$true] %s6040
      %s6042 = sshll.u32 %s5, 4
      %s6043 = int_to_ptr.hbm [resolvable:$true] %s6042
      %6045 = dma.vmem_to_hbm [thread:$0]  %s6041, 768, %s6043, [#allocation4]
    $region45: #{tpu_custom_call.1} parent=1 // pred_fallthru
      _
    // Predicated region
    $region46: #{tpu_custom_call.1} parent=1 // pred_check
      _
    $region47: #{tpu_custom_call.1} parent=1 // pred_check_branch
      %6047 = sbr.rel (0) target = $region49
    $region48: #{tpu_custom_call.1} parent=1 // pred_region
      %6049 = dma.done [#allocation4], 768
    $region49: #{tpu_custom_call.1} parent=1 // pred_fallthru
      _
    %6050 = vsyncpa [#allocation3], 1
    %6051 = vsyncpa [#allocation6], 1
    %6052 = vsyncpa [#allocation9], 1
    %6053 = vsyncpa [#allocation4], 1

</llo_original>
